<compile_context>
chip_gen: v6e
topology: v6e:2x2x1
jax: 0.10.0
libtpu: 0.0.40
codegen_flags: <defaults>
</compile_context>

<pallas_src>
import functools

import jax
import jax.numpy as jnp
from jax.experimental import pallas as pl
from jax.experimental.pallas import tpu as pltpu


def _round_up(v, m):
    return ((v + m - 1) // m) * m


@functools.lru_cache(maxsize=1)
def _tpu_defaults():
    """(row_tile, vmem_limit_bytes) per TPU generation; conservative if unknown."""
    try:
        vmem = pltpu.get_tpu_info().vmem_capacity_bytes
    except Exception:
        vmem = None
    if vmem is not None and vmem >= 100 * (1 << 20):
        # v5e / v6e: 128 MiB physical VMEM -> big row tiles, generous scoped limit.
        return 1024, 96 * (1 << 20)
    # v7x (64 MiB per TensorCore) or unknown: smaller tile keeps per-step VMEM
    # low and gives the "parallel" grid axis >=2 steps sooner (megacore).
    return 512, 48 * (1 << 20)


def _dqn_kernel(x_ref, s_ref, w1x_ref, w1s_ref, b1_ref, w2_ref, b2_ref,
                w3_ref, b3_ref, o_ref):
    cdt = w1x_ref.dtype  # compute dtype of the matmul operands (bf16 or f32)

    # conv1 on the fused concat (split contraction) + bias + ReLU
    h1 = jnp.dot(x_ref[...].astype(cdt), w1x_ref[...],
                 preferred_element_type=jnp.float32)
    h1 = h1 + jnp.dot(s_ref[...].astype(cdt), w1s_ref[...],
                      preferred_element_type=jnp.float32)
    h1 = jnp.maximum(h1 + b1_ref[...], 0.0)
    # conv2 + bias + ReLU
    h2 = jnp.dot(h1.astype(cdt), w2_ref[...], preferred_element_type=jnp.float32)
    h2 = jnp.maximum(h2 + b2_ref[...], 0.0)
    # conv3 + bias (output lanes padded to 128; extra lanes carry zero weights)
    h3 = jnp.dot(h2.astype(cdt), w3_ref[...], preferred_element_type=jnp.float32)
    o_ref[...] = (h3 + b3_ref[...]).astype(o_ref.dtype)


@functools.partial(jax.jit, static_argnames=("tm", "compute_dtype"))
def dqn_forward(x, state, params, *, tm=None, compute_dtype=jnp.bfloat16):
    """x: (N, 512, H, W), state: (N, NUM_STEP_ALLOW, H, W) -> (N, ACTION_NUMBER, H, W)."""
    w1, b1, w2, b2, w3, b3 = params
    n, c_x, h, w = x.shape
    c_s = state.shape[1]
    c_hid = w1.shape[1]
    c_out = w3.shape[1]

    tm_default, vmem_limit = _tpu_defaults()
    if tm is None:
        tm = tm_default

    # NCHW -> (M, C) with channels on the lane axis.  torch.cat(dim=1) is fused
    # into the kernel by splitting W1's rows, so the concat never hits HBM.
    # TODO(synk): for deployments with H*W >= 128, an NCHW-native (C_in, HW)
    # tiling would remove both wrapper transposes' HBM round trips.
    m = n * h * w
    xf = jnp.transpose(x, (0, 2, 3, 1)).reshape(m, c_x)
    sf = jnp.transpose(state, (0, 2, 3, 1)).reshape(m, c_s)

    # Weights cast once to the compute dtype (bf16 by default); biases stay f32
    # and are added to the f32 accumulator.
    w1x = w1[:c_x].astype(compute_dtype)    # (512, 1024)
    w1s = w1[c_x:].astype(compute_dtype)    # (NUM_STEP_ALLOW, 1024)
    w2c = w2.astype(compute_dtype)          # (1024, 1024)

    # Lane-dense output: pad ACTION_NUMBER (e.g. 4) up to 128 output lanes.
    c_out_p = _round_up(c_out, 128)
    w3p = jnp.pad(w3, ((0, 0), (0, c_out_p - c_out))).astype(compute_dtype)
    b3p = jnp.pad(b3, ((0, 0), (0, c_out_p - c_out)))

    # Row tile: clamp to the (sublane-rounded) problem size; pad rows only if M
    # is ragged w.r.t. the tile (last tile only).
    tm_eff = min(tm, _round_up(m, 8))
    m_pad = _round_up(m, tm_eff)
    if m_pad != m:
        xf = jnp.pad(xf, ((0, m_pad - m), (0, 0)))
        sf = jnp.pad(sf, ((0, m_pad - m), (0, 0)))

    wbytes = jnp.dtype(compute_dtype).itemsize
    flops = 2 * m_pad * (c_x * c_hid + c_s * c_hid + c_hid * c_hid + c_hid * c_out_p)
    bytes_accessed = (4 * m_pad * (c_x + c_s + c_out_p)
                      + wbytes * (c_x * c_hid + c_s * c_hid + c_hid * c_hid
                                  + c_hid * c_out_p)
                      + 4 * (2 * c_hid + c_out_p))

    grid = (m_pad // tm_eff,)
    out_flat = pl.pallas_call(
        _dqn_kernel,
        out_shape=jax.ShapeDtypeStruct((m_pad, c_out_p), jnp.float32),
        grid_spec=pltpu.PrefetchScalarGridSpec(
            num_scalar_prefetch=0,
            grid=grid,
            in_specs=[
                pl.BlockSpec((tm_eff, c_x), lambda i: (i, 0)),     # x rows
                pl.BlockSpec((tm_eff, c_s), lambda i: (i, 0)),     # state rows
                pl.BlockSpec((c_x, c_hid), lambda i: (0, 0)),      # W1[:512]   (resident)
                pl.BlockSpec((c_s, c_hid), lambda i: (0, 0)),      # W1[512:]   (resident)
                pl.BlockSpec((1, c_hid), lambda i: (0, 0)),        # b1
                pl.BlockSpec((c_hid, c_hid), lambda i: (0, 0)),    # W2         (resident)
                pl.BlockSpec((1, c_hid), lambda i: (0, 0)),        # b2
                pl.BlockSpec((c_hid, c_out_p), lambda i: (0, 0)),  # W3 (lane-padded)
                pl.BlockSpec((1, c_out_p), lambda i: (0, 0)),      # b3 (lane-padded)
            ],
            out_specs=pl.BlockSpec((tm_eff, c_out_p), lambda i: (i, 0)),
        ),
        compiler_params=pltpu.CompilerParams(
            dimension_semantics=("parallel",),
            vmem_limit_bytes=vmem_limit,
        ),
        cost_estimate=pl.CostEstimate(
            flops=flops, transcendentals=0, bytes_accessed=bytes_accessed),
    )(xf, sf, w1x, w1s, b1, w2c, b2, w3p, b3p)

    out_flat = out_flat[:m, :c_out]                 # drop row + lane padding
    out = out_flat.reshape(n, h, w, c_out)          # NHWC
    return jnp.transpose(out, (0, 3, 1, 2))         # back to NCHW


def init_dqn_params(key, action_number, num_step_allow):
    """Deterministic init matching the module: xavier_uniform_ weights, bias = 0.01.

    Weights stored already transposed for the matmul path:
        conv weight (C_out, C_in, 1, 1) -> (C_in, C_out); kept in f32.
    """
    c_in = num_step_allow + 512
    dims = [(c_in, 1024), (1024, 1024), (1024, action_number)]
    params = []
    for d, (fan_in, fan_out) in enumerate(dims):
        k = jax.random.fold_in(key, d)
        bound = (6.0 / (fan_in + fan_out)) ** 0.5                 # xavier_uniform_, 1x1 kernel
        wgt = jax.random.uniform(k, (fan_in, fan_out), jnp.float32, -bound, bound)
        b = jnp.full((1, fan_out), 0.01, jnp.float32)             # init.constant_(bias, 0.01)
        params.extend([wgt, b])
    return tuple(params)


def _reference_forward(x, state, params):
    """Pure-JAX reference (1x1 convs as per-pixel matmuls over the concat)."""
    w1, b1, w2, b2, w3, b3 = params
    xc = jnp.concatenate([x, state], axis=1)
    xf = jnp.transpose(xc, (0, 2, 3, 1))
    h = jnp.maximum(xf @ w1 + b1[0], 0.0)
    h = jnp.maximum(h @ w2 + b2[0], 0.0)
    o = h @ w3 + b3[0]
    return jnp.transpose(o, (0, 3, 1, 2))


if __name__ == "__main__":
    ACTION_NUMBER = 4
    NUM_STEP_ALLOW = 8
    N, H, W = 2, 4, 4

    key = jax.random.PRNGKey(0)
    kx, ks, kp = jax.random.split(key, 3)
    x = jax.random.normal(kx, (N, 512, H, W), jnp.float32)
    state = jax.random.normal(ks, (N, NUM_STEP_ALLOW, H, W), jnp.float32)
    params = init_dqn_params(kp, ACTION_NUMBER, NUM_STEP_ALLOW)

    ref = _reference_forward(x, state, params)

    # Default fast path: bf16 operands, f32 accumulation (loose tolerance).
    out = jax.block_until_ready(dqn_forward(x, state, params))
    assert out.shape == (N, ACTION_NUMBER, H, W), out.shape
    err_bf16 = float(jnp.max(jnp.abs(out - ref)))
    assert jnp.allclose(out, ref, atol=5e-2, rtol=5e-2), err_bf16

    # Full-f32 path for tight parity with the PyTorch numerics.
    out_f32 = jax.block_until_ready(
        dqn_forward(x, state, params, compute_dtype=jnp.float32))
    err_f32 = float(jnp.max(jnp.abs(out_f32 - ref)))
    assert jnp.allclose(out_f32, ref, atol=1e-4, rtol=1e-4), err_f32

    print("KERNEL_OK")
</pallas_src>

<mosaic_0001>
module attributes {stable_mosaic.version = 11 : i64} {
  func.func @_dqn_kernel(%arg0: i32, %arg1: memref<32x512xf32, #tpu.memory_space<vmem>>, %arg2: memref<32x8xf32, #tpu.memory_space<vmem>>, %arg3: memref<512x1024xbf16, #tpu.memory_space<vmem>>, %arg4: memref<8x1024xbf16, #tpu.memory_space<vmem>>, %arg5: memref<1x1024xf32, #tpu.memory_space<vmem>>, %arg6: memref<1024x1024xbf16, #tpu.memory_space<vmem>>, %arg7: memref<1x1024xf32, #tpu.memory_space<vmem>>, %arg8: memref<1024x128xbf16, #tpu.memory_space<vmem>>, %arg9: memref<1x128xf32, #tpu.memory_space<vmem>>, %arg10: memref<32x128xf32, #tpu.memory_space<vmem>>) attributes {dimension_semantics = [#tpu.dimension_semantics<parallel>], iteration_bounds = array<i64: 1>, scalar_prefetch = 0 : i64, scratch_operands = 0 : i64, tpu.core_type = #tpu.core_type<tc>, window_params = [{transform_indices = @transform_0, window_bounds = array<i64: 32, 512>}, {transform_indices = @transform_1, window_bounds = array<i64: 32, 8>}, {pipeline_mode = #tpu.pipeline_mode<synchronous>, transform_indices = @transform_2, window_bounds = array<i64: 512, 1024>}, {pipeline_mode = #tpu.pipeline_mode<synchronous>, transform_indices = @transform_3, window_bounds = array<i64: 8, 1024>}, {pipeline_mode = #tpu.pipeline_mode<synchronous>, transform_indices = @transform_4, window_bounds = array<i64: 1, 1024>}, {pipeline_mode = #tpu.pipeline_mode<synchronous>, transform_indices = @transform_5, window_bounds = array<i64: 1024, 1024>}, {pipeline_mode = #tpu.pipeline_mode<synchronous>, transform_indices = @transform_6, window_bounds = array<i64: 1, 1024>}, {pipeline_mode = #tpu.pipeline_mode<synchronous>, transform_indices = @transform_7, window_bounds = array<i64: 1024, 128>}, {pipeline_mode = #tpu.pipeline_mode<synchronous>, transform_indices = @transform_8, window_bounds = array<i64: 1, 128>}, {transform_indices = @transform_9, window_bounds = array<i64: 32, 128>}]} {
    %c0 = arith.constant 0 : index
    %c0_0 = arith.constant 0 : index
    %0 = vector.load %arg1[%c0, %c0_0] : memref<32x512xf32, #tpu.memory_space<vmem>>, vector<32x512xf32>
    %1 = arith.truncf %0 : vector<32x512xf32> to vector<32x512xbf16>
    %c0_1 = arith.constant 0 : index
    %c0_2 = arith.constant 0 : index
    %2 = vector.load %arg3[%c0_1, %c0_2] : memref<512x1024xbf16, #tpu.memory_space<vmem>>, vector<512x1024xbf16>
    %cst = arith.constant dense<0.000000e+00> : vector<32x1024xf32>
    %3 = tpu.matmul %1, %2, %cst {dimension_numbers = #tpu.dot_dimension_numbers<[1], [0], [0], [1], [0, 0, 1, 1], [], []>} : vector<32x512xbf16>, vector<512x1024xbf16>, vector<32x1024xf32> -> vector<32x1024xf32>
    %c0_3 = arith.constant 0 : index
    %c0_4 = arith.constant 0 : index
    %4 = vector.load %arg2[%c0_3, %c0_4] : memref<32x8xf32, #tpu.memory_space<vmem>>, vector<32x8xf32>
    %5 = arith.truncf %4 : vector<32x8xf32> to vector<32x8xbf16>
    %c0_5 = arith.constant 0 : index
    %c0_6 = arith.constant 0 : index
    %6 = vector.load %arg4[%c0_5, %c0_6] : memref<8x1024xbf16, #tpu.memory_space<vmem>>, vector<8x1024xbf16>
    %cst_7 = arith.constant dense<0.000000e+00> : vector<32x1024xf32>
    %7 = tpu.matmul %5, %6, %cst_7 {dimension_numbers = #tpu.dot_dimension_numbers<[1], [0], [0], [1], [0, 0, 1, 1], [], []>} : vector<32x8xbf16>, vector<8x1024xbf16>, vector<32x1024xf32> -> vector<32x1024xf32>
    %8 = arith.addf %3, %7 : vector<32x1024xf32>
    %c0_8 = arith.constant 0 : index
    %c0_9 = arith.constant 0 : index
    %9 = vector.load %arg5[%c0_8, %c0_9] : memref<1x1024xf32, #tpu.memory_space<vmem>>, vector<1x1024xf32>
    %10 = vector.broadcast %9 : vector<1x1024xf32> to vector<32x1024xf32>
    %11 = arith.addf %8, %10 : vector<32x1024xf32>
    %cst_10 = arith.constant 0.000000e+00 : f32
    %12 = vector.broadcast %cst_10 : f32 to vector<32x1024xf32>
    %13 = arith.maximumf %11, %12 : vector<32x1024xf32>
    %14 = arith.truncf %13 : vector<32x1024xf32> to vector<32x1024xbf16>
    %c0_11 = arith.constant 0 : index
    %c0_12 = arith.constant 0 : index
    %15 = vector.load %arg6[%c0_11, %c0_12] : memref<1024x1024xbf16, #tpu.memory_space<vmem>>, vector<1024x1024xbf16>
    %cst_13 = arith.constant dense<0.000000e+00> : vector<32x1024xf32>
    %16 = tpu.matmul %14, %15, %cst_13 {dimension_numbers = #tpu.dot_dimension_numbers<[1], [0], [0], [1], [0, 0, 1, 1], [], []>} : vector<32x1024xbf16>, vector<1024x1024xbf16>, vector<32x1024xf32> -> vector<32x1024xf32>
    %c0_14 = arith.constant 0 : index
    %c0_15 = arith.constant 0 : index
    %17 = vector.load %arg7[%c0_14, %c0_15] : memref<1x1024xf32, #tpu.memory_space<vmem>>, vector<1x1024xf32>
    %18 = vector.broadcast %17 : vector<1x1024xf32> to vector<32x1024xf32>
    %19 = arith.addf %16, %18 : vector<32x1024xf32>
    %cst_16 = arith.constant 0.000000e+00 : f32
    %20 = vector.broadcast %cst_16 : f32 to vector<32x1024xf32>
    %21 = arith.maximumf %19, %20 : vector<32x1024xf32>
    %22 = arith.truncf %21 : vector<32x1024xf32> to vector<32x1024xbf16>
    %c0_17 = arith.constant 0 : index
    %c0_18 = arith.constant 0 : index
    %23 = vector.load %arg8[%c0_17, %c0_18] : memref<1024x128xbf16, #tpu.memory_space<vmem>>, vector<1024x128xbf16>
    %cst_19 = arith.constant dense<0.000000e+00> : vector<32x128xf32>
    %24 = tpu.matmul %22, %23, %cst_19 {dimension_numbers = #tpu.dot_dimension_numbers<[1], [0], [0], [1], [0, 0, 1, 1], [], []>} : vector<32x1024xbf16>, vector<1024x128xbf16>, vector<32x128xf32> -> vector<32x128xf32>
    %c0_20 = arith.constant 0 : index
    %c0_21 = arith.constant 0 : index
    %25 = vector.load %arg9[%c0_20, %c0_21] : memref<1x128xf32, #tpu.memory_space<vmem>>, vector<1x128xf32>
    %26 = vector.broadcast %25 : vector<1x128xf32> to vector<32x128xf32>
    %27 = arith.addf %24, %26 : vector<32x128xf32>
    %c0_22 = arith.constant 0 : index
    %c0_23 = arith.constant 0 : index
    %28 = vector.load %arg10[%c0_22, %c0_23] : memref<32x128xf32, #tpu.memory_space<vmem>>, vector<32x128xf32>
    tpu.vector_store %arg10[%c0_22, %c0_23], %27 {strides = array<i32>} : memref<32x128xf32, #tpu.memory_space<vmem>>, vector<32x128xf32>,
    return
  }
  func.func @transform_0(%arg0: i32) -> (i32, i32) {
    %c0_i32 = arith.constant 0 : i32
    %c0_i32_0 = arith.constant 0 : i32
    return %arg0, %c0_i32 : i32, i32
  }
  func.func @transform_1(%arg0: i32) -> (i32, i32) {
    %c0_i32 = arith.constant 0 : i32
    %c0_i32_0 = arith.constant 0 : i32
    return %arg0, %c0_i32 : i32, i32
  }
  func.func @transform_2(%arg0: i32) -> (i32, i32) {
    %c0_i32 = arith.constant 0 : i32
    %c0_i32_0 = arith.constant 0 : i32
    %c0_i32_1 = arith.constant 0 : i32
    return %c0_i32, %c0_i32_0 : i32, i32
  }
  func.func @transform_3(%arg0: i32) -> (i32, i32) {
    %c0_i32 = arith.constant 0 : i32
    %c0_i32_0 = arith.constant 0 : i32
    %c0_i32_1 = arith.constant 0 : i32
    return %c0_i32, %c0_i32_0 : i32, i32
  }
  func.func @transform_4(%arg0: i32) -> (i32, i32) {
    %c0_i32 = arith.constant 0 : i32
    %c0_i32_0 = arith.constant 0 : i32
    %c0_i32_1 = arith.constant 0 : i32
    return %c0_i32, %c0_i32_0 : i32, i32
  }
  func.func @transform_5(%arg0: i32) -> (i32, i32) {
    %c0_i32 = arith.constant 0 : i32
    %c0_i32_0 = arith.constant 0 : i32
    %c0_i32_1 = arith.constant 0 : i32
    return %c0_i32, %c0_i32_0 : i32, i32
  }
  func.func @transform_6(%arg0: i32) -> (i32, i32) {
    %c0_i32 = arith.constant 0 : i32
    %c0_i32_0 = arith.constant 0 : i32
    %c0_i32_1 = arith.constant 0 : i32
    return %c0_i32, %c0_i32_0 : i32, i32
  }
  func.func @transform_7(%arg0: i32) -> (i32, i32) {
    %c0_i32 = arith.constant 0 : i32
    %c0_i32_0 = arith.constant 0 : i32
    %c0_i32_1 = arith.constant 0 : i32
    return %c0_i32, %c0_i32_0 : i32, i32
  }
  func.func @transform_8(%arg0: i32) -> (i32, i32) {
    %c0_i32 = arith.constant 0 : i32
    %c0_i32_0 = arith.constant 0 : i32
    %c0_i32_1 = arith.constant 0 : i32
    return %c0_i32, %c0_i32_0 : i32, i32
  }
  func.func @transform_9(%arg0: i32) -> (i32, i32) {
    %c0_i32 = arith.constant 0 : i32
    %c0_i32_0 = arith.constant 0 : i32
    return %arg0, %c0_i32 : i32, i32
  }
}

</mosaic_0001>

<llo_original>
// kernel: dqn_forward.1
$region0: #{dqn_forward.1}
  #allocation0 [shape = 'u32[]', space=smem, size = 0x4, offset = 0x4, fixed_abs, tag = 'smem constant byte address 0x4 - core index']
  #allocation1 [shape = 'u32[144,128]{1,0:T(1,128)}', space=vmem, size = 0x12000, scoped, tag = 'internal scratch']
  %s0 = inlined_call_operand.vmem [shape: f32[32,512], index: 0, kind: input, shape index: {}]
  %s1 = inlined_call_operand.vmem [shape: f32[32,8], index: 1, kind: input, shape index: {}]
  %s2 = inlined_call_operand.vmem [shape: bf16[512,1024], index: 2, kind: input, shape index: {}]
  %s3 = inlined_call_operand.vmem [shape: bf16[8,1024], index: 3, kind: input, shape index: {}]
  %s4 = inlined_call_operand.vmem [shape: f32[1,1024], index: 4, kind: input, shape index: {}]
  %s5 = inlined_call_operand.vmem [shape: bf16[1024,1024], index: 5, kind: input, shape index: {}]
  %s6 = inlined_call_operand.vmem [shape: f32[1,1024], index: 6, kind: input, shape index: {}]
  %s7 = inlined_call_operand.vmem [shape: bf16[1024,128], index: 7, kind: input, shape index: {}]
  %s8 = inlined_call_operand.vmem [shape: f32[1,128], index: 8, kind: input, shape index: {}]
  %s9 = inlined_call_operand.vmem [shape: f32[32,128], index: 9, kind: output, shape index: {}]
  %s10 = sld [smem:[#allocation0]]
  $region46: #{dqn_forward.1} parent=0
    _
  %s12 = ssub.s32 1, %s10
  %s13 = scalar_select 0, %s12, %s10
  // Predicated region
  $region2: #{dqn_forward.1} parent=0 // pred_check
    _
  $region3: #{dqn_forward.1} parent=0 // pred_check_branch
    %15 = sbr.rel (0) target = $region5
  $region4: #{dqn_forward.1} parent=0 // pred_region
    _
  $region5: #{dqn_forward.1} parent=0 // pred_fallthru
    _
  // Predicated region
  $region6: #{dqn_forward.1} parent=0 // pred_check
    _
  $region7: #{dqn_forward.1} parent=0 // pred_check_branch
    %17 = sbr.rel (0) target = $region9
  $region8: #{dqn_forward.1} parent=0 // pred_region
    _
  $region9: #{dqn_forward.1} parent=0 // pred_fallthru
    _
  // Predicated region
  $region10: #{dqn_forward.1} parent=0 // pred_check
    _
  $region11: #{dqn_forward.1} parent=0 // pred_check_branch
    %19 = sbr.rel (0) target = $region13
  $region12: #{dqn_forward.1} parent=0 // pred_region
    _
  $region13: #{dqn_forward.1} parent=0 // pred_fallthru
    _
  // Predicated region
  $region14: #{dqn_forward.1} parent=0 // pred_check
    _
  $region15: #{dqn_forward.1} parent=0 // pred_check_branch
    %21 = sbr.rel (0) target = $region17
  $region16: #{dqn_forward.1} parent=0 // pred_region
    _
  $region17: #{dqn_forward.1} parent=0 // pred_fallthru
    _
  // Predicated region
  $region18: #{dqn_forward.1} parent=0 // pred_check
    _
  $region19: #{dqn_forward.1} parent=0 // pred_check_branch
    %23 = sbr.rel (0) target = $region21
  $region20: #{dqn_forward.1} parent=0 // pred_region
    _
  $region21: #{dqn_forward.1} parent=0 // pred_fallthru
    _
  // Predicated region
  $region22: #{dqn_forward.1} parent=0 // pred_check
    _
  $region23: #{dqn_forward.1} parent=0 // pred_check_branch
    %25 = sbr.rel (0) target = $region25
  $region24: #{dqn_forward.1} parent=0 // pred_region
    _
  $region25: #{dqn_forward.1} parent=0 // pred_fallthru
    _
  // Predicated region
  $region26: #{dqn_forward.1} parent=0 // pred_check
    _
  $region27: #{dqn_forward.1} parent=0 // pred_check_branch
    %27 = sbr.rel (0) target = $region29
  $region28: #{dqn_forward.1} parent=0 // pred_region
    _
  $region29: #{dqn_forward.1} parent=0 // pred_fallthru
    _
  // Predicated region
  $region30: #{dqn_forward.1} parent=0 // pred_check
    _
  $region31: #{dqn_forward.1} parent=0 // pred_check_branch
    %29 = sbr.rel (0) target = $region33
  $region32: #{dqn_forward.1} parent=0 // pred_region
    _
  $region33: #{dqn_forward.1} parent=0 // pred_fallthru
    _
  // Predicated region
  $region34: #{dqn_forward.1} parent=0 // pred_check
    _
  $region35: #{dqn_forward.1} parent=0 // pred_check_branch
    %31 = sbr.rel (0) target = $region37
  $region36: #{dqn_forward.1} parent=0 // pred_region
    _
  $region37: #{dqn_forward.1} parent=0 // pred_fallthru
    _
  %v33 = vld [vmem:[%s0] sm:$0xff]
  %v34 = vld [vmem:[%s0 + $0x8] sm:$0xff]
  %v35 = vld [vmem:[%s0 + $0x10] sm:$0xff]
  %v36 = vld [vmem:[%s0 + $0x18] sm:$0xff]
  %v37 = vld [vmem:[%s0 + $0x20] sm:$0xff]
  %v38 = vld [vmem:[%s0 + $0x28] sm:$0xff]
  %v39 = vld [vmem:[%s0 + $0x30] sm:$0xff]
  %v40 = vld [vmem:[%s0 + $0x38] sm:$0xff]
  %v41 = vld [vmem:[%s0 + $0x40] sm:$0xff]
  %v42 = vld [vmem:[%s0 + $0x48] sm:$0xff]
  %v43 = vld [vmem:[%s0 + $0x50] sm:$0xff]
  %v44 = vld [vmem:[%s0 + $0x58] sm:$0xff]
  %v45 = vld [vmem:[%s0 + $0x60] sm:$0xff]
  %v46 = vld [vmem:[%s0 + $0x68] sm:$0xff]
  %v47 = vld [vmem:[%s0 + $0x70] sm:$0xff]
  %v48 = vld [vmem:[%s0 + $0x78] sm:$0xff]
  %v49 = vpack.c.bf16 %v37, %v33
  %v50 = vpack.c.bf16 %v38, %v34
  %v51 = vpack.c.bf16 %v39, %v35
  %v52 = vpack.c.bf16 %v40, %v36
  %v53 = vpack.c.bf16 %v45, %v41
  %v54 = vpack.c.bf16 %v46, %v42
  %v55 = vpack.c.bf16 %v47, %v43
  %v56 = vpack.c.bf16 %v48, %v44
  %v57 = vld [vmem:[%s2] sm:$0xff]
  %v58 = vld [vmem:[%s2 + $0x8] sm:$0xff]
  %v59 = vld [vmem:[%s2 + $0x10] sm:$0xff]
  %v60 = vld [vmem:[%s2 + $0x18] sm:$0xff]
  %v61 = vld [vmem:[%s2 + $0x20] sm:$0xff]
  %v62 = vld [vmem:[%s2 + $0x28] sm:$0xff]
  %v63 = vld [vmem:[%s2 + $0x30] sm:$0xff]
  %v64 = vld [vmem:[%s2 + $0x38] sm:$0xff]
  %v65 = vld [vmem:[%s2 + $0x40] sm:$0xff]
  %v66 = vld [vmem:[%s2 + $0x48] sm:$0xff]
  %v67 = vld [vmem:[%s2 + $0x50] sm:$0xff]
  %v68 = vld [vmem:[%s2 + $0x58] sm:$0xff]
  %v69 = vld [vmem:[%s2 + $0x60] sm:$0xff]
  %v70 = vld [vmem:[%s2 + $0x68] sm:$0xff]
  %v71 = vld [vmem:[%s2 + $0x70] sm:$0xff]
  %v72 = vld [vmem:[%s2 + $0x78] sm:$0xff]
  %v73 = vld [vmem:[%s2 + $0x80] sm:$0xff]
  %v74 = vld [vmem:[%s2 + $0x88] sm:$0xff]
  %v75 = vld [vmem:[%s2 + $0x90] sm:$0xff]
  %v76 = vld [vmem:[%s2 + $0x98] sm:$0xff]
  %v77 = vld [vmem:[%s2 + $0xa0] sm:$0xff]
  %v78 = vld [vmem:[%s2 + $0xa8] sm:$0xff]
  %v79 = vld [vmem:[%s2 + $0xb0] sm:$0xff]
  %v80 = vld [vmem:[%s2 + $0xb8] sm:$0xff]
  %v81 = vld [vmem:[%s2 + $0xc0] sm:$0xff]
  %v82 = vld [vmem:[%s2 + $0xc8] sm:$0xff]
  %v83 = vld [vmem:[%s2 + $0xd0] sm:$0xff]
  %v84 = vld [vmem:[%s2 + $0xd8] sm:$0xff]
  %v85 = vld [vmem:[%s2 + $0xe0] sm:$0xff]
  %v86 = vld [vmem:[%s2 + $0xe8] sm:$0xff]
  %v87 = vld [vmem:[%s2 + $0xf0] sm:$0xff]
  %v88 = vld [vmem:[%s2 + $0xf8] sm:$0xff]
  %v89 = vld [vmem:[%s2 + $0x100] sm:$0xff]
  %v90 = vld [vmem:[%s2 + $0x108] sm:$0xff]
  %v91 = vld [vmem:[%s2 + $0x110] sm:$0xff]
  %v92 = vld [vmem:[%s2 + $0x118] sm:$0xff]
  %v93 = vld [vmem:[%s2 + $0x120] sm:$0xff]
  %v94 = vld [vmem:[%s2 + $0x128] sm:$0xff]
  %v95 = vld [vmem:[%s2 + $0x130] sm:$0xff]
  %v96 = vld [vmem:[%s2 + $0x138] sm:$0xff]
  %v97 = vld [vmem:[%s2 + $0x140] sm:$0xff]
  %v98 = vld [vmem:[%s2 + $0x148] sm:$0xff]
  %v99 = vld [vmem:[%s2 + $0x150] sm:$0xff]
  %v100 = vld [vmem:[%s2 + $0x158] sm:$0xff]
  %v101 = vld [vmem:[%s2 + $0x160] sm:$0xff]
  %v102 = vld [vmem:[%s2 + $0x168] sm:$0xff]
  %v103 = vld [vmem:[%s2 + $0x170] sm:$0xff]
  %v104 = vld [vmem:[%s2 + $0x178] sm:$0xff]
  %v105 = vld [vmem:[%s2 + $0x180] sm:$0xff]
  %v106 = vld [vmem:[%s2 + $0x188] sm:$0xff]
  %v107 = vld [vmem:[%s2 + $0x190] sm:$0xff]
  %v108 = vld [vmem:[%s2 + $0x198] sm:$0xff]
  %v109 = vld [vmem:[%s2 + $0x1a0] sm:$0xff]
  %v110 = vld [vmem:[%s2 + $0x1a8] sm:$0xff]
  %v111 = vld [vmem:[%s2 + $0x1b0] sm:$0xff]
  %v112 = vld [vmem:[%s2 + $0x1b8] sm:$0xff]
  %v113 = vld [vmem:[%s2 + $0x1c0] sm:$0xff]
  %v114 = vld [vmem:[%s2 + $0x1c8] sm:$0xff]
  %v115 = vld [vmem:[%s2 + $0x1d0] sm:$0xff]
  %v116 = vld [vmem:[%s2 + $0x1d8] sm:$0xff]
  %v117 = vld [vmem:[%s2 + $0x1e0] sm:$0xff]
  %v118 = vld [vmem:[%s2 + $0x1e8] sm:$0xff]
  %v119 = vld [vmem:[%s2 + $0x1f0] sm:$0xff]
  %v120 = vld [vmem:[%s2 + $0x1f8] sm:$0xff]
  %v121 = vld [vmem:[%s2 + $0x200] sm:$0xff]
  %v122 = vld [vmem:[%s2 + $0x208] sm:$0xff]
  %v123 = vld [vmem:[%s2 + $0x210] sm:$0xff]
  %v124 = vld [vmem:[%s2 + $0x218] sm:$0xff]
  %v125 = vld [vmem:[%s2 + $0x220] sm:$0xff]
  %v126 = vld [vmem:[%s2 + $0x228] sm:$0xff]
  %v127 = vld [vmem:[%s2 + $0x230] sm:$0xff]
  %v128 = vld [vmem:[%s2 + $0x238] sm:$0xff]
  %v129 = vld [vmem:[%s2 + $0x240] sm:$0xff]
  %v130 = vld [vmem:[%s2 + $0x248] sm:$0xff]
  %v131 = vld [vmem:[%s2 + $0x250] sm:$0xff]
  %v132 = vld [vmem:[%s2 + $0x258] sm:$0xff]
  %v133 = vld [vmem:[%s2 + $0x260] sm:$0xff]
  %v134 = vld [vmem:[%s2 + $0x268] sm:$0xff]
  %v135 = vld [vmem:[%s2 + $0x270] sm:$0xff]
  %v136 = vld [vmem:[%s2 + $0x278] sm:$0xff]
  %v137 = vld [vmem:[%s2 + $0x280] sm:$0xff]
  %v138 = vld [vmem:[%s2 + $0x288] sm:$0xff]
  %v139 = vld [vmem:[%s2 + $0x290] sm:$0xff]
  %v140 = vld [vmem:[%s2 + $0x298] sm:$0xff]
  %v141 = vld [vmem:[%s2 + $0x2a0] sm:$0xff]
  %v142 = vld [vmem:[%s2 + $0x2a8] sm:$0xff]
  %v143 = vld [vmem:[%s2 + $0x2b0] sm:$0xff]
  %v144 = vld [vmem:[%s2 + $0x2b8] sm:$0xff]
  %v145 = vld [vmem:[%s2 + $0x2c0] sm:$0xff]
  %v146 = vld [vmem:[%s2 + $0x2c8] sm:$0xff]
  %v147 = vld [vmem:[%s2 + $0x2d0] sm:$0xff]
  %v148 = vld [vmem:[%s2 + $0x2d8] sm:$0xff]
  %v149 = vld [vmem:[%s2 + $0x2e0] sm:$0xff]
  %v150 = vld [vmem:[%s2 + $0x2e8] sm:$0xff]
  %v151 = vld [vmem:[%s2 + $0x2f0] sm:$0xff]
  %v152 = vld [vmem:[%s2 + $0x2f8] sm:$0xff]
  %v153 = vld [vmem:[%s2 + $0x300] sm:$0xff]
  %v154 = vld [vmem:[%s2 + $0x308] sm:$0xff]
  %v155 = vld [vmem:[%s2 + $0x310] sm:$0xff]
  %v156 = vld [vmem:[%s2 + $0x318] sm:$0xff]
  %v157 = vld [vmem:[%s2 + $0x320] sm:$0xff]
  %v158 = vld [vmem:[%s2 + $0x328] sm:$0xff]
  %v159 = vld [vmem:[%s2 + $0x330] sm:$0xff]
  %v160 = vld [vmem:[%s2 + $0x338] sm:$0xff]
  %v161 = vld [vmem:[%s2 + $0x340] sm:$0xff]
  %v162 = vld [vmem:[%s2 + $0x348] sm:$0xff]
  %v163 = vld [vmem:[%s2 + $0x350] sm:$0xff]
  %v164 = vld [vmem:[%s2 + $0x358] sm:$0xff]
  %v165 = vld [vmem:[%s2 + $0x360] sm:$0xff]
  %v166 = vld [vmem:[%s2 + $0x368] sm:$0xff]
  %v167 = vld [vmem:[%s2 + $0x370] sm:$0xff]
  %v168 = vld [vmem:[%s2 + $0x378] sm:$0xff]
  %v169 = vld [vmem:[%s2 + $0x380] sm:$0xff]
  %v170 = vld [vmem:[%s2 + $0x388] sm:$0xff]
  %v171 = vld [vmem:[%s2 + $0x390] sm:$0xff]
  %v172 = vld [vmem:[%s2 + $0x398] sm:$0xff]
  %v173 = vld [vmem:[%s2 + $0x3a0] sm:$0xff]
  %v174 = vld [vmem:[%s2 + $0x3a8] sm:$0xff]
  %v175 = vld [vmem:[%s2 + $0x3b0] sm:$0xff]
  %v176 = vld [vmem:[%s2 + $0x3b8] sm:$0xff]
  %v177 = vld [vmem:[%s2 + $0x3c0] sm:$0xff]
  %v178 = vld [vmem:[%s2 + $0x3c8] sm:$0xff]
  %v179 = vld [vmem:[%s2 + $0x3d0] sm:$0xff]
  %v180 = vld [vmem:[%s2 + $0x3d8] sm:$0xff]
  %v181 = vld [vmem:[%s2 + $0x3e0] sm:$0xff]
  %v182 = vld [vmem:[%s2 + $0x3e8] sm:$0xff]
  %v183 = vld [vmem:[%s2 + $0x3f0] sm:$0xff]
  %v184 = vld [vmem:[%s2 + $0x3f8] sm:$0xff]
  %v185 = vld [vmem:[%s2 + $0x400] sm:$0xff]
  %v186 = vld [vmem:[%s2 + $0x408] sm:$0xff]
  %v187 = vld [vmem:[%s2 + $0x410] sm:$0xff]
  %v188 = vld [vmem:[%s2 + $0x418] sm:$0xff]
  %v189 = vld [vmem:[%s2 + $0x420] sm:$0xff]
  %v190 = vld [vmem:[%s2 + $0x428] sm:$0xff]
  %v191 = vld [vmem:[%s2 + $0x430] sm:$0xff]
  %v192 = vld [vmem:[%s2 + $0x438] sm:$0xff]
  %v193 = vld [vmem:[%s2 + $0x440] sm:$0xff]
  %v194 = vld [vmem:[%s2 + $0x448] sm:$0xff]
  %v195 = vld [vmem:[%s2 + $0x450] sm:$0xff]
  %v196 = vld [vmem:[%s2 + $0x458] sm:$0xff]
  %v197 = vld [vmem:[%s2 + $0x460] sm:$0xff]
  %v198 = vld [vmem:[%s2 + $0x468] sm:$0xff]
  %v199 = vld [vmem:[%s2 + $0x470] sm:$0xff]
  %v200 = vld [vmem:[%s2 + $0x478] sm:$0xff]
  %v201 = vld [vmem:[%s2 + $0x480] sm:$0xff]
  %v202 = vld [vmem:[%s2 + $0x488] sm:$0xff]
  %v203 = vld [vmem:[%s2 + $0x490] sm:$0xff]
  %v204 = vld [vmem:[%s2 + $0x498] sm:$0xff]
  %v205 = vld [vmem:[%s2 + $0x4a0] sm:$0xff]
  %v206 = vld [vmem:[%s2 + $0x4a8] sm:$0xff]
  %v207 = vld [vmem:[%s2 + $0x4b0] sm:$0xff]
  %v208 = vld [vmem:[%s2 + $0x4b8] sm:$0xff]
  %v209 = vld [vmem:[%s2 + $0x4c0] sm:$0xff]
  %v210 = vld [vmem:[%s2 + $0x4c8] sm:$0xff]
  %v211 = vld [vmem:[%s2 + $0x4d0] sm:$0xff]
  %v212 = vld [vmem:[%s2 + $0x4d8] sm:$0xff]
  %v213 = vld [vmem:[%s2 + $0x4e0] sm:$0xff]
  %v214 = vld [vmem:[%s2 + $0x4e8] sm:$0xff]
  %v215 = vld [vmem:[%s2 + $0x4f0] sm:$0xff]
  %v216 = vld [vmem:[%s2 + $0x4f8] sm:$0xff]
  %v217 = vld [vmem:[%s2 + $0x500] sm:$0xff]
  %v218 = vld [vmem:[%s2 + $0x508] sm:$0xff]
  %v219 = vld [vmem:[%s2 + $0x510] sm:$0xff]
  %v220 = vld [vmem:[%s2 + $0x518] sm:$0xff]
  %v221 = vld [vmem:[%s2 + $0x520] sm:$0xff]
  %v222 = vld [vmem:[%s2 + $0x528] sm:$0xff]
  %v223 = vld [vmem:[%s2 + $0x530] sm:$0xff]
  %v224 = vld [vmem:[%s2 + $0x538] sm:$0xff]
  %v225 = vld [vmem:[%s2 + $0x540] sm:$0xff]
  %v226 = vld [vmem:[%s2 + $0x548] sm:$0xff]
  %v227 = vld [vmem:[%s2 + $0x550] sm:$0xff]
  %v228 = vld [vmem:[%s2 + $0x558] sm:$0xff]
  %v229 = vld [vmem:[%s2 + $0x560] sm:$0xff]
  %v230 = vld [vmem:[%s2 + $0x568] sm:$0xff]
  %v231 = vld [vmem:[%s2 + $0x570] sm:$0xff]
  %v232 = vld [vmem:[%s2 + $0x578] sm:$0xff]
  %v233 = vld [vmem:[%s2 + $0x580] sm:$0xff]
  %v234 = vld [vmem:[%s2 + $0x588] sm:$0xff]
  %v235 = vld [vmem:[%s2 + $0x590] sm:$0xff]
  %v236 = vld [vmem:[%s2 + $0x598] sm:$0xff]
  %v237 = vld [vmem:[%s2 + $0x5a0] sm:$0xff]
  %v238 = vld [vmem:[%s2 + $0x5a8] sm:$0xff]
  %v239 = vld [vmem:[%s2 + $0x5b0] sm:$0xff]
  %v240 = vld [vmem:[%s2 + $0x5b8] sm:$0xff]
  %v241 = vld [vmem:[%s2 + $0x5c0] sm:$0xff]
  %v242 = vld [vmem:[%s2 + $0x5c8] sm:$0xff]
  %v243 = vld [vmem:[%s2 + $0x5d0] sm:$0xff]
  %v244 = vld [vmem:[%s2 + $0x5d8] sm:$0xff]
  %v245 = vld [vmem:[%s2 + $0x5e0] sm:$0xff]
  %v246 = vld [vmem:[%s2 + $0x5e8] sm:$0xff]
  %v247 = vld [vmem:[%s2 + $0x5f0] sm:$0xff]
  %v248 = vld [vmem:[%s2 + $0x5f8] sm:$0xff]
  %v249 = vld [vmem:[%s2 + $0x600] sm:$0xff]
  %v250 = vld [vmem:[%s2 + $0x608] sm:$0xff]
  %v251 = vld [vmem:[%s2 + $0x610] sm:$0xff]
  %v252 = vld [vmem:[%s2 + $0x618] sm:$0xff]
  %v253 = vld [vmem:[%s2 + $0x620] sm:$0xff]
  %v254 = vld [vmem:[%s2 + $0x628] sm:$0xff]
  %v255 = vld [vmem:[%s2 + $0x630] sm:$0xff]
  %v256 = vld [vmem:[%s2 + $0x638] sm:$0xff]
  %v257 = vld [vmem:[%s2 + $0x640] sm:$0xff]
  %v258 = vld [vmem:[%s2 + $0x648] sm:$0xff]
  %v259 = vld [vmem:[%s2 + $0x650] sm:$0xff]
  %v260 = vld [vmem:[%s2 + $0x658] sm:$0xff]
  %v261 = vld [vmem:[%s2 + $0x660] sm:$0xff]
  %v262 = vld [vmem:[%s2 + $0x668] sm:$0xff]
  %v263 = vld [vmem:[%s2 + $0x670] sm:$0xff]
  %v264 = vld [vmem:[%s2 + $0x678] sm:$0xff]
  %v265 = vld [vmem:[%s2 + $0x680] sm:$0xff]
  %v266 = vld [vmem:[%s2 + $0x688] sm:$0xff]
  %v267 = vld [vmem:[%s2 + $0x690] sm:$0xff]
  %v268 = vld [vmem:[%s2 + $0x698] sm:$0xff]
  %v269 = vld [vmem:[%s2 + $0x6a0] sm:$0xff]
  %v270 = vld [vmem:[%s2 + $0x6a8] sm:$0xff]
  %v271 = vld [vmem:[%s2 + $0x6b0] sm:$0xff]
  %v272 = vld [vmem:[%s2 + $0x6b8] sm:$0xff]
  %v273 = vld [vmem:[%s2 + $0x6c0] sm:$0xff]
  %v274 = vld [vmem:[%s2 + $0x6c8] sm:$0xff]
  %v275 = vld [vmem:[%s2 + $0x6d0] sm:$0xff]
  %v276 = vld [vmem:[%s2 + $0x6d8] sm:$0xff]
  %v277 = vld [vmem:[%s2 + $0x6e0] sm:$0xff]
  %v278 = vld [vmem:[%s2 + $0x6e8] sm:$0xff]
  %v279 = vld [vmem:[%s2 + $0x6f0] sm:$0xff]
  %v280 = vld [vmem:[%s2 + $0x6f8] sm:$0xff]
  %v281 = vld [vmem:[%s2 + $0x700] sm:$0xff]
  %v282 = vld [vmem:[%s2 + $0x708] sm:$0xff]
  %v283 = vld [vmem:[%s2 + $0x710] sm:$0xff]
  %v284 = vld [vmem:[%s2 + $0x718] sm:$0xff]
  %v285 = vld [vmem:[%s2 + $0x720] sm:$0xff]
  %v286 = vld [vmem:[%s2 + $0x728] sm:$0xff]
  %v287 = vld [vmem:[%s2 + $0x730] sm:$0xff]
  %v288 = vld [vmem:[%s2 + $0x738] sm:$0xff]
  %v289 = vld [vmem:[%s2 + $0x740] sm:$0xff]
  %v290 = vld [vmem:[%s2 + $0x748] sm:$0xff]
  %v291 = vld [vmem:[%s2 + $0x750] sm:$0xff]
  %v292 = vld [vmem:[%s2 + $0x758] sm:$0xff]
  %v293 = vld [vmem:[%s2 + $0x760] sm:$0xff]
  %v294 = vld [vmem:[%s2 + $0x768] sm:$0xff]
  %v295 = vld [vmem:[%s2 + $0x770] sm:$0xff]
  %v296 = vld [vmem:[%s2 + $0x778] sm:$0xff]
  %v297 = vld [vmem:[%s2 + $0x780] sm:$0xff]
  %v298 = vld [vmem:[%s2 + $0x788] sm:$0xff]
  %v299 = vld [vmem:[%s2 + $0x790] sm:$0xff]
  %v300 = vld [vmem:[%s2 + $0x798] sm:$0xff]
  %v301 = vld [vmem:[%s2 + $0x7a0] sm:$0xff]
  %v302 = vld [vmem:[%s2 + $0x7a8] sm:$0xff]
  %v303 = vld [vmem:[%s2 + $0x7b0] sm:$0xff]
  %v304 = vld [vmem:[%s2 + $0x7b8] sm:$0xff]
  %v305 = vld [vmem:[%s2 + $0x7c0] sm:$0xff]
  %v306 = vld [vmem:[%s2 + $0x7c8] sm:$0xff]
  %v307 = vld [vmem:[%s2 + $0x7d0] sm:$0xff]
  %v308 = vld [vmem:[%s2 + $0x7d8] sm:$0xff]
  %v309 = vld [vmem:[%s2 + $0x7e0] sm:$0xff]
  %v310 = vld [vmem:[%s2 + $0x7e8] sm:$0xff]
  %v311 = vld [vmem:[%s2 + $0x7f0] sm:$0xff]
  %v312 = vld [vmem:[%s2 + $0x7f8] sm:$0xff]
  %v313 = vld [vmem:[%s1] sm:$0xff]
  %v314 = vld [vmem:[%s1 + $0x8] sm:$0xff]
  %v315 = vld [vmem:[%s1 + $0x10] sm:$0xff]
  %v316 = vld [vmem:[%s1 + $0x18] sm:$0xff]
  %v317 = vpack.c.bf16 %v314, %v313
  %v318 = vpack.c.bf16 %v316, %v315
  %v319 = vld [vmem:[%s3] sm:$0xff]
  %v320 = vld [vmem:[%s3 + $0x8] sm:$0xff]
  %v321 = vld [vmem:[%s3 + $0x10] sm:$0xff]
  %v322 = vld [vmem:[%s3 + $0x18] sm:$0xff]
  %v327 = vunpack.c.l.b16 %v319
  %v328 = vunpack.c.h.b16 %v319
  %v329 = vunpack.c.l.b16 %v320
  %v330 = vunpack.c.h.b16 %v320
  %v331 = vunpack.c.l.b16 %v321
  %v332 = vunpack.c.h.b16 %v321
  %v333 = vunpack.c.l.b16 %v322
  %v334 = vunpack.c.h.b16 %v322
  %v335 = vpack.c.b16 %v327, %v327
  %v336 = vpack.c.b16 %v328, %v328
  %v337 = vpack.c.b16 %v329, %v329
  %v338 = vpack.c.b16 %v330, %v330
  %v339 = vpack.c.b16 %v331, %v331
  %v340 = vpack.c.b16 %v332, %v332
  %v341 = vpack.c.b16 %v333, %v333
  %v342 = vpack.c.b16 %v334, %v334
  %vm343 = vcmask 64512
  %v345 = vsel %vm343, %v317, 0
  %v348 = vsel %vm343, %v318, 0
  %vm350 = vcmask 1043456
  %v352 = vsel %vm350, %v335, 0
  %v355 = vsel %vm350, %v336, 0
  %v358 = vsel %vm350, %v337, 0
  %v361 = vsel %vm350, %v338, 0
  %v364 = vsel %vm350, %v339, 0
  %v367 = vsel %vm350, %v340, 0
  %v370 = vsel %vm350, %v341, 0
  %v373 = vsel %vm350, %v342, 0
  %375 = vmatprep.subr.bf16.mxu0 0
  %376 = vmatpush1.bf16.msra.mxu0 0
  %377 = vmatprep.subr.bf16.mxu0 0
  %378 = vmatpush1.bf16.msra.mxu0 0
  %379 = vmatprep.subr.bf16.mxu0 0
  %380 = vmatpush1.bf16.msra.mxu0 0
  %381 = vmatprep.subr.bf16.mxu0 0
  %382 = vmatpush1.bf16.msra.mxu0 0
  %383 = vmatprep.subr.bf16.mxu0 0
  %384 = vmatpush1.bf16.msra.mxu0 0
  %385 = vmatprep.subr.bf16.mxu0 0
  %386 = vmatpush1.bf16.msra.mxu0 0
  %387 = vmatprep.subr.bf16.mxu0 0
  %388 = vmatpush1.bf16.msra.mxu0 0
  %389 = vmatprep.subr.bf16.mxu0 %v355
  %390 = vmatpush1.bf16.msra.mxu0 %v352
  %391 = vmatprep.subr.bf16.mxu0 0
  %392 = vmatpush2.bf16.msra.mxu0 0
  %393 = vmatprep.subr.bf16.mxu0 0
  %394 = vmatpush2.bf16.msra.mxu0 0
  %395 = vmatprep.subr.bf16.mxu0 0
  %396 = vmatpush2.bf16.msra.mxu0 0
  %397 = vmatprep.subr.bf16.mxu0 0
  %398 = vmatpush2.bf16.msra.mxu0 0
  %399 = vmatprep.subr.bf16.mxu0 0
  %400 = vmatpush2.bf16.msra.mxu0 0
  %401 = vmatprep.subr.bf16.mxu0 0
  %402 = vmatpush2.bf16.msra.mxu0 0
  %403 = vmatprep.subr.bf16.mxu0 0
  %404 = vmatpush2.bf16.msra.mxu0 0
  %405 = vmatprep.subr.bf16.mxu0 0
  %406 = vmatpush2.bf16.msra.mxu0 0
  %407 = vmatprep.mubr.bf16.mxu0 0
  %408 = vmatmul.mubr.bf16.gmra.mxu0 %v345
  %v409 = vpop.f32.mrf.mxu0
  %v410 = vadd.f32 0.0, %v409
  %v411 = vpop.f32.mrf.mxu0
  %v412 = vadd.f32 0.0, %v411
  %v413 = vpop.f32.mrf.mxu0
  %v414 = vadd.f32 0.0, %v413
  %v415 = vpop.f32.mrf.mxu0
  %v416 = vadd.f32 0.0, %v415
  %417 = vmatprep.mubr.bf16.mxu0 0
  %418 = vmatmul.mubr.bf16.gmra.mxu0 %v348
  %v419 = vpop.f32.mrf.mxu0
  %v420 = vadd.f32 0.0, %v419
  %v421 = vpop.f32.mrf.mxu0
  %v422 = vadd.f32 0.0, %v421
  %v423 = vpop.f32.mrf.mxu0
  %v424 = vadd.f32 0.0, %v423
  %v425 = vpop.f32.mrf.mxu0
  %v426 = vadd.f32 0.0, %v425
  %427 = vdwg.mxu0
  %428 = vmatprep.subr.bf16.mxu0 0
  %429 = vmatpush1.bf16.msra.mxu0 0
  %430 = vmatprep.subr.bf16.mxu0 0
  %431 = vmatpush1.bf16.msra.mxu0 0
  %432 = vmatprep.subr.bf16.mxu0 0
  %433 = vmatpush1.bf16.msra.mxu0 0
  %434 = vmatprep.subr.bf16.mxu0 0
  %435 = vmatpush1.bf16.msra.mxu0 0
  %436 = vmatprep.subr.bf16.mxu0 0
  %437 = vmatpush1.bf16.msra.mxu0 0
  %438 = vmatprep.subr.bf16.mxu0 0
  %439 = vmatpush1.bf16.msra.mxu0 0
  %440 = vmatprep.subr.bf16.mxu0 0
  %441 = vmatpush1.bf16.msra.mxu0 0
  %442 = vmatprep.subr.bf16.mxu0 %v361
  %443 = vmatpush1.bf16.msra.mxu0 %v358
  %444 = vmatprep.subr.bf16.mxu0 0
  %445 = vmatpush2.bf16.msra.mxu0 0
  %446 = vmatprep.subr.bf16.mxu0 0
  %447 = vmatpush2.bf16.msra.mxu0 0
  %448 = vmatprep.subr.bf16.mxu0 0
  %449 = vmatpush2.bf16.msra.mxu0 0
  %450 = vmatprep.subr.bf16.mxu0 0
  %451 = vmatpush2.bf16.msra.mxu0 0
  %452 = vmatprep.subr.bf16.mxu0 0
  %453 = vmatpush2.bf16.msra.mxu0 0
  %454 = vmatprep.subr.bf16.mxu0 0
  %455 = vmatpush2.bf16.msra.mxu0 0
  %456 = vmatprep.subr.bf16.mxu0 0
  %457 = vmatpush2.bf16.msra.mxu0 0
  %458 = vmatprep.subr.bf16.mxu0 0
  %459 = vmatpush2.bf16.msra.mxu0 0
  %460 = vmatprep.mubr.bf16.mxu0 0
  %461 = vmatmul.mubr.bf16.gmra.mxu0 %v345
  %v462 = vpop.f32.mrf.mxu0
  %v463 = vadd.f32 0.0, %v462
  %v464 = vpop.f32.mrf.mxu0
  %v465 = vadd.f32 0.0, %v464
  %v466 = vpop.f32.mrf.mxu0
  %v467 = vadd.f32 0.0, %v466
  %v468 = vpop.f32.mrf.mxu0
  %v469 = vadd.f32 0.0, %v468
  %470 = vmatprep.mubr.bf16.mxu0 0
  %471 = vmatmul.mubr.bf16.gmra.mxu0 %v348
  %v472 = vpop.f32.mrf.mxu0
  %v473 = vadd.f32 0.0, %v472
  %v474 = vpop.f32.mrf.mxu0
  %v475 = vadd.f32 0.0, %v474
  %v476 = vpop.f32.mrf.mxu0
  %v477 = vadd.f32 0.0, %v476
  %v478 = vpop.f32.mrf.mxu0
  %v479 = vadd.f32 0.0, %v478
  %480 = vdwg.mxu0
  %481 = vmatprep.subr.bf16.mxu0 0
  %482 = vmatpush1.bf16.msra.mxu0 0
  %483 = vmatprep.subr.bf16.mxu0 0
  %484 = vmatpush1.bf16.msra.mxu0 0
  %485 = vmatprep.subr.bf16.mxu0 0
  %486 = vmatpush1.bf16.msra.mxu0 0
  %487 = vmatprep.subr.bf16.mxu0 0
  %488 = vmatpush1.bf16.msra.mxu0 0
  %489 = vmatprep.subr.bf16.mxu0 0
  %490 = vmatpush1.bf16.msra.mxu0 0
  %491 = vmatprep.subr.bf16.mxu0 0
  %492 = vmatpush1.bf16.msra.mxu0 0
  %493 = vmatprep.subr.bf16.mxu0 0
  %494 = vmatpush1.bf16.msra.mxu0 0
  %495 = vmatprep.subr.bf16.mxu0 %v367
  %496 = vmatpush1.bf16.msra.mxu0 %v364
  %497 = vmatprep.subr.bf16.mxu0 0
  %498 = vmatpush2.bf16.msra.mxu0 0
  %499 = vmatprep.subr.bf16.mxu0 0
  %500 = vmatpush2.bf16.msra.mxu0 0
  %501 = vmatprep.subr.bf16.mxu0 0
  %502 = vmatpush2.bf16.msra.mxu0 0
  %503 = vmatprep.subr.bf16.mxu0 0
  %504 = vmatpush2.bf16.msra.mxu0 0
  %505 = vmatprep.subr.bf16.mxu0 0
  %506 = vmatpush2.bf16.msra.mxu0 0
  %507 = vmatprep.subr.bf16.mxu0 0
  %508 = vmatpush2.bf16.msra.mxu0 0
  %509 = vmatprep.subr.bf16.mxu0 0
  %510 = vmatpush2.bf16.msra.mxu0 0
  %511 = vmatprep.subr.bf16.mxu0 0
  %512 = vmatpush2.bf16.msra.mxu0 0
  %513 = vmatprep.mubr.bf16.mxu0 0
  %514 = vmatmul.mubr.bf16.gmra.mxu0 %v345
  %v515 = vpop.f32.mrf.mxu0
  %v516 = vadd.f32 0.0, %v515
  %v517 = vpop.f32.mrf.mxu0
  %v518 = vadd.f32 0.0, %v517
  %v519 = vpop.f32.mrf.mxu0
  %v520 = vadd.f32 0.0, %v519
  %v521 = vpop.f32.mrf.mxu0
  %v522 = vadd.f32 0.0, %v521
  %523 = vmatprep.mubr.bf16.mxu0 0
  %524 = vmatmul.mubr.bf16.gmra.mxu0 %v348
  %v525 = vpop.f32.mrf.mxu0
  %v526 = vadd.f32 0.0, %v525
  %v527 = vpop.f32.mrf.mxu0
  %v528 = vadd.f32 0.0, %v527
  %v529 = vpop.f32.mrf.mxu0
  %v530 = vadd.f32 0.0, %v529
  %v531 = vpop.f32.mrf.mxu0
  %v532 = vadd.f32 0.0, %v531
  %533 = vdwg.mxu0
  %534 = vmatprep.subr.bf16.mxu0 0
  %535 = vmatpush1.bf16.msra.mxu0 0
  %536 = vmatprep.subr.bf16.mxu0 0
  %537 = vmatpush1.bf16.msra.mxu0 0
  %538 = vmatprep.subr.bf16.mxu0 0
  %539 = vmatpush1.bf16.msra.mxu0 0
  %540 = vmatprep.subr.bf16.mxu0 0
  %541 = vmatpush1.bf16.msra.mxu0 0
  %542 = vmatprep.subr.bf16.mxu0 0
  %543 = vmatpush1.bf16.msra.mxu0 0
  %544 = vmatprep.subr.bf16.mxu0 0
  %545 = vmatpush1.bf16.msra.mxu0 0
  %546 = vmatprep.subr.bf16.mxu0 0
  %547 = vmatpush1.bf16.msra.mxu0 0
  %548 = vmatprep.subr.bf16.mxu0 %v373
  %549 = vmatpush1.bf16.msra.mxu0 %v370
  %550 = vmatprep.subr.bf16.mxu0 0
  %551 = vmatpush2.bf16.msra.mxu0 0
  %552 = vmatprep.subr.bf16.mxu0 0
  %553 = vmatpush2.bf16.msra.mxu0 0
  %554 = vmatprep.subr.bf16.mxu0 0
  %555 = vmatpush2.bf16.msra.mxu0 0
  %556 = vmatprep.subr.bf16.mxu0 0
  %557 = vmatpush2.bf16.msra.mxu0 0
  %558 = vmatprep.subr.bf16.mxu0 0
  %559 = vmatpush2.bf16.msra.mxu0 0
  %560 = vmatprep.subr.bf16.mxu0 0
  %561 = vmatpush2.bf16.msra.mxu0 0
  %562 = vmatprep.subr.bf16.mxu0 0
  %563 = vmatpush2.bf16.msra.mxu0 0
  %564 = vmatprep.subr.bf16.mxu0 0
  %565 = vmatpush2.bf16.msra.mxu0 0
  %566 = vmatprep.mubr.bf16.mxu0 0
  %567 = vmatmul.mubr.bf16.gmra.mxu0 %v345
  %v568 = vpop.f32.mrf.mxu0
  %v569 = vadd.f32 0.0, %v568
  %v570 = vpop.f32.mrf.mxu0
  %v571 = vadd.f32 0.0, %v570
  %v572 = vpop.f32.mrf.mxu0
  %v573 = vadd.f32 0.0, %v572
  %v574 = vpop.f32.mrf.mxu0
  %v575 = vadd.f32 0.0, %v574
  %576 = vmatprep.mubr.bf16.mxu0 0
  %577 = vmatmul.mubr.bf16.gmra.mxu0 %v348
  %v578 = vpop.f32.mrf.mxu0
  %v579 = vadd.f32 0.0, %v578
  %v580 = vpop.f32.mrf.mxu0
  %v581 = vadd.f32 0.0, %v580
  %v582 = vpop.f32.mrf.mxu0
  %v583 = vadd.f32 0.0, %v582
  %v584 = vpop.f32.mrf.mxu0
  %v585 = vadd.f32 0.0, %v584
  %586 = vdwg.mxu0
  %v843 = vunpack.c.l.b16 %v57
  %v844 = vunpack.c.h.b16 %v57
  %v845 = vunpack.c.l.b16 %v58
  %v846 = vunpack.c.h.b16 %v58
  %v847 = vunpack.c.l.b16 %v59
  %v848 = vunpack.c.h.b16 %v59
  %v849 = vunpack.c.l.b16 %v60
  %v850 = vunpack.c.h.b16 %v60
  %v851 = vunpack.c.l.b16 %v61
  %v852 = vunpack.c.h.b16 %v61
  %v853 = vunpack.c.l.b16 %v62
  %v854 = vunpack.c.h.b16 %v62
  %v855 = vunpack.c.l.b16 %v63
  %v856 = vunpack.c.h.b16 %v63
  %v857 = vunpack.c.l.b16 %v64
  %v858 = vunpack.c.h.b16 %v64
  %v859 = vunpack.c.l.b16 %v65
  %v860 = vunpack.c.h.b16 %v65
  %v861 = vunpack.c.l.b16 %v66
  %v862 = vunpack.c.h.b16 %v66
  %v863 = vunpack.c.l.b16 %v67
  %v864 = vunpack.c.h.b16 %v67
  %v865 = vunpack.c.l.b16 %v68
  %v866 = vunpack.c.h.b16 %v68
  %v867 = vunpack.c.l.b16 %v69
  %v868 = vunpack.c.h.b16 %v69
  %v869 = vunpack.c.l.b16 %v70
  %v870 = vunpack.c.h.b16 %v70
  %v871 = vunpack.c.l.b16 %v71
  %v872 = vunpack.c.h.b16 %v71
  %v873 = vunpack.c.l.b16 %v72
  %v874 = vunpack.c.h.b16 %v72
  %v875 = vunpack.c.l.b16 %v73
  %v876 = vunpack.c.h.b16 %v73
  %v877 = vunpack.c.l.b16 %v74
  %v878 = vunpack.c.h.b16 %v74
  %v879 = vunpack.c.l.b16 %v75
  %v880 = vunpack.c.h.b16 %v75
  %v881 = vunpack.c.l.b16 %v76
  %v882 = vunpack.c.h.b16 %v76
  %v883 = vunpack.c.l.b16 %v77
  %v884 = vunpack.c.h.b16 %v77
  %v885 = vunpack.c.l.b16 %v78
  %v886 = vunpack.c.h.b16 %v78
  %v887 = vunpack.c.l.b16 %v79
  %v888 = vunpack.c.h.b16 %v79
  %v889 = vunpack.c.l.b16 %v80
  %v890 = vunpack.c.h.b16 %v80
  %v891 = vunpack.c.l.b16 %v81
  %v892 = vunpack.c.h.b16 %v81
  %v893 = vunpack.c.l.b16 %v82
  %v894 = vunpack.c.h.b16 %v82
  %v895 = vunpack.c.l.b16 %v83
  %v896 = vunpack.c.h.b16 %v83
  %v897 = vunpack.c.l.b16 %v84
  %v898 = vunpack.c.h.b16 %v84
  %v899 = vunpack.c.l.b16 %v85
  %v900 = vunpack.c.h.b16 %v85
  %v901 = vunpack.c.l.b16 %v86
  %v902 = vunpack.c.h.b16 %v86
  %v903 = vunpack.c.l.b16 %v87
  %v904 = vunpack.c.h.b16 %v87
  %v905 = vunpack.c.l.b16 %v88
  %v906 = vunpack.c.h.b16 %v88
  %v907 = vunpack.c.l.b16 %v89
  %v908 = vunpack.c.h.b16 %v89
  %v909 = vunpack.c.l.b16 %v90
  %v910 = vunpack.c.h.b16 %v90
  %v911 = vunpack.c.l.b16 %v91
  %v912 = vunpack.c.h.b16 %v91
  %v913 = vunpack.c.l.b16 %v92
  %v914 = vunpack.c.h.b16 %v92
  %v915 = vunpack.c.l.b16 %v93
  %v916 = vunpack.c.h.b16 %v93
  %v917 = vunpack.c.l.b16 %v94
  %v918 = vunpack.c.h.b16 %v94
  %v919 = vunpack.c.l.b16 %v95
  %v920 = vunpack.c.h.b16 %v95
  %v921 = vunpack.c.l.b16 %v96
  %v922 = vunpack.c.h.b16 %v96
  %v923 = vunpack.c.l.b16 %v97
  %v924 = vunpack.c.h.b16 %v97
  %v925 = vunpack.c.l.b16 %v98
  %v926 = vunpack.c.h.b16 %v98
  %v927 = vunpack.c.l.b16 %v99
  %v928 = vunpack.c.h.b16 %v99
  %v929 = vunpack.c.l.b16 %v100
  %v930 = vunpack.c.h.b16 %v100
  %v931 = vunpack.c.l.b16 %v101
  %v932 = vunpack.c.h.b16 %v101
  %v933 = vunpack.c.l.b16 %v102
  %v934 = vunpack.c.h.b16 %v102
  %v935 = vunpack.c.l.b16 %v103
  %v936 = vunpack.c.h.b16 %v103
  %v937 = vunpack.c.l.b16 %v104
  %v938 = vunpack.c.h.b16 %v104
  %v939 = vunpack.c.l.b16 %v105
  %v940 = vunpack.c.h.b16 %v105
  %v941 = vunpack.c.l.b16 %v106
  %v942 = vunpack.c.h.b16 %v106
  %v943 = vunpack.c.l.b16 %v107
  %v944 = vunpack.c.h.b16 %v107
  %v945 = vunpack.c.l.b16 %v108
  %v946 = vunpack.c.h.b16 %v108
  %v947 = vunpack.c.l.b16 %v109
  %v948 = vunpack.c.h.b16 %v109
  %v949 = vunpack.c.l.b16 %v110
  %v950 = vunpack.c.h.b16 %v110
  %v951 = vunpack.c.l.b16 %v111
  %v952 = vunpack.c.h.b16 %v111
  %v953 = vunpack.c.l.b16 %v112
  %v954 = vunpack.c.h.b16 %v112
  %v955 = vunpack.c.l.b16 %v113
  %v956 = vunpack.c.h.b16 %v113
  %v957 = vunpack.c.l.b16 %v114
  %v958 = vunpack.c.h.b16 %v114
  %v959 = vunpack.c.l.b16 %v115
  %v960 = vunpack.c.h.b16 %v115
  %v961 = vunpack.c.l.b16 %v116
  %v962 = vunpack.c.h.b16 %v116
  %v963 = vunpack.c.l.b16 %v117
  %v964 = vunpack.c.h.b16 %v117
  %v965 = vunpack.c.l.b16 %v118
  %v966 = vunpack.c.h.b16 %v118
  %v967 = vunpack.c.l.b16 %v119
  %v968 = vunpack.c.h.b16 %v119
  %v969 = vunpack.c.l.b16 %v120
  %v970 = vunpack.c.h.b16 %v120
  %v971 = vunpack.c.l.b16 %v121
  %v972 = vunpack.c.h.b16 %v121
  %v973 = vunpack.c.l.b16 %v122
  %v974 = vunpack.c.h.b16 %v122
  %v975 = vunpack.c.l.b16 %v123
  %v976 = vunpack.c.h.b16 %v123
  %v977 = vunpack.c.l.b16 %v124
  %v978 = vunpack.c.h.b16 %v124
  %v979 = vunpack.c.l.b16 %v125
  %v980 = vunpack.c.h.b16 %v125
  %v981 = vunpack.c.l.b16 %v126
  %v982 = vunpack.c.h.b16 %v126
  %v983 = vunpack.c.l.b16 %v127
  %v984 = vunpack.c.h.b16 %v127
  %v985 = vunpack.c.l.b16 %v128
  %v986 = vunpack.c.h.b16 %v128
  %v987 = vunpack.c.l.b16 %v129
  %v988 = vunpack.c.h.b16 %v129
  %v989 = vunpack.c.l.b16 %v130
  %v990 = vunpack.c.h.b16 %v130
  %v991 = vunpack.c.l.b16 %v131
  %v992 = vunpack.c.h.b16 %v131
  %v993 = vunpack.c.l.b16 %v132
  %v994 = vunpack.c.h.b16 %v132
  %v995 = vunpack.c.l.b16 %v133
  %v996 = vunpack.c.h.b16 %v133
  %v997 = vunpack.c.l.b16 %v134
  %v998 = vunpack.c.h.b16 %v134
  %v999 = vunpack.c.l.b16 %v135
  %v1000 = vunpack.c.h.b16 %v135
  %v1001 = vunpack.c.l.b16 %v136
  %v1002 = vunpack.c.h.b16 %v136
  %v1003 = vunpack.c.l.b16 %v137
  %v1004 = vunpack.c.h.b16 %v137
  %v1005 = vunpack.c.l.b16 %v138
  %v1006 = vunpack.c.h.b16 %v138
  %v1007 = vunpack.c.l.b16 %v139
  %v1008 = vunpack.c.h.b16 %v139
  %v1009 = vunpack.c.l.b16 %v140
  %v1010 = vunpack.c.h.b16 %v140
  %v1011 = vunpack.c.l.b16 %v141
  %v1012 = vunpack.c.h.b16 %v141
  %v1013 = vunpack.c.l.b16 %v142
  %v1014 = vunpack.c.h.b16 %v142
  %v1015 = vunpack.c.l.b16 %v143
  %v1016 = vunpack.c.h.b16 %v143
  %v1017 = vunpack.c.l.b16 %v144
  %v1018 = vunpack.c.h.b16 %v144
  %v1019 = vunpack.c.l.b16 %v145
  %v1020 = vunpack.c.h.b16 %v145
  %v1021 = vunpack.c.l.b16 %v146
  %v1022 = vunpack.c.h.b16 %v146
  %v1023 = vunpack.c.l.b16 %v147
  %v1024 = vunpack.c.h.b16 %v147
  %v1025 = vunpack.c.l.b16 %v148
  %v1026 = vunpack.c.h.b16 %v148
  %v1027 = vunpack.c.l.b16 %v149
  %v1028 = vunpack.c.h.b16 %v149
  %v1029 = vunpack.c.l.b16 %v150
  %v1030 = vunpack.c.h.b16 %v150
  %v1031 = vunpack.c.l.b16 %v151
  %v1032 = vunpack.c.h.b16 %v151
  %v1033 = vunpack.c.l.b16 %v152
  %v1034 = vunpack.c.h.b16 %v152
  %v1035 = vunpack.c.l.b16 %v153
  %v1036 = vunpack.c.h.b16 %v153
  %v1037 = vunpack.c.l.b16 %v154
  %v1038 = vunpack.c.h.b16 %v154
  %v1039 = vunpack.c.l.b16 %v155
  %v1040 = vunpack.c.h.b16 %v155
  %v1041 = vunpack.c.l.b16 %v156
  %v1042 = vunpack.c.h.b16 %v156
  %v1043 = vunpack.c.l.b16 %v157
  %v1044 = vunpack.c.h.b16 %v157
  %v1045 = vunpack.c.l.b16 %v158
  %v1046 = vunpack.c.h.b16 %v158
  %v1047 = vunpack.c.l.b16 %v159
  %v1048 = vunpack.c.h.b16 %v159
  %v1049 = vunpack.c.l.b16 %v160
  %v1050 = vunpack.c.h.b16 %v160
  %v1051 = vunpack.c.l.b16 %v161
  %v1052 = vunpack.c.h.b16 %v161
  %v1053 = vunpack.c.l.b16 %v162
  %v1054 = vunpack.c.h.b16 %v162
  %v1055 = vunpack.c.l.b16 %v163
  %v1056 = vunpack.c.h.b16 %v163
  %v1057 = vunpack.c.l.b16 %v164
  %v1058 = vunpack.c.h.b16 %v164
  %v1059 = vunpack.c.l.b16 %v165
  %v1060 = vunpack.c.h.b16 %v165
  %v1061 = vunpack.c.l.b16 %v166
  %v1062 = vunpack.c.h.b16 %v166
  %v1063 = vunpack.c.l.b16 %v167
  %v1064 = vunpack.c.h.b16 %v167
  %v1065 = vunpack.c.l.b16 %v168
  %v1066 = vunpack.c.h.b16 %v168
  %v1067 = vunpack.c.l.b16 %v169
  %v1068 = vunpack.c.h.b16 %v169
  %v1069 = vunpack.c.l.b16 %v170
  %v1070 = vunpack.c.h.b16 %v170
  %v1071 = vunpack.c.l.b16 %v171
  %v1072 = vunpack.c.h.b16 %v171
  %v1073 = vunpack.c.l.b16 %v172
  %v1074 = vunpack.c.h.b16 %v172
  %v1075 = vunpack.c.l.b16 %v173
  %v1076 = vunpack.c.h.b16 %v173
  %v1077 = vunpack.c.l.b16 %v174
  %v1078 = vunpack.c.h.b16 %v174
  %v1079 = vunpack.c.l.b16 %v175
  %v1080 = vunpack.c.h.b16 %v175
  %v1081 = vunpack.c.l.b16 %v176
  %v1082 = vunpack.c.h.b16 %v176
  %v1083 = vunpack.c.l.b16 %v177
  %v1084 = vunpack.c.h.b16 %v177
  %v1085 = vunpack.c.l.b16 %v178
  %v1086 = vunpack.c.h.b16 %v178
  %v1087 = vunpack.c.l.b16 %v179
  %v1088 = vunpack.c.h.b16 %v179
  %v1089 = vunpack.c.l.b16 %v180
  %v1090 = vunpack.c.h.b16 %v180
  %v1091 = vunpack.c.l.b16 %v181
  %v1092 = vunpack.c.h.b16 %v181
  %v1093 = vunpack.c.l.b16 %v182
  %v1094 = vunpack.c.h.b16 %v182
  %v1095 = vunpack.c.l.b16 %v183
  %v1096 = vunpack.c.h.b16 %v183
  %v1097 = vunpack.c.l.b16 %v184
  %v1098 = vunpack.c.h.b16 %v184
  %v1099 = vunpack.c.l.b16 %v185
  %v1100 = vunpack.c.h.b16 %v185
  %v1101 = vunpack.c.l.b16 %v186
  %v1102 = vunpack.c.h.b16 %v186
  %v1103 = vunpack.c.l.b16 %v187
  %v1104 = vunpack.c.h.b16 %v187
  %v1105 = vunpack.c.l.b16 %v188
  %v1106 = vunpack.c.h.b16 %v188
  %v1107 = vunpack.c.l.b16 %v189
  %v1108 = vunpack.c.h.b16 %v189
  %v1109 = vunpack.c.l.b16 %v190
  %v1110 = vunpack.c.h.b16 %v190
  %v1111 = vunpack.c.l.b16 %v191
  %v1112 = vunpack.c.h.b16 %v191
  %v1113 = vunpack.c.l.b16 %v192
  %v1114 = vunpack.c.h.b16 %v192
  %v1115 = vunpack.c.l.b16 %v193
  %v1116 = vunpack.c.h.b16 %v193
  %v1117 = vunpack.c.l.b16 %v194
  %v1118 = vunpack.c.h.b16 %v194
  %v1119 = vunpack.c.l.b16 %v195
  %v1120 = vunpack.c.h.b16 %v195
  %v1121 = vunpack.c.l.b16 %v196
  %v1122 = vunpack.c.h.b16 %v196
  %v1123 = vunpack.c.l.b16 %v197
  %v1124 = vunpack.c.h.b16 %v197
  %v1125 = vunpack.c.l.b16 %v198
  %v1126 = vunpack.c.h.b16 %v198
  %v1127 = vunpack.c.l.b16 %v199
  %v1128 = vunpack.c.h.b16 %v199
  %v1129 = vunpack.c.l.b16 %v200
  %v1130 = vunpack.c.h.b16 %v200
  %v1131 = vunpack.c.l.b16 %v201
  %v1132 = vunpack.c.h.b16 %v201
  %v1133 = vunpack.c.l.b16 %v202
  %v1134 = vunpack.c.h.b16 %v202
  %v1135 = vunpack.c.l.b16 %v203
  %v1136 = vunpack.c.h.b16 %v203
  %v1137 = vunpack.c.l.b16 %v204
  %v1138 = vunpack.c.h.b16 %v204
  %v1139 = vunpack.c.l.b16 %v205
  %v1140 = vunpack.c.h.b16 %v205
  %v1141 = vunpack.c.l.b16 %v206
  %v1142 = vunpack.c.h.b16 %v206
  %v1143 = vunpack.c.l.b16 %v207
  %v1144 = vunpack.c.h.b16 %v207
  %v1145 = vunpack.c.l.b16 %v208
  %v1146 = vunpack.c.h.b16 %v208
  %v1147 = vunpack.c.l.b16 %v209
  %v1148 = vunpack.c.h.b16 %v209
  %v1149 = vunpack.c.l.b16 %v210
  %v1150 = vunpack.c.h.b16 %v210
  %v1151 = vunpack.c.l.b16 %v211
  %v1152 = vunpack.c.h.b16 %v211
  %v1153 = vunpack.c.l.b16 %v212
  %v1154 = vunpack.c.h.b16 %v212
  %v1155 = vunpack.c.l.b16 %v213
  %v1156 = vunpack.c.h.b16 %v213
  %v1157 = vunpack.c.l.b16 %v214
  %v1158 = vunpack.c.h.b16 %v214
  %v1159 = vunpack.c.l.b16 %v215
  %v1160 = vunpack.c.h.b16 %v215
  %v1161 = vunpack.c.l.b16 %v216
  %v1162 = vunpack.c.h.b16 %v216
  %v1163 = vunpack.c.l.b16 %v217
  %v1164 = vunpack.c.h.b16 %v217
  %v1165 = vunpack.c.l.b16 %v218
  %v1166 = vunpack.c.h.b16 %v218
  %v1167 = vunpack.c.l.b16 %v219
  %v1168 = vunpack.c.h.b16 %v219
  %v1169 = vunpack.c.l.b16 %v220
  %v1170 = vunpack.c.h.b16 %v220
  %v1171 = vunpack.c.l.b16 %v221
  %v1172 = vunpack.c.h.b16 %v221
  %v1173 = vunpack.c.l.b16 %v222
  %v1174 = vunpack.c.h.b16 %v222
  %v1175 = vunpack.c.l.b16 %v223
  %v1176 = vunpack.c.h.b16 %v223
  %v1177 = vunpack.c.l.b16 %v224
  %v1178 = vunpack.c.h.b16 %v224
  %v1179 = vunpack.c.l.b16 %v225
  %v1180 = vunpack.c.h.b16 %v225
  %v1181 = vunpack.c.l.b16 %v226
  %v1182 = vunpack.c.h.b16 %v226
  %v1183 = vunpack.c.l.b16 %v227
  %v1184 = vunpack.c.h.b16 %v227
  %v1185 = vunpack.c.l.b16 %v228
  %v1186 = vunpack.c.h.b16 %v228
  %v1187 = vunpack.c.l.b16 %v229
  %v1188 = vunpack.c.h.b16 %v229
  %v1189 = vunpack.c.l.b16 %v230
  %v1190 = vunpack.c.h.b16 %v230
  %v1191 = vunpack.c.l.b16 %v231
  %v1192 = vunpack.c.h.b16 %v231
  %v1193 = vunpack.c.l.b16 %v232
  %v1194 = vunpack.c.h.b16 %v232
  %v1195 = vunpack.c.l.b16 %v233
  %v1196 = vunpack.c.h.b16 %v233
  %v1197 = vunpack.c.l.b16 %v234
  %v1198 = vunpack.c.h.b16 %v234
  %v1199 = vunpack.c.l.b16 %v235
  %v1200 = vunpack.c.h.b16 %v235
  %v1201 = vunpack.c.l.b16 %v236
  %v1202 = vunpack.c.h.b16 %v236
  %v1203 = vunpack.c.l.b16 %v237
  %v1204 = vunpack.c.h.b16 %v237
  %v1205 = vunpack.c.l.b16 %v238
  %v1206 = vunpack.c.h.b16 %v238
  %v1207 = vunpack.c.l.b16 %v239
  %v1208 = vunpack.c.h.b16 %v239
  %v1209 = vunpack.c.l.b16 %v240
  %v1210 = vunpack.c.h.b16 %v240
  %v1211 = vunpack.c.l.b16 %v241
  %v1212 = vunpack.c.h.b16 %v241
  %v1213 = vunpack.c.l.b16 %v242
  %v1214 = vunpack.c.h.b16 %v242
  %v1215 = vunpack.c.l.b16 %v243
  %v1216 = vunpack.c.h.b16 %v243
  %v1217 = vunpack.c.l.b16 %v244
  %v1218 = vunpack.c.h.b16 %v244
  %v1219 = vunpack.c.l.b16 %v245
  %v1220 = vunpack.c.h.b16 %v245
  %v1221 = vunpack.c.l.b16 %v246
  %v1222 = vunpack.c.h.b16 %v246
  %v1223 = vunpack.c.l.b16 %v247
  %v1224 = vunpack.c.h.b16 %v247
  %v1225 = vunpack.c.l.b16 %v248
  %v1226 = vunpack.c.h.b16 %v248
  %v1227 = vunpack.c.l.b16 %v249
  %v1228 = vunpack.c.h.b16 %v249
  %v1229 = vunpack.c.l.b16 %v250
  %v1230 = vunpack.c.h.b16 %v250
  %v1231 = vunpack.c.l.b16 %v251
  %v1232 = vunpack.c.h.b16 %v251
  %v1233 = vunpack.c.l.b16 %v252
  %v1234 = vunpack.c.h.b16 %v252
  %v1235 = vunpack.c.l.b16 %v253
  %v1236 = vunpack.c.h.b16 %v253
  %v1237 = vunpack.c.l.b16 %v254
  %v1238 = vunpack.c.h.b16 %v254
  %v1239 = vunpack.c.l.b16 %v255
  %v1240 = vunpack.c.h.b16 %v255
  %v1241 = vunpack.c.l.b16 %v256
  %v1242 = vunpack.c.h.b16 %v256
  %v1243 = vunpack.c.l.b16 %v257
  %v1244 = vunpack.c.h.b16 %v257
  %v1245 = vunpack.c.l.b16 %v258
  %v1246 = vunpack.c.h.b16 %v258
  %v1247 = vunpack.c.l.b16 %v259
  %v1248 = vunpack.c.h.b16 %v259
  %v1249 = vunpack.c.l.b16 %v260
  %v1250 = vunpack.c.h.b16 %v260
  %v1251 = vunpack.c.l.b16 %v261
  %v1252 = vunpack.c.h.b16 %v261
  %v1253 = vunpack.c.l.b16 %v262
  %v1254 = vunpack.c.h.b16 %v262
  %v1255 = vunpack.c.l.b16 %v263
  %v1256 = vunpack.c.h.b16 %v263
  %v1257 = vunpack.c.l.b16 %v264
  %v1258 = vunpack.c.h.b16 %v264
  %v1259 = vunpack.c.l.b16 %v265
  %v1260 = vunpack.c.h.b16 %v265
  %v1261 = vunpack.c.l.b16 %v266
  %v1262 = vunpack.c.h.b16 %v266
  %v1263 = vunpack.c.l.b16 %v267
  %v1264 = vunpack.c.h.b16 %v267
  %v1265 = vunpack.c.l.b16 %v268
  %v1266 = vunpack.c.h.b16 %v268
  %v1267 = vunpack.c.l.b16 %v269
  %v1268 = vunpack.c.h.b16 %v269
  %v1269 = vunpack.c.l.b16 %v270
  %v1270 = vunpack.c.h.b16 %v270
  %v1271 = vunpack.c.l.b16 %v271
  %v1272 = vunpack.c.h.b16 %v271
  %v1273 = vunpack.c.l.b16 %v272
  %v1274 = vunpack.c.h.b16 %v272
  %v1275 = vunpack.c.l.b16 %v273
  %v1276 = vunpack.c.h.b16 %v273
  %v1277 = vunpack.c.l.b16 %v274
  %v1278 = vunpack.c.h.b16 %v274
  %v1279 = vunpack.c.l.b16 %v275
  %v1280 = vunpack.c.h.b16 %v275
  %v1281 = vunpack.c.l.b16 %v276
  %v1282 = vunpack.c.h.b16 %v276
  %v1283 = vunpack.c.l.b16 %v277
  %v1284 = vunpack.c.h.b16 %v277
  %v1285 = vunpack.c.l.b16 %v278
  %v1286 = vunpack.c.h.b16 %v278
  %v1287 = vunpack.c.l.b16 %v279
  %v1288 = vunpack.c.h.b16 %v279
  %v1289 = vunpack.c.l.b16 %v280
  %v1290 = vunpack.c.h.b16 %v280
  %v1291 = vunpack.c.l.b16 %v281
  %v1292 = vunpack.c.h.b16 %v281
  %v1293 = vunpack.c.l.b16 %v282
  %v1294 = vunpack.c.h.b16 %v282
  %v1295 = vunpack.c.l.b16 %v283
  %v1296 = vunpack.c.h.b16 %v283
  %v1297 = vunpack.c.l.b16 %v284
  %v1298 = vunpack.c.h.b16 %v284
  %v1299 = vunpack.c.l.b16 %v285
  %v1300 = vunpack.c.h.b16 %v285
  %v1301 = vunpack.c.l.b16 %v286
  %v1302 = vunpack.c.h.b16 %v286
  %v1303 = vunpack.c.l.b16 %v287
  %v1304 = vunpack.c.h.b16 %v287
  %v1305 = vunpack.c.l.b16 %v288
  %v1306 = vunpack.c.h.b16 %v288
  %v1307 = vunpack.c.l.b16 %v289
  %v1308 = vunpack.c.h.b16 %v289
  %v1309 = vunpack.c.l.b16 %v290
  %v1310 = vunpack.c.h.b16 %v290
  %v1311 = vunpack.c.l.b16 %v291
  %v1312 = vunpack.c.h.b16 %v291
  %v1313 = vunpack.c.l.b16 %v292
  %v1314 = vunpack.c.h.b16 %v292
  %v1315 = vunpack.c.l.b16 %v293
  %v1316 = vunpack.c.h.b16 %v293
  %v1317 = vunpack.c.l.b16 %v294
  %v1318 = vunpack.c.h.b16 %v294
  %v1319 = vunpack.c.l.b16 %v295
  %v1320 = vunpack.c.h.b16 %v295
  %v1321 = vunpack.c.l.b16 %v296
  %v1322 = vunpack.c.h.b16 %v296
  %v1323 = vunpack.c.l.b16 %v297
  %v1324 = vunpack.c.h.b16 %v297
  %v1325 = vunpack.c.l.b16 %v298
  %v1326 = vunpack.c.h.b16 %v298
  %v1327 = vunpack.c.l.b16 %v299
  %v1328 = vunpack.c.h.b16 %v299
  %v1329 = vunpack.c.l.b16 %v300
  %v1330 = vunpack.c.h.b16 %v300
  %v1331 = vunpack.c.l.b16 %v301
  %v1332 = vunpack.c.h.b16 %v301
  %v1333 = vunpack.c.l.b16 %v302
  %v1334 = vunpack.c.h.b16 %v302
  %v1335 = vunpack.c.l.b16 %v303
  %v1336 = vunpack.c.h.b16 %v303
  %v1337 = vunpack.c.l.b16 %v304
  %v1338 = vunpack.c.h.b16 %v304
  %v1339 = vunpack.c.l.b16 %v305
  %v1340 = vunpack.c.h.b16 %v305
  %v1341 = vunpack.c.l.b16 %v306
  %v1342 = vunpack.c.h.b16 %v306
  %v1343 = vunpack.c.l.b16 %v307
  %v1344 = vunpack.c.h.b16 %v307
  %v1345 = vunpack.c.l.b16 %v308
  %v1346 = vunpack.c.h.b16 %v308
  %v1347 = vunpack.c.l.b16 %v309
  %v1348 = vunpack.c.h.b16 %v309
  %v1349 = vunpack.c.l.b16 %v310
  %v1350 = vunpack.c.h.b16 %v310
  %v1351 = vunpack.c.l.b16 %v311
  %v1352 = vunpack.c.h.b16 %v311
  %v1353 = vunpack.c.l.b16 %v312
  %v1354 = vunpack.c.h.b16 %v312
  %v1355 = vpack.c.b16 %v851, %v843
  %v1356 = vpack.c.b16 %v852, %v844
  %v1357 = vpack.c.b16 %v853, %v845
  %v1358 = vpack.c.b16 %v854, %v846
  %v1359 = vpack.c.b16 %v855, %v847
  %v1360 = vpack.c.b16 %v856, %v848
  %v1361 = vpack.c.b16 %v857, %v849
  %v1362 = vpack.c.b16 %v858, %v850
  %v1363 = vpack.c.b16 %v867, %v859
  %v1364 = vpack.c.b16 %v868, %v860
  %v1365 = vpack.c.b16 %v869, %v861
  %v1366 = vpack.c.b16 %v870, %v862
  %v1367 = vpack.c.b16 %v871, %v863
  %v1368 = vpack.c.b16 %v872, %v864
  %v1369 = vpack.c.b16 %v873, %v865
  %v1370 = vpack.c.b16 %v874, %v866
  %v1371 = vpack.c.b16 %v883, %v875
  %v1372 = vpack.c.b16 %v884, %v876
  %v1373 = vpack.c.b16 %v885, %v877
  %v1374 = vpack.c.b16 %v886, %v878
  %v1375 = vpack.c.b16 %v887, %v879
  %v1376 = vpack.c.b16 %v888, %v880
  %v1377 = vpack.c.b16 %v889, %v881
  %v1378 = vpack.c.b16 %v890, %v882
  %v1379 = vpack.c.b16 %v899, %v891
  %v1380 = vpack.c.b16 %v900, %v892
  %v1381 = vpack.c.b16 %v901, %v893
  %v1382 = vpack.c.b16 %v902, %v894
  %v1383 = vpack.c.b16 %v903, %v895
  %v1384 = vpack.c.b16 %v904, %v896
  %v1385 = vpack.c.b16 %v905, %v897
  %v1386 = vpack.c.b16 %v906, %v898
  %v1387 = vpack.c.b16 %v915, %v907
  %v1388 = vpack.c.b16 %v916, %v908
  %v1389 = vpack.c.b16 %v917, %v909
  %v1390 = vpack.c.b16 %v918, %v910
  %v1391 = vpack.c.b16 %v919, %v911
  %v1392 = vpack.c.b16 %v920, %v912
  %v1393 = vpack.c.b16 %v921, %v913
  %v1394 = vpack.c.b16 %v922, %v914
  %v1395 = vpack.c.b16 %v931, %v923
  %v1396 = vpack.c.b16 %v932, %v924
  %v1397 = vpack.c.b16 %v933, %v925
  %v1398 = vpack.c.b16 %v934, %v926
  %v1399 = vpack.c.b16 %v935, %v927
  %v1400 = vpack.c.b16 %v936, %v928
  %v1401 = vpack.c.b16 %v937, %v929
  %v1402 = vpack.c.b16 %v938, %v930
  %v1403 = vpack.c.b16 %v947, %v939
  %v1404 = vpack.c.b16 %v948, %v940
  %v1405 = vpack.c.b16 %v949, %v941
  %v1406 = vpack.c.b16 %v950, %v942
  %v1407 = vpack.c.b16 %v951, %v943
  %v1408 = vpack.c.b16 %v952, %v944
  %v1409 = vpack.c.b16 %v953, %v945
  %v1410 = vpack.c.b16 %v954, %v946
  %v1411 = vpack.c.b16 %v963, %v955
  %v1412 = vpack.c.b16 %v964, %v956
  %v1413 = vpack.c.b16 %v965, %v957
  %v1414 = vpack.c.b16 %v966, %v958
  %v1415 = vpack.c.b16 %v967, %v959
  %v1416 = vpack.c.b16 %v968, %v960
  %v1417 = vpack.c.b16 %v969, %v961
  %v1418 = vpack.c.b16 %v970, %v962
  %v1419 = vpack.c.b16 %v979, %v971
  %v1420 = vpack.c.b16 %v980, %v972
  %v1421 = vpack.c.b16 %v981, %v973
  %v1422 = vpack.c.b16 %v982, %v974
  %v1423 = vpack.c.b16 %v983, %v975
  %v1424 = vpack.c.b16 %v984, %v976
  %v1425 = vpack.c.b16 %v985, %v977
  %v1426 = vpack.c.b16 %v986, %v978
  %v1427 = vpack.c.b16 %v995, %v987
  %v1428 = vpack.c.b16 %v996, %v988
  %v1429 = vpack.c.b16 %v997, %v989
  %v1430 = vpack.c.b16 %v998, %v990
  %v1431 = vpack.c.b16 %v999, %v991
  %v1432 = vpack.c.b16 %v1000, %v992
  %v1433 = vpack.c.b16 %v1001, %v993
  %v1434 = vpack.c.b16 %v1002, %v994
  %v1435 = vpack.c.b16 %v1011, %v1003
  %v1436 = vpack.c.b16 %v1012, %v1004
  %v1437 = vpack.c.b16 %v1013, %v1005
  %v1438 = vpack.c.b16 %v1014, %v1006
  %v1439 = vpack.c.b16 %v1015, %v1007
  %v1440 = vpack.c.b16 %v1016, %v1008
  %v1441 = vpack.c.b16 %v1017, %v1009
  %v1442 = vpack.c.b16 %v1018, %v1010
  %v1443 = vpack.c.b16 %v1027, %v1019
  %v1444 = vpack.c.b16 %v1028, %v1020
  %v1445 = vpack.c.b16 %v1029, %v1021
  %v1446 = vpack.c.b16 %v1030, %v1022
  %v1447 = vpack.c.b16 %v1031, %v1023
  %v1448 = vpack.c.b16 %v1032, %v1024
  %v1449 = vpack.c.b16 %v1033, %v1025
  %v1450 = vpack.c.b16 %v1034, %v1026
  %v1451 = vpack.c.b16 %v1043, %v1035
  %v1452 = vpack.c.b16 %v1044, %v1036
  %v1453 = vpack.c.b16 %v1045, %v1037
  %v1454 = vpack.c.b16 %v1046, %v1038
  %v1455 = vpack.c.b16 %v1047, %v1039
  %v1456 = vpack.c.b16 %v1048, %v1040
  %v1457 = vpack.c.b16 %v1049, %v1041
  %v1458 = vpack.c.b16 %v1050, %v1042
  %v1459 = vpack.c.b16 %v1059, %v1051
  %v1460 = vpack.c.b16 %v1060, %v1052
  %v1461 = vpack.c.b16 %v1061, %v1053
  %v1462 = vpack.c.b16 %v1062, %v1054
  %v1463 = vpack.c.b16 %v1063, %v1055
  %v1464 = vpack.c.b16 %v1064, %v1056
  %v1465 = vpack.c.b16 %v1065, %v1057
  %v1466 = vpack.c.b16 %v1066, %v1058
  %v1467 = vpack.c.b16 %v1075, %v1067
  %v1468 = vpack.c.b16 %v1076, %v1068
  %v1469 = vpack.c.b16 %v1077, %v1069
  %v1470 = vpack.c.b16 %v1078, %v1070
  %v1471 = vpack.c.b16 %v1079, %v1071
  %v1472 = vpack.c.b16 %v1080, %v1072
  %v1473 = vpack.c.b16 %v1081, %v1073
  %v1474 = vpack.c.b16 %v1082, %v1074
  %v1475 = vpack.c.b16 %v1091, %v1083
  %v1476 = vpack.c.b16 %v1092, %v1084
  %v1477 = vpack.c.b16 %v1093, %v1085
  %v1478 = vpack.c.b16 %v1094, %v1086
  %v1479 = vpack.c.b16 %v1095, %v1087
  %v1480 = vpack.c.b16 %v1096, %v1088
  %v1481 = vpack.c.b16 %v1097, %v1089
  %v1482 = vpack.c.b16 %v1098, %v1090
  %v1483 = vpack.c.b16 %v1107, %v1099
  %v1484 = vpack.c.b16 %v1108, %v1100
  %v1485 = vpack.c.b16 %v1109, %v1101
  %v1486 = vpack.c.b16 %v1110, %v1102
  %v1487 = vpack.c.b16 %v1111, %v1103
  %v1488 = vpack.c.b16 %v1112, %v1104
  %v1489 = vpack.c.b16 %v1113, %v1105
  %v1490 = vpack.c.b16 %v1114, %v1106
  %v1491 = vpack.c.b16 %v1123, %v1115
  %v1492 = vpack.c.b16 %v1124, %v1116
  %v1493 = vpack.c.b16 %v1125, %v1117
  %v1494 = vpack.c.b16 %v1126, %v1118
  %v1495 = vpack.c.b16 %v1127, %v1119
  %v1496 = vpack.c.b16 %v1128, %v1120
  %v1497 = vpack.c.b16 %v1129, %v1121
  %v1498 = vpack.c.b16 %v1130, %v1122
  %v1499 = vpack.c.b16 %v1139, %v1131
  %v1500 = vpack.c.b16 %v1140, %v1132
  %v1501 = vpack.c.b16 %v1141, %v1133
  %v1502 = vpack.c.b16 %v1142, %v1134
  %v1503 = vpack.c.b16 %v1143, %v1135
  %v1504 = vpack.c.b16 %v1144, %v1136
  %v1505 = vpack.c.b16 %v1145, %v1137
  %v1506 = vpack.c.b16 %v1146, %v1138
  %v1507 = vpack.c.b16 %v1155, %v1147
  %v1508 = vpack.c.b16 %v1156, %v1148
  %v1509 = vpack.c.b16 %v1157, %v1149
  %v1510 = vpack.c.b16 %v1158, %v1150
  %v1511 = vpack.c.b16 %v1159, %v1151
  %v1512 = vpack.c.b16 %v1160, %v1152
  %v1513 = vpack.c.b16 %v1161, %v1153
  %v1514 = vpack.c.b16 %v1162, %v1154
  %v1515 = vpack.c.b16 %v1171, %v1163
  %v1516 = vpack.c.b16 %v1172, %v1164
  %v1517 = vpack.c.b16 %v1173, %v1165
  %v1518 = vpack.c.b16 %v1174, %v1166
  %v1519 = vpack.c.b16 %v1175, %v1167
  %v1520 = vpack.c.b16 %v1176, %v1168
  %v1521 = vpack.c.b16 %v1177, %v1169
  %v1522 = vpack.c.b16 %v1178, %v1170
  %v1523 = vpack.c.b16 %v1187, %v1179
  %v1524 = vpack.c.b16 %v1188, %v1180
  %v1525 = vpack.c.b16 %v1189, %v1181
  %v1526 = vpack.c.b16 %v1190, %v1182
  %v1527 = vpack.c.b16 %v1191, %v1183
  %v1528 = vpack.c.b16 %v1192, %v1184
  %v1529 = vpack.c.b16 %v1193, %v1185
  %v1530 = vpack.c.b16 %v1194, %v1186
  %v1531 = vpack.c.b16 %v1203, %v1195
  %v1532 = vpack.c.b16 %v1204, %v1196
  %v1533 = vpack.c.b16 %v1205, %v1197
  %v1534 = vpack.c.b16 %v1206, %v1198
  %v1535 = vpack.c.b16 %v1207, %v1199
  %v1536 = vpack.c.b16 %v1208, %v1200
  %v1537 = vpack.c.b16 %v1209, %v1201
  %v1538 = vpack.c.b16 %v1210, %v1202
  %v1539 = vpack.c.b16 %v1219, %v1211
  %v1540 = vpack.c.b16 %v1220, %v1212
  %v1541 = vpack.c.b16 %v1221, %v1213
  %v1542 = vpack.c.b16 %v1222, %v1214
  %v1543 = vpack.c.b16 %v1223, %v1215
  %v1544 = vpack.c.b16 %v1224, %v1216
  %v1545 = vpack.c.b16 %v1225, %v1217
  %v1546 = vpack.c.b16 %v1226, %v1218
  %v1547 = vpack.c.b16 %v1235, %v1227
  %v1548 = vpack.c.b16 %v1236, %v1228
  %v1549 = vpack.c.b16 %v1237, %v1229
  %v1550 = vpack.c.b16 %v1238, %v1230
  %v1551 = vpack.c.b16 %v1239, %v1231
  %v1552 = vpack.c.b16 %v1240, %v1232
  %v1553 = vpack.c.b16 %v1241, %v1233
  %v1554 = vpack.c.b16 %v1242, %v1234
  %v1555 = vpack.c.b16 %v1251, %v1243
  %v1556 = vpack.c.b16 %v1252, %v1244
  %v1557 = vpack.c.b16 %v1253, %v1245
  %v1558 = vpack.c.b16 %v1254, %v1246
  %v1559 = vpack.c.b16 %v1255, %v1247
  %v1560 = vpack.c.b16 %v1256, %v1248
  %v1561 = vpack.c.b16 %v1257, %v1249
  %v1562 = vpack.c.b16 %v1258, %v1250
  %v1563 = vpack.c.b16 %v1267, %v1259
  %v1564 = vpack.c.b16 %v1268, %v1260
  %v1565 = vpack.c.b16 %v1269, %v1261
  %v1566 = vpack.c.b16 %v1270, %v1262
  %v1567 = vpack.c.b16 %v1271, %v1263
  %v1568 = vpack.c.b16 %v1272, %v1264
  %v1569 = vpack.c.b16 %v1273, %v1265
  %v1570 = vpack.c.b16 %v1274, %v1266
  %v1571 = vpack.c.b16 %v1283, %v1275
  %v1572 = vpack.c.b16 %v1284, %v1276
  %v1573 = vpack.c.b16 %v1285, %v1277
  %v1574 = vpack.c.b16 %v1286, %v1278
  %v1575 = vpack.c.b16 %v1287, %v1279
  %v1576 = vpack.c.b16 %v1288, %v1280
  %v1577 = vpack.c.b16 %v1289, %v1281
  %v1578 = vpack.c.b16 %v1290, %v1282
  %v1579 = vpack.c.b16 %v1299, %v1291
  %v1580 = vpack.c.b16 %v1300, %v1292
  %v1581 = vpack.c.b16 %v1301, %v1293
  %v1582 = vpack.c.b16 %v1302, %v1294
  %v1583 = vpack.c.b16 %v1303, %v1295
  %v1584 = vpack.c.b16 %v1304, %v1296
  %v1585 = vpack.c.b16 %v1305, %v1297
  %v1586 = vpack.c.b16 %v1306, %v1298
  %v1587 = vpack.c.b16 %v1315, %v1307
  %v1588 = vpack.c.b16 %v1316, %v1308
  %v1589 = vpack.c.b16 %v1317, %v1309
  %v1590 = vpack.c.b16 %v1318, %v1310
  %v1591 = vpack.c.b16 %v1319, %v1311
  %v1592 = vpack.c.b16 %v1320, %v1312
  %v1593 = vpack.c.b16 %v1321, %v1313
  %v1594 = vpack.c.b16 %v1322, %v1314
  %v1595 = vpack.c.b16 %v1331, %v1323
  %v1596 = vpack.c.b16 %v1332, %v1324
  %v1597 = vpack.c.b16 %v1333, %v1325
  %v1598 = vpack.c.b16 %v1334, %v1326
  %v1599 = vpack.c.b16 %v1335, %v1327
  %v1600 = vpack.c.b16 %v1336, %v1328
  %v1601 = vpack.c.b16 %v1337, %v1329
  %v1602 = vpack.c.b16 %v1338, %v1330
  %v1603 = vpack.c.b16 %v1347, %v1339
  %v1604 = vpack.c.b16 %v1348, %v1340
  %v1605 = vpack.c.b16 %v1349, %v1341
  %v1606 = vpack.c.b16 %v1350, %v1342
  %v1607 = vpack.c.b16 %v1351, %v1343
  %v1608 = vpack.c.b16 %v1352, %v1344
  %v1609 = vpack.c.b16 %v1353, %v1345
  %v1610 = vpack.c.b16 %v1354, %v1346
  %1867 = vmatprep.subr.bf16.mxu0 %v1412
  %1868 = vmatpush1.bf16.msra.mxu0 %v1411
  %1869 = vmatprep.subr.bf16.mxu0 %v1404
  %1870 = vmatpush1.bf16.msra.mxu0 %v1403
  %1871 = vmatprep.subr.bf16.mxu0 %v1396
  %1872 = vmatpush1.bf16.msra.mxu0 %v1395
  %1873 = vmatprep.subr.bf16.mxu0 %v1388
  %1874 = vmatpush1.bf16.msra.mxu0 %v1387
  %1875 = vmatprep.subr.bf16.mxu0 %v1380
  %1876 = vmatpush1.bf16.msra.mxu0 %v1379
  %1877 = vmatprep.subr.bf16.mxu0 %v1372
  %1878 = vmatpush1.bf16.msra.mxu0 %v1371
  %1879 = vmatprep.subr.bf16.mxu0 %v1364
  %1880 = vmatpush1.bf16.msra.mxu0 %v1363
  %1881 = vmatprep.subr.bf16.mxu0 %v1356
  %1882 = vmatpush1.bf16.msra.mxu0 %v1355
  %1883 = vmatprep.subr.bf16.mxu0 %v1476
  %1884 = vmatpush2.bf16.msra.mxu0 %v1475
  %1885 = vmatprep.subr.bf16.mxu0 %v1468
  %1886 = vmatpush2.bf16.msra.mxu0 %v1467
  %1887 = vmatprep.subr.bf16.mxu0 %v1460
  %1888 = vmatpush2.bf16.msra.mxu0 %v1459
  %1889 = vmatprep.subr.bf16.mxu0 %v1452
  %1890 = vmatpush2.bf16.msra.mxu0 %v1451
  %1891 = vmatprep.subr.bf16.mxu0 %v1444
  %1892 = vmatpush2.bf16.msra.mxu0 %v1443
  %1893 = vmatprep.subr.bf16.mxu0 %v1436
  %1894 = vmatpush2.bf16.msra.mxu0 %v1435
  %1895 = vmatprep.subr.bf16.mxu0 %v1428
  %1896 = vmatpush2.bf16.msra.mxu0 %v1427
  %1897 = vmatprep.subr.bf16.mxu0 %v1420
  %1898 = vmatpush2.bf16.msra.mxu0 %v1419
  %1899 = vmatprep.mubr.bf16.mxu0 %v50
  %1900 = vmatmul.mubr.bf16.gmra.mxu0 %v49
  %v1901 = vpop.f32.mrf.mxu0
  %v1902 = vadd.f32 %v410, %v1901
  %v1903 = vpop.f32.mrf.mxu0
  %v1904 = vadd.f32 %v412, %v1903
  %v1905 = vpop.f32.mrf.mxu0
  %v1906 = vadd.f32 %v414, %v1905
  %v1907 = vpop.f32.mrf.mxu0
  %v1908 = vadd.f32 %v416, %v1907
  %1909 = vmatprep.mubr.bf16.mxu0 %v54
  %1910 = vmatmul.mubr.bf16.gmra.mxu0 %v53
  %v1911 = vpop.f32.mrf.mxu0
  %v1912 = vadd.f32 %v420, %v1911
  %v1913 = vpop.f32.mrf.mxu0
  %v1914 = vadd.f32 %v422, %v1913
  %v1915 = vpop.f32.mrf.mxu0
  %v1916 = vadd.f32 %v424, %v1915
  %v1917 = vpop.f32.mrf.mxu0
  %v1918 = vadd.f32 %v426, %v1917
  %1919 = vdwg.mxu0
  %1920 = vmatprep.subr.bf16.mxu0 %v1540
  %1921 = vmatpush1.bf16.msra.mxu0 %v1539
  %1922 = vmatprep.subr.bf16.mxu0 %v1532
  %1923 = vmatpush1.bf16.msra.mxu0 %v1531
  %1924 = vmatprep.subr.bf16.mxu0 %v1524
  %1925 = vmatpush1.bf16.msra.mxu0 %v1523
  %1926 = vmatprep.subr.bf16.mxu0 %v1516
  %1927 = vmatpush1.bf16.msra.mxu0 %v1515
  %1928 = vmatprep.subr.bf16.mxu0 %v1508
  %1929 = vmatpush1.bf16.msra.mxu0 %v1507
  %1930 = vmatprep.subr.bf16.mxu0 %v1500
  %1931 = vmatpush1.bf16.msra.mxu0 %v1499
  %1932 = vmatprep.subr.bf16.mxu0 %v1492
  %1933 = vmatpush1.bf16.msra.mxu0 %v1491
  %1934 = vmatprep.subr.bf16.mxu0 %v1484
  %1935 = vmatpush1.bf16.msra.mxu0 %v1483
  %1936 = vmatprep.subr.bf16.mxu0 %v1604
  %1937 = vmatpush2.bf16.msra.mxu0 %v1603
  %1938 = vmatprep.subr.bf16.mxu0 %v1596
  %1939 = vmatpush2.bf16.msra.mxu0 %v1595
  %1940 = vmatprep.subr.bf16.mxu0 %v1588
  %1941 = vmatpush2.bf16.msra.mxu0 %v1587
  %1942 = vmatprep.subr.bf16.mxu0 %v1580
  %1943 = vmatpush2.bf16.msra.mxu0 %v1579
  %1944 = vmatprep.subr.bf16.mxu0 %v1572
  %1945 = vmatpush2.bf16.msra.mxu0 %v1571
  %1946 = vmatprep.subr.bf16.mxu0 %v1564
  %1947 = vmatpush2.bf16.msra.mxu0 %v1563
  %1948 = vmatprep.subr.bf16.mxu0 %v1556
  %1949 = vmatpush2.bf16.msra.mxu0 %v1555
  %1950 = vmatprep.subr.bf16.mxu0 %v1548
  %1951 = vmatpush2.bf16.msra.mxu0 %v1547
  %1952 = vmatprep.mubr.bf16.mxu0 %v52
  %1953 = vmatmul.mubr.bf16.gmra.mxu0 %v51
  %v1954 = vpop.f32.mrf.mxu0
  %v1955 = vadd.f32 %v1902, %v1954
  %v1956 = vpop.f32.mrf.mxu0
  %v1957 = vadd.f32 %v1904, %v1956
  %v1958 = vpop.f32.mrf.mxu0
  %v1959 = vadd.f32 %v1906, %v1958
  %v1960 = vpop.f32.mrf.mxu0
  %v1961 = vadd.f32 %v1908, %v1960
  %1962 = vmatprep.mubr.bf16.mxu0 %v56
  %1963 = vmatmul.mubr.bf16.gmra.mxu0 %v55
  %v1964 = vpop.f32.mrf.mxu0
  %v1965 = vadd.f32 %v1912, %v1964
  %v1966 = vpop.f32.mrf.mxu0
  %v1967 = vadd.f32 %v1914, %v1966
  %v1968 = vpop.f32.mrf.mxu0
  %v1969 = vadd.f32 %v1916, %v1968
  %v1970 = vpop.f32.mrf.mxu0
  %v1971 = vadd.f32 %v1918, %v1970
  %1972 = vdwg.mxu0
  %1973 = vmatprep.subr.bf16.mxu0 %v1414
  %1974 = vmatpush1.bf16.msra.mxu0 %v1413
  %1975 = vmatprep.subr.bf16.mxu0 %v1406
  %1976 = vmatpush1.bf16.msra.mxu0 %v1405
  %1977 = vmatprep.subr.bf16.mxu0 %v1398
  %1978 = vmatpush1.bf16.msra.mxu0 %v1397
  %1979 = vmatprep.subr.bf16.mxu0 %v1390
  %1980 = vmatpush1.bf16.msra.mxu0 %v1389
  %1981 = vmatprep.subr.bf16.mxu0 %v1382
  %1982 = vmatpush1.bf16.msra.mxu0 %v1381
  %1983 = vmatprep.subr.bf16.mxu0 %v1374
  %1984 = vmatpush1.bf16.msra.mxu0 %v1373
  %1985 = vmatprep.subr.bf16.mxu0 %v1366
  %1986 = vmatpush1.bf16.msra.mxu0 %v1365
  %1987 = vmatprep.subr.bf16.mxu0 %v1358
  %1988 = vmatpush1.bf16.msra.mxu0 %v1357
  %1989 = vmatprep.subr.bf16.mxu0 %v1478
  %1990 = vmatpush2.bf16.msra.mxu0 %v1477
  %1991 = vmatprep.subr.bf16.mxu0 %v1470
  %1992 = vmatpush2.bf16.msra.mxu0 %v1469
  %1993 = vmatprep.subr.bf16.mxu0 %v1462
  %1994 = vmatpush2.bf16.msra.mxu0 %v1461
  %1995 = vmatprep.subr.bf16.mxu0 %v1454
  %1996 = vmatpush2.bf16.msra.mxu0 %v1453
  %1997 = vmatprep.subr.bf16.mxu0 %v1446
  %1998 = vmatpush2.bf16.msra.mxu0 %v1445
  %1999 = vmatprep.subr.bf16.mxu0 %v1438
  %2000 = vmatpush2.bf16.msra.mxu0 %v1437
  %2001 = vmatprep.subr.bf16.mxu0 %v1430
  %2002 = vmatpush2.bf16.msra.mxu0 %v1429
  %2003 = vmatprep.subr.bf16.mxu0 %v1422
  %2004 = vmatpush2.bf16.msra.mxu0 %v1421
  %2005 = vmatprep.mubr.bf16.mxu0 %v50
  %2006 = vmatmul.mubr.bf16.gmra.mxu0 %v49
  %v2007 = vpop.f32.mrf.mxu0
  %v2008 = vadd.f32 %v463, %v2007
  %v2009 = vpop.f32.mrf.mxu0
  %v2010 = vadd.f32 %v465, %v2009
  %v2011 = vpop.f32.mrf.mxu0
  %v2012 = vadd.f32 %v467, %v2011
  %v2013 = vpop.f32.mrf.mxu0
  %v2014 = vadd.f32 %v469, %v2013
  %2015 = vmatprep.mubr.bf16.mxu0 %v54
  %2016 = vmatmul.mubr.bf16.gmra.mxu0 %v53
  %v2017 = vpop.f32.mrf.mxu0
  %v2018 = vadd.f32 %v473, %v2017
  %v2019 = vpop.f32.mrf.mxu0
  %v2020 = vadd.f32 %v475, %v2019
  %v2021 = vpop.f32.mrf.mxu0
  %v2022 = vadd.f32 %v477, %v2021
  %v2023 = vpop.f32.mrf.mxu0
  %v2024 = vadd.f32 %v479, %v2023
  %2025 = vdwg.mxu0
  %2026 = vmatprep.subr.bf16.mxu0 %v1542
  %2027 = vmatpush1.bf16.msra.mxu0 %v1541
  %2028 = vmatprep.subr.bf16.mxu0 %v1534
  %2029 = vmatpush1.bf16.msra.mxu0 %v1533
  %2030 = vmatprep.subr.bf16.mxu0 %v1526
  %2031 = vmatpush1.bf16.msra.mxu0 %v1525
  %2032 = vmatprep.subr.bf16.mxu0 %v1518
  %2033 = vmatpush1.bf16.msra.mxu0 %v1517
  %2034 = vmatprep.subr.bf16.mxu0 %v1510
  %2035 = vmatpush1.bf16.msra.mxu0 %v1509
  %2036 = vmatprep.subr.bf16.mxu0 %v1502
  %2037 = vmatpush1.bf16.msra.mxu0 %v1501
  %2038 = vmatprep.subr.bf16.mxu0 %v1494
  %2039 = vmatpush1.bf16.msra.mxu0 %v1493
  %2040 = vmatprep.subr.bf16.mxu0 %v1486
  %2041 = vmatpush1.bf16.msra.mxu0 %v1485
  %2042 = vmatprep.subr.bf16.mxu0 %v1606
  %2043 = vmatpush2.bf16.msra.mxu0 %v1605
  %2044 = vmatprep.subr.bf16.mxu0 %v1598
  %2045 = vmatpush2.bf16.msra.mxu0 %v1597
  %2046 = vmatprep.subr.bf16.mxu0 %v1590
  %2047 = vmatpush2.bf16.msra.mxu0 %v1589
  %2048 = vmatprep.subr.bf16.mxu0 %v1582
  %2049 = vmatpush2.bf16.msra.mxu0 %v1581
  %2050 = vmatprep.subr.bf16.mxu0 %v1574
  %2051 = vmatpush2.bf16.msra.mxu0 %v1573
  %2052 = vmatprep.subr.bf16.mxu0 %v1566
  %2053 = vmatpush2.bf16.msra.mxu0 %v1565
  %2054 = vmatprep.subr.bf16.mxu0 %v1558
  %2055 = vmatpush2.bf16.msra.mxu0 %v1557
  %2056 = vmatprep.subr.bf16.mxu0 %v1550
  %2057 = vmatpush2.bf16.msra.mxu0 %v1549
  %2058 = vmatprep.mubr.bf16.mxu0 %v52
  %2059 = vmatmul.mubr.bf16.gmra.mxu0 %v51
  %v2060 = vpop.f32.mrf.mxu0
  %v2061 = vadd.f32 %v2008, %v2060
  %v2062 = vpop.f32.mrf.mxu0
  %v2063 = vadd.f32 %v2010, %v2062
  %v2064 = vpop.f32.mrf.mxu0
  %v2065 = vadd.f32 %v2012, %v2064
  %v2066 = vpop.f32.mrf.mxu0
  %v2067 = vadd.f32 %v2014, %v2066
  %2068 = vmatprep.mubr.bf16.mxu0 %v56
  %2069 = vmatmul.mubr.bf16.gmra.mxu0 %v55
  %v2070 = vpop.f32.mrf.mxu0
  %v2071 = vadd.f32 %v2018, %v2070
  %v2072 = vpop.f32.mrf.mxu0
  %v2073 = vadd.f32 %v2020, %v2072
  %v2074 = vpop.f32.mrf.mxu0
  %v2075 = vadd.f32 %v2022, %v2074
  %v2076 = vpop.f32.mrf.mxu0
  %v2077 = vadd.f32 %v2024, %v2076
  %2078 = vdwg.mxu0
  %2079 = vmatprep.subr.bf16.mxu0 %v1416
  %2080 = vmatpush1.bf16.msra.mxu0 %v1415
  %2081 = vmatprep.subr.bf16.mxu0 %v1408
  %2082 = vmatpush1.bf16.msra.mxu0 %v1407
  %2083 = vmatprep.subr.bf16.mxu0 %v1400
  %2084 = vmatpush1.bf16.msra.mxu0 %v1399
  %2085 = vmatprep.subr.bf16.mxu0 %v1392
  %2086 = vmatpush1.bf16.msra.mxu0 %v1391
  %2087 = vmatprep.subr.bf16.mxu0 %v1384
  %2088 = vmatpush1.bf16.msra.mxu0 %v1383
  %2089 = vmatprep.subr.bf16.mxu0 %v1376
  %2090 = vmatpush1.bf16.msra.mxu0 %v1375
  %2091 = vmatprep.subr.bf16.mxu0 %v1368
  %2092 = vmatpush1.bf16.msra.mxu0 %v1367
  %2093 = vmatprep.subr.bf16.mxu0 %v1360
  %2094 = vmatpush1.bf16.msra.mxu0 %v1359
  %2095 = vmatprep.subr.bf16.mxu0 %v1480
  %2096 = vmatpush2.bf16.msra.mxu0 %v1479
  %2097 = vmatprep.subr.bf16.mxu0 %v1472
  %2098 = vmatpush2.bf16.msra.mxu0 %v1471
  %2099 = vmatprep.subr.bf16.mxu0 %v1464
  %2100 = vmatpush2.bf16.msra.mxu0 %v1463
  %2101 = vmatprep.subr.bf16.mxu0 %v1456
  %2102 = vmatpush2.bf16.msra.mxu0 %v1455
  %2103 = vmatprep.subr.bf16.mxu0 %v1448
  %2104 = vmatpush2.bf16.msra.mxu0 %v1447
  %2105 = vmatprep.subr.bf16.mxu0 %v1440
  %2106 = vmatpush2.bf16.msra.mxu0 %v1439
  %2107 = vmatprep.subr.bf16.mxu0 %v1432
  %2108 = vmatpush2.bf16.msra.mxu0 %v1431
  %2109 = vmatprep.subr.bf16.mxu0 %v1424
  %2110 = vmatpush2.bf16.msra.mxu0 %v1423
  %2111 = vmatprep.mubr.bf16.mxu0 %v50
  %2112 = vmatmul.mubr.bf16.gmra.mxu0 %v49
  %v2113 = vpop.f32.mrf.mxu0
  %v2114 = vadd.f32 %v516, %v2113
  %v2115 = vpop.f32.mrf.mxu0
  %v2116 = vadd.f32 %v518, %v2115
  %v2117 = vpop.f32.mrf.mxu0
  %v2118 = vadd.f32 %v520, %v2117
  %v2119 = vpop.f32.mrf.mxu0
  %v2120 = vadd.f32 %v522, %v2119
  %2121 = vmatprep.mubr.bf16.mxu0 %v54
  %2122 = vmatmul.mubr.bf16.gmra.mxu0 %v53
  %v2123 = vpop.f32.mrf.mxu0
  %v2124 = vadd.f32 %v526, %v2123
  %v2125 = vpop.f32.mrf.mxu0
  %v2126 = vadd.f32 %v528, %v2125
  %v2127 = vpop.f32.mrf.mxu0
  %v2128 = vadd.f32 %v530, %v2127
  %v2129 = vpop.f32.mrf.mxu0
  %v2130 = vadd.f32 %v532, %v2129
  %2131 = vdwg.mxu0
  %2132 = vmatprep.subr.bf16.mxu0 %v1544
  %2133 = vmatpush1.bf16.msra.mxu0 %v1543
  %2134 = vmatprep.subr.bf16.mxu0 %v1536
  %2135 = vmatpush1.bf16.msra.mxu0 %v1535
  %2136 = vmatprep.subr.bf16.mxu0 %v1528
  %2137 = vmatpush1.bf16.msra.mxu0 %v1527
  %2138 = vmatprep.subr.bf16.mxu0 %v1520
  %2139 = vmatpush1.bf16.msra.mxu0 %v1519
  %2140 = vmatprep.subr.bf16.mxu0 %v1512
  %2141 = vmatpush1.bf16.msra.mxu0 %v1511
  %2142 = vmatprep.subr.bf16.mxu0 %v1504
  %2143 = vmatpush1.bf16.msra.mxu0 %v1503
  %2144 = vmatprep.subr.bf16.mxu0 %v1496
  %2145 = vmatpush1.bf16.msra.mxu0 %v1495
  %2146 = vmatprep.subr.bf16.mxu0 %v1488
  %2147 = vmatpush1.bf16.msra.mxu0 %v1487
  %2148 = vmatprep.subr.bf16.mxu0 %v1608
  %2149 = vmatpush2.bf16.msra.mxu0 %v1607
  %2150 = vmatprep.subr.bf16.mxu0 %v1600
  %2151 = vmatpush2.bf16.msra.mxu0 %v1599
  %2152 = vmatprep.subr.bf16.mxu0 %v1592
  %2153 = vmatpush2.bf16.msra.mxu0 %v1591
  %2154 = vmatprep.subr.bf16.mxu0 %v1584
  %2155 = vmatpush2.bf16.msra.mxu0 %v1583
  %2156 = vmatprep.subr.bf16.mxu0 %v1576
  %2157 = vmatpush2.bf16.msra.mxu0 %v1575
  %2158 = vmatprep.subr.bf16.mxu0 %v1568
  %2159 = vmatpush2.bf16.msra.mxu0 %v1567
  %2160 = vmatprep.subr.bf16.mxu0 %v1560
  %2161 = vmatpush2.bf16.msra.mxu0 %v1559
  %2162 = vmatprep.subr.bf16.mxu0 %v1552
  %2163 = vmatpush2.bf16.msra.mxu0 %v1551
  %2164 = vmatprep.mubr.bf16.mxu0 %v52
  %2165 = vmatmul.mubr.bf16.gmra.mxu0 %v51
  %v2166 = vpop.f32.mrf.mxu0
  %v2167 = vadd.f32 %v2114, %v2166
  %v2168 = vpop.f32.mrf.mxu0
  %v2169 = vadd.f32 %v2116, %v2168
  %v2170 = vpop.f32.mrf.mxu0
  %v2171 = vadd.f32 %v2118, %v2170
  %v2172 = vpop.f32.mrf.mxu0
  %v2173 = vadd.f32 %v2120, %v2172
  %2174 = vmatprep.mubr.bf16.mxu0 %v56
  %2175 = vmatmul.mubr.bf16.gmra.mxu0 %v55
  %v2176 = vpop.f32.mrf.mxu0
  %v2177 = vadd.f32 %v2124, %v2176
  %v2178 = vpop.f32.mrf.mxu0
  %v2179 = vadd.f32 %v2126, %v2178
  %v2180 = vpop.f32.mrf.mxu0
  %v2181 = vadd.f32 %v2128, %v2180
  %v2182 = vpop.f32.mrf.mxu0
  %v2183 = vadd.f32 %v2130, %v2182
  %2184 = vdwg.mxu0
  %2185 = vmatprep.subr.bf16.mxu0 %v1418
  %2186 = vmatpush1.bf16.msra.mxu0 %v1417
  %2187 = vmatprep.subr.bf16.mxu0 %v1410
  %2188 = vmatpush1.bf16.msra.mxu0 %v1409
  %2189 = vmatprep.subr.bf16.mxu0 %v1402
  %2190 = vmatpush1.bf16.msra.mxu0 %v1401
  %2191 = vmatprep.subr.bf16.mxu0 %v1394
  %2192 = vmatpush1.bf16.msra.mxu0 %v1393
  %2193 = vmatprep.subr.bf16.mxu0 %v1386
  %2194 = vmatpush1.bf16.msra.mxu0 %v1385
  %2195 = vmatprep.subr.bf16.mxu0 %v1378
  %2196 = vmatpush1.bf16.msra.mxu0 %v1377
  %2197 = vmatprep.subr.bf16.mxu0 %v1370
  %2198 = vmatpush1.bf16.msra.mxu0 %v1369
  %2199 = vmatprep.subr.bf16.mxu0 %v1362
  %2200 = vmatpush1.bf16.msra.mxu0 %v1361
  %2201 = vmatprep.subr.bf16.mxu0 %v1482
  %2202 = vmatpush2.bf16.msra.mxu0 %v1481
  %2203 = vmatprep.subr.bf16.mxu0 %v1474
  %2204 = vmatpush2.bf16.msra.mxu0 %v1473
  %2205 = vmatprep.subr.bf16.mxu0 %v1466
  %2206 = vmatpush2.bf16.msra.mxu0 %v1465
  %2207 = vmatprep.subr.bf16.mxu0 %v1458
  %2208 = vmatpush2.bf16.msra.mxu0 %v1457
  %2209 = vmatprep.subr.bf16.mxu0 %v1450
  %2210 = vmatpush2.bf16.msra.mxu0 %v1449
  %2211 = vmatprep.subr.bf16.mxu0 %v1442
  %2212 = vmatpush2.bf16.msra.mxu0 %v1441
  %2213 = vmatprep.subr.bf16.mxu0 %v1434
  %2214 = vmatpush2.bf16.msra.mxu0 %v1433
  %2215 = vmatprep.subr.bf16.mxu0 %v1426
  %2216 = vmatpush2.bf16.msra.mxu0 %v1425
  %2217 = vmatprep.mubr.bf16.mxu0 %v50
  %2218 = vmatmul.mubr.bf16.gmra.mxu0 %v49
  %v2219 = vpop.f32.mrf.mxu0
  %v2220 = vadd.f32 %v569, %v2219
  %v2221 = vpop.f32.mrf.mxu0
  %v2222 = vadd.f32 %v571, %v2221
  %v2223 = vpop.f32.mrf.mxu0
  %v2224 = vadd.f32 %v573, %v2223
  %v2225 = vpop.f32.mrf.mxu0
  %v2226 = vadd.f32 %v575, %v2225
  %2227 = vmatprep.mubr.bf16.mxu0 %v54
  %2228 = vmatmul.mubr.bf16.gmra.mxu0 %v53
  %v2229 = vpop.f32.mrf.mxu0
  %v2230 = vadd.f32 %v579, %v2229
  %v2231 = vpop.f32.mrf.mxu0
  %v2232 = vadd.f32 %v581, %v2231
  %v2233 = vpop.f32.mrf.mxu0
  %v2234 = vadd.f32 %v583, %v2233
  %v2235 = vpop.f32.mrf.mxu0
  %v2236 = vadd.f32 %v585, %v2235
  %2237 = vdwg.mxu0
  %2238 = vmatprep.subr.bf16.mxu0 %v1546
  %2239 = vmatpush1.bf16.msra.mxu0 %v1545
  %2240 = vmatprep.subr.bf16.mxu0 %v1538
  %2241 = vmatpush1.bf16.msra.mxu0 %v1537
  %2242 = vmatprep.subr.bf16.mxu0 %v1530
  %2243 = vmatpush1.bf16.msra.mxu0 %v1529
  %2244 = vmatprep.subr.bf16.mxu0 %v1522
  %2245 = vmatpush1.bf16.msra.mxu0 %v1521
  %2246 = vmatprep.subr.bf16.mxu0 %v1514
  %2247 = vmatpush1.bf16.msra.mxu0 %v1513
  %2248 = vmatprep.subr.bf16.mxu0 %v1506
  %2249 = vmatpush1.bf16.msra.mxu0 %v1505
  %2250 = vmatprep.subr.bf16.mxu0 %v1498
  %2251 = vmatpush1.bf16.msra.mxu0 %v1497
  %2252 = vmatprep.subr.bf16.mxu0 %v1490
  %2253 = vmatpush1.bf16.msra.mxu0 %v1489
  %2254 = vmatprep.subr.bf16.mxu0 %v1610
  %2255 = vmatpush2.bf16.msra.mxu0 %v1609
  %2256 = vmatprep.subr.bf16.mxu0 %v1602
  %2257 = vmatpush2.bf16.msra.mxu0 %v1601
  %2258 = vmatprep.subr.bf16.mxu0 %v1594
  %2259 = vmatpush2.bf16.msra.mxu0 %v1593
  %2260 = vmatprep.subr.bf16.mxu0 %v1586
  %2261 = vmatpush2.bf16.msra.mxu0 %v1585
  %2262 = vmatprep.subr.bf16.mxu0 %v1578
  %2263 = vmatpush2.bf16.msra.mxu0 %v1577
  %2264 = vmatprep.subr.bf16.mxu0 %v1570
  %2265 = vmatpush2.bf16.msra.mxu0 %v1569
  %2266 = vmatprep.subr.bf16.mxu0 %v1562
  %2267 = vmatpush2.bf16.msra.mxu0 %v1561
  %2268 = vmatprep.subr.bf16.mxu0 %v1554
  %2269 = vmatpush2.bf16.msra.mxu0 %v1553
  %2270 = vmatprep.mubr.bf16.mxu0 %v52
  %2271 = vmatmul.mubr.bf16.gmra.mxu0 %v51
  %v2272 = vpop.f32.mrf.mxu0
  %v2273 = vadd.f32 %v2220, %v2272
  %v2274 = vpop.f32.mrf.mxu0
  %v2275 = vadd.f32 %v2222, %v2274
  %v2276 = vpop.f32.mrf.mxu0
  %v2277 = vadd.f32 %v2224, %v2276
  %v2278 = vpop.f32.mrf.mxu0
  %v2279 = vadd.f32 %v2226, %v2278
  %2280 = vmatprep.mubr.bf16.mxu0 %v56
  %2281 = vmatmul.mubr.bf16.gmra.mxu0 %v55
  %v2282 = vpop.f32.mrf.mxu0
  %v2283 = vadd.f32 %v2230, %v2282
  %v2284 = vpop.f32.mrf.mxu0
  %v2285 = vadd.f32 %v2232, %v2284
  %v2286 = vpop.f32.mrf.mxu0
  %v2287 = vadd.f32 %v2234, %v2286
  %v2288 = vpop.f32.mrf.mxu0
  %v2289 = vadd.f32 %v2236, %v2288
  %2290 = vdwg.mxu0
  %v2291 = vld [vmem:[%s4] sm:$0xff]
  %v2293 = vlaneseq
  %v2294 = vshrl.u32 %v2293, 7
  %v2295 = vsub.s32 0, %v2294
  %v2296 = vrot.slane %v2291, %v2295
  %v2297 = vlaneseq
  %v2298 = vshrl.u32 %v2297, 7
  %v2299 = vsub.s32 1, %v2298
  %v2300 = vrot.slane %v2291, %v2299
  %v2301 = vlaneseq
  %v2302 = vshrl.u32 %v2301, 7
  %v2303 = vsub.s32 2, %v2302
  %v2304 = vrot.slane %v2291, %v2303
  %v2305 = vlaneseq
  %v2306 = vshrl.u32 %v2305, 7
  %v2307 = vsub.s32 3, %v2306
  %v2308 = vrot.slane %v2291, %v2307
  %v2309 = vlaneseq
  %v2310 = vshrl.u32 %v2309, 7
  %v2311 = vsub.s32 4, %v2310
  %v2312 = vrot.slane %v2291, %v2311
  %v2313 = vlaneseq
  %v2314 = vshrl.u32 %v2313, 7
  %v2315 = vsub.s32 5, %v2314
  %v2316 = vrot.slane %v2291, %v2315
  %v2317 = vlaneseq
  %v2318 = vshrl.u32 %v2317, 7
  %v2319 = vsub.s32 6, %v2318
  %v2320 = vrot.slane %v2291, %v2319
  %v2321 = vlaneseq
  %v2322 = vshrl.u32 %v2321, 7
  %v2323 = vsub.s32 7, %v2322
  %v2324 = vrot.slane %v2291, %v2323
  %v2333 = vadd.f32 %v1955, %v2296
  %v2334 = vadd.f32 %v1957, %v2300
  %v2335 = vadd.f32 %v2061, %v2304
  %v2336 = vadd.f32 %v2063, %v2308
  %v2337 = vadd.f32 %v2167, %v2312
  %v2338 = vadd.f32 %v2169, %v2316
  %v2339 = vadd.f32 %v2273, %v2320
  %v2340 = vadd.f32 %v2275, %v2324
  %v2341 = vadd.f32 %v1959, %v2296
  %v2342 = vadd.f32 %v1961, %v2300
  %v2343 = vadd.f32 %v2065, %v2304
  %v2344 = vadd.f32 %v2067, %v2308
  %v2345 = vadd.f32 %v2171, %v2312
  %v2346 = vadd.f32 %v2173, %v2316
  %v2347 = vadd.f32 %v2277, %v2320
  %v2348 = vadd.f32 %v2279, %v2324
  %v2349 = vadd.f32 %v1965, %v2296
  %v2350 = vadd.f32 %v1967, %v2300
  %v2351 = vadd.f32 %v2071, %v2304
  %v2352 = vadd.f32 %v2073, %v2308
  %v2353 = vadd.f32 %v2177, %v2312
  %v2354 = vadd.f32 %v2179, %v2316
  %v2355 = vadd.f32 %v2283, %v2320
  %v2356 = vadd.f32 %v2285, %v2324
  %v2357 = vadd.f32 %v1969, %v2296
  %v2358 = vadd.f32 %v1971, %v2300
  %v2359 = vadd.f32 %v2075, %v2304
  %v2360 = vadd.f32 %v2077, %v2308
  %v2361 = vadd.f32 %v2181, %v2312
  %v2362 = vadd.f32 %v2183, %v2316
  %v2363 = vadd.f32 %v2287, %v2320
  %v2364 = vadd.f32 %v2289, %v2324
  %v2365 = vmax.f32 %v2333, 0.0
  %v2366 = vmax.f32 %v2334, 0.0
  %v2367 = vmax.f32 %v2335, 0.0
  %v2368 = vmax.f32 %v2336, 0.0
  %v2369 = vmax.f32 %v2337, 0.0
  %v2370 = vmax.f32 %v2338, 0.0
  %v2371 = vmax.f32 %v2339, 0.0
  %v2372 = vmax.f32 %v2340, 0.0
  %v2373 = vmax.f32 %v2341, 0.0
  %v2374 = vmax.f32 %v2342, 0.0
  %v2375 = vmax.f32 %v2343, 0.0
  %v2376 = vmax.f32 %v2344, 0.0
  %v2377 = vmax.f32 %v2345, 0.0
  %v2378 = vmax.f32 %v2346, 0.0
  %v2379 = vmax.f32 %v2347, 0.0
  %v2380 = vmax.f32 %v2348, 0.0
  %v2381 = vmax.f32 %v2349, 0.0
  %v2382 = vmax.f32 %v2350, 0.0
  %v2383 = vmax.f32 %v2351, 0.0
  %v2384 = vmax.f32 %v2352, 0.0
  %v2385 = vmax.f32 %v2353, 0.0
  %v2386 = vmax.f32 %v2354, 0.0
  %v2387 = vmax.f32 %v2355, 0.0
  %v2388 = vmax.f32 %v2356, 0.0
  %v2389 = vmax.f32 %v2357, 0.0
  %v2390 = vmax.f32 %v2358, 0.0
  %v2391 = vmax.f32 %v2359, 0.0
  %v2392 = vmax.f32 %v2360, 0.0
  %v2393 = vmax.f32 %v2361, 0.0
  %v2394 = vmax.f32 %v2362, 0.0
  %v2395 = vmax.f32 %v2363, 0.0
  %v2396 = vmax.f32 %v2364, 0.0
  %v2397 = vpack.c.bf16 %v2373, %v2365
  %v2398 = vpack.c.bf16 %v2374, %v2366
  %v2399 = vpack.c.bf16 %v2375, %v2367
  %v2400 = vpack.c.bf16 %v2376, %v2368
  %v2401 = vpack.c.bf16 %v2377, %v2369
  %v2402 = vpack.c.bf16 %v2378, %v2370
  %v2403 = vpack.c.bf16 %v2379, %v2371
  %v2404 = vpack.c.bf16 %v2380, %v2372
  %v2405 = vpack.c.bf16 %v2389, %v2381
  %v2406 = vpack.c.bf16 %v2390, %v2382
  %v2407 = vpack.c.bf16 %v2391, %v2383
  %v2408 = vpack.c.bf16 %v2392, %v2384
  %v2409 = vpack.c.bf16 %v2393, %v2385
  %v2410 = vpack.c.bf16 %v2394, %v2386
  %v2411 = vpack.c.bf16 %v2395, %v2387
  %v2412 = vpack.c.bf16 %v2396, %v2388
  %v2413 = vld [vmem:[%s5] sm:$0xff]
  %v2414 = vld [vmem:[%s5 + $0x8] sm:$0xff]
  %v2415 = vld [vmem:[%s5 + $0x10] sm:$0xff]
  %v2416 = vld [vmem:[%s5 + $0x18] sm:$0xff]
  %v2417 = vld [vmem:[%s5 + $0x20] sm:$0xff]
  %v2418 = vld [vmem:[%s5 + $0x28] sm:$0xff]
  %v2419 = vld [vmem:[%s5 + $0x30] sm:$0xff]
  %v2420 = vld [vmem:[%s5 + $0x38] sm:$0xff]
  %v2421 = vld [vmem:[%s5 + $0x40] sm:$0xff]
  %v2422 = vld [vmem:[%s5 + $0x48] sm:$0xff]
  %v2423 = vld [vmem:[%s5 + $0x50] sm:$0xff]
  %v2424 = vld [vmem:[%s5 + $0x58] sm:$0xff]
  %v2425 = vld [vmem:[%s5 + $0x60] sm:$0xff]
  %v2426 = vld [vmem:[%s5 + $0x68] sm:$0xff]
  %v2427 = vld [vmem:[%s5 + $0x70] sm:$0xff]
  %v2428 = vld [vmem:[%s5 + $0x78] sm:$0xff]
  %v2429 = vld [vmem:[%s5 + $0x80] sm:$0xff]
  %v2430 = vld [vmem:[%s5 + $0x88] sm:$0xff]
  %v2431 = vld [vmem:[%s5 + $0x90] sm:$0xff]
  %v2432 = vld [vmem:[%s5 + $0x98] sm:$0xff]
  %v2433 = vld [vmem:[%s5 + $0xa0] sm:$0xff]
  %v2434 = vld [vmem:[%s5 + $0xa8] sm:$0xff]
  %v2435 = vld [vmem:[%s5 + $0xb0] sm:$0xff]
  %v2436 = vld [vmem:[%s5 + $0xb8] sm:$0xff]
  %v2437 = vld [vmem:[%s5 + $0xc0] sm:$0xff]
  %v2438 = vld [vmem:[%s5 + $0xc8] sm:$0xff]
  %v2439 = vld [vmem:[%s5 + $0xd0] sm:$0xff]
  %v2440 = vld [vmem:[%s5 + $0xd8] sm:$0xff]
  %v2441 = vld [vmem:[%s5 + $0xe0] sm:$0xff]
  %v2442 = vld [vmem:[%s5 + $0xe8] sm:$0xff]
  %v2443 = vld [vmem:[%s5 + $0xf0] sm:$0xff]
  %v2444 = vld [vmem:[%s5 + $0xf8] sm:$0xff]
  %v2445 = vld [vmem:[%s5 + $0x100] sm:$0xff]
  %v2446 = vld [vmem:[%s5 + $0x108] sm:$0xff]
  %v2447 = vld [vmem:[%s5 + $0x110] sm:$0xff]
  %v2448 = vld [vmem:[%s5 + $0x118] sm:$0xff]
  %v2449 = vld [vmem:[%s5 + $0x120] sm:$0xff]
  %v2450 = vld [vmem:[%s5 + $0x128] sm:$0xff]
  %v2451 = vld [vmem:[%s5 + $0x130] sm:$0xff]
  %v2452 = vld [vmem:[%s5 + $0x138] sm:$0xff]
  %v2453 = vld [vmem:[%s5 + $0x140] sm:$0xff]
  %v2454 = vld [vmem:[%s5 + $0x148] sm:$0xff]
  %v2455 = vld [vmem:[%s5 + $0x150] sm:$0xff]
  %v2456 = vld [vmem:[%s5 + $0x158] sm:$0xff]
  %v2457 = vld [vmem:[%s5 + $0x160] sm:$0xff]
  %v2458 = vld [vmem:[%s5 + $0x168] sm:$0xff]
  %v2459 = vld [vmem:[%s5 + $0x170] sm:$0xff]
  %v2460 = vld [vmem:[%s5 + $0x178] sm:$0xff]
  %v2461 = vld [vmem:[%s5 + $0x180] sm:$0xff]
  %v2462 = vld [vmem:[%s5 + $0x188] sm:$0xff]
  %v2463 = vld [vmem:[%s5 + $0x190] sm:$0xff]
  %v2464 = vld [vmem:[%s5 + $0x198] sm:$0xff]
  %v2465 = vld [vmem:[%s5 + $0x1a0] sm:$0xff]
  %v2466 = vld [vmem:[%s5 + $0x1a8] sm:$0xff]
  %v2467 = vld [vmem:[%s5 + $0x1b0] sm:$0xff]
  %v2468 = vld [vmem:[%s5 + $0x1b8] sm:$0xff]
  %v2469 = vld [vmem:[%s5 + $0x1c0] sm:$0xff]
  %v2470 = vld [vmem:[%s5 + $0x1c8] sm:$0xff]
  %v2471 = vld [vmem:[%s5 + $0x1d0] sm:$0xff]
  %v2472 = vld [vmem:[%s5 + $0x1d8] sm:$0xff]
  %v2473 = vld [vmem:[%s5 + $0x1e0] sm:$0xff]
  %v2474 = vld [vmem:[%s5 + $0x1e8] sm:$0xff]
  %v2475 = vld [vmem:[%s5 + $0x1f0] sm:$0xff]
  %v2476 = vld [vmem:[%s5 + $0x1f8] sm:$0xff]
  %v2477 = vld [vmem:[%s5 + $0x200] sm:$0xff]
  %v2478 = vld [vmem:[%s5 + $0x208] sm:$0xff]
  %v2479 = vld [vmem:[%s5 + $0x210] sm:$0xff]
  %v2480 = vld [vmem:[%s5 + $0x218] sm:$0xff]
  %v2481 = vld [vmem:[%s5 + $0x220] sm:$0xff]
  %v2482 = vld [vmem:[%s5 + $0x228] sm:$0xff]
  %v2483 = vld [vmem:[%s5 + $0x230] sm:$0xff]
  %v2484 = vld [vmem:[%s5 + $0x238] sm:$0xff]
  %v2485 = vld [vmem:[%s5 + $0x240] sm:$0xff]
  %v2486 = vld [vmem:[%s5 + $0x248] sm:$0xff]
  %v2487 = vld [vmem:[%s5 + $0x250] sm:$0xff]
  %v2488 = vld [vmem:[%s5 + $0x258] sm:$0xff]
  %v2489 = vld [vmem:[%s5 + $0x260] sm:$0xff]
  %v2490 = vld [vmem:[%s5 + $0x268] sm:$0xff]
  %v2491 = vld [vmem:[%s5 + $0x270] sm:$0xff]
  %v2492 = vld [vmem:[%s5 + $0x278] sm:$0xff]
  %v2493 = vld [vmem:[%s5 + $0x280] sm:$0xff]
  %v2494 = vld [vmem:[%s5 + $0x288] sm:$0xff]
  %v2495 = vld [vmem:[%s5 + $0x290] sm:$0xff]
  %v2496 = vld [vmem:[%s5 + $0x298] sm:$0xff]
  %v2497 = vld [vmem:[%s5 + $0x2a0] sm:$0xff]
  %v2498 = vld [vmem:[%s5 + $0x2a8] sm:$0xff]
  %v2499 = vld [vmem:[%s5 + $0x2b0] sm:$0xff]
  %v2500 = vld [vmem:[%s5 + $0x2b8] sm:$0xff]
  %v2501 = vld [vmem:[%s5 + $0x2c0] sm:$0xff]
  %v2502 = vld [vmem:[%s5 + $0x2c8] sm:$0xff]
  %v2503 = vld [vmem:[%s5 + $0x2d0] sm:$0xff]
  %v2504 = vld [vmem:[%s5 + $0x2d8] sm:$0xff]
  %v2505 = vld [vmem:[%s5 + $0x2e0] sm:$0xff]
  %v2506 = vld [vmem:[%s5 + $0x2e8] sm:$0xff]
  %v2507 = vld [vmem:[%s5 + $0x2f0] sm:$0xff]
  %v2508 = vld [vmem:[%s5 + $0x2f8] sm:$0xff]
  %v2509 = vld [vmem:[%s5 + $0x300] sm:$0xff]
  %v2510 = vld [vmem:[%s5 + $0x308] sm:$0xff]
  %v2511 = vld [vmem:[%s5 + $0x310] sm:$0xff]
  %v2512 = vld [vmem:[%s5 + $0x318] sm:$0xff]
  %v2513 = vld [vmem:[%s5 + $0x320] sm:$0xff]
  %v2514 = vld [vmem:[%s5 + $0x328] sm:$0xff]
  %v2515 = vld [vmem:[%s5 + $0x330] sm:$0xff]
  %v2516 = vld [vmem:[%s5 + $0x338] sm:$0xff]
  %v2517 = vld [vmem:[%s5 + $0x340] sm:$0xff]
  %v2518 = vld [vmem:[%s5 + $0x348] sm:$0xff]
  %v2519 = vld [vmem:[%s5 + $0x350] sm:$0xff]
  %v2520 = vld [vmem:[%s5 + $0x358] sm:$0xff]
  %v2521 = vld [vmem:[%s5 + $0x360] sm:$0xff]
  %v2522 = vld [vmem:[%s5 + $0x368] sm:$0xff]
  %v2523 = vld [vmem:[%s5 + $0x370] sm:$0xff]
  %v2524 = vld [vmem:[%s5 + $0x378] sm:$0xff]
  %v2525 = vld [vmem:[%s5 + $0x380] sm:$0xff]
  %v2526 = vld [vmem:[%s5 + $0x388] sm:$0xff]
  %v2527 = vld [vmem:[%s5 + $0x390] sm:$0xff]
  %v2528 = vld [vmem:[%s5 + $0x398] sm:$0xff]
  %v2529 = vld [vmem:[%s5 + $0x3a0] sm:$0xff]
  %v2530 = vld [vmem:[%s5 + $0x3a8] sm:$0xff]
  %v2531 = vld [vmem:[%s5 + $0x3b0] sm:$0xff]
  %v2532 = vld [vmem:[%s5 + $0x3b8] sm:$0xff]
  %v2533 = vld [vmem:[%s5 + $0x3c0] sm:$0xff]
  %v2534 = vld [vmem:[%s5 + $0x3c8] sm:$0xff]
  %v2535 = vld [vmem:[%s5 + $0x3d0] sm:$0xff]
  %v2536 = vld [vmem:[%s5 + $0x3d8] sm:$0xff]
  %v2537 = vld [vmem:[%s5 + $0x3e0] sm:$0xff]
  %v2538 = vld [vmem:[%s5 + $0x3e8] sm:$0xff]
  %v2539 = vld [vmem:[%s5 + $0x3f0] sm:$0xff]
  %v2540 = vld [vmem:[%s5 + $0x3f8] sm:$0xff]
  %v2541 = vld [vmem:[%s5 + $0x400] sm:$0xff]
  %v2542 = vld [vmem:[%s5 + $0x408] sm:$0xff]
  %v2543 = vld [vmem:[%s5 + $0x410] sm:$0xff]
  %v2544 = vld [vmem:[%s5 + $0x418] sm:$0xff]
  %v2545 = vld [vmem:[%s5 + $0x420] sm:$0xff]
  %v2546 = vld [vmem:[%s5 + $0x428] sm:$0xff]
  %v2547 = vld [vmem:[%s5 + $0x430] sm:$0xff]
  %v2548 = vld [vmem:[%s5 + $0x438] sm:$0xff]
  %v2549 = vld [vmem:[%s5 + $0x440] sm:$0xff]
  %v2550 = vld [vmem:[%s5 + $0x448] sm:$0xff]
  %v2551 = vld [vmem:[%s5 + $0x450] sm:$0xff]
  %v2552 = vld [vmem:[%s5 + $0x458] sm:$0xff]
  %v2553 = vld [vmem:[%s5 + $0x460] sm:$0xff]
  %v2554 = vld [vmem:[%s5 + $0x468] sm:$0xff]
  %v2555 = vld [vmem:[%s5 + $0x470] sm:$0xff]
  %v2556 = vld [vmem:[%s5 + $0x478] sm:$0xff]
  %v2557 = vld [vmem:[%s5 + $0x480] sm:$0xff]
  %v2558 = vld [vmem:[%s5 + $0x488] sm:$0xff]
  %v2559 = vld [vmem:[%s5 + $0x490] sm:$0xff]
  %v2560 = vld [vmem:[%s5 + $0x498] sm:$0xff]
  %v2561 = vld [vmem:[%s5 + $0x4a0] sm:$0xff]
  %v2562 = vld [vmem:[%s5 + $0x4a8] sm:$0xff]
  %v2563 = vld [vmem:[%s5 + $0x4b0] sm:$0xff]
  %v2564 = vld [vmem:[%s5 + $0x4b8] sm:$0xff]
  %v2565 = vld [vmem:[%s5 + $0x4c0] sm:$0xff]
  %v2566 = vld [vmem:[%s5 + $0x4c8] sm:$0xff]
  %v2567 = vld [vmem:[%s5 + $0x4d0] sm:$0xff]
  %v2568 = vld [vmem:[%s5 + $0x4d8] sm:$0xff]
  %v2569 = vld [vmem:[%s5 + $0x4e0] sm:$0xff]
  %v2570 = vld [vmem:[%s5 + $0x4e8] sm:$0xff]
  %v2571 = vld [vmem:[%s5 + $0x4f0] sm:$0xff]
  %v2572 = vld [vmem:[%s5 + $0x4f8] sm:$0xff]
  %v2573 = vld [vmem:[%s5 + $0x500] sm:$0xff]
  %v2574 = vld [vmem:[%s5 + $0x508] sm:$0xff]
  %v2575 = vld [vmem:[%s5 + $0x510] sm:$0xff]
  %v2576 = vld [vmem:[%s5 + $0x518] sm:$0xff]
  %v2577 = vld [vmem:[%s5 + $0x520] sm:$0xff]
  %v2578 = vld [vmem:[%s5 + $0x528] sm:$0xff]
  %v2579 = vld [vmem:[%s5 + $0x530] sm:$0xff]
  %v2580 = vld [vmem:[%s5 + $0x538] sm:$0xff]
  %v2581 = vld [vmem:[%s5 + $0x540] sm:$0xff]
  %v2582 = vld [vmem:[%s5 + $0x548] sm:$0xff]
  %v2583 = vld [vmem:[%s5 + $0x550] sm:$0xff]
  %v2584 = vld [vmem:[%s5 + $0x558] sm:$0xff]
  %v2585 = vld [vmem:[%s5 + $0x560] sm:$0xff]
  %v2586 = vld [vmem:[%s5 + $0x568] sm:$0xff]
  %v2587 = vld [vmem:[%s5 + $0x570] sm:$0xff]
  %v2588 = vld [vmem:[%s5 + $0x578] sm:$0xff]
  %v2589 = vld [vmem:[%s5 + $0x580] sm:$0xff]
  %v2590 = vld [vmem:[%s5 + $0x588] sm:$0xff]
  %v2591 = vld [vmem:[%s5 + $0x590] sm:$0xff]
  %v2592 = vld [vmem:[%s5 + $0x598] sm:$0xff]
  %v2593 = vld [vmem:[%s5 + $0x5a0] sm:$0xff]
  %v2594 = vld [vmem:[%s5 + $0x5a8] sm:$0xff]
  %v2595 = vld [vmem:[%s5 + $0x5b0] sm:$0xff]
  %v2596 = vld [vmem:[%s5 + $0x5b8] sm:$0xff]
  %v2597 = vld [vmem:[%s5 + $0x5c0] sm:$0xff]
  %v2598 = vld [vmem:[%s5 + $0x5c8] sm:$0xff]
  %v2599 = vld [vmem:[%s5 + $0x5d0] sm:$0xff]
  %v2600 = vld [vmem:[%s5 + $0x5d8] sm:$0xff]
  %v2601 = vld [vmem:[%s5 + $0x5e0] sm:$0xff]
  %v2602 = vld [vmem:[%s5 + $0x5e8] sm:$0xff]
  %v2603 = vld [vmem:[%s5 + $0x5f0] sm:$0xff]
  %v2604 = vld [vmem:[%s5 + $0x5f8] sm:$0xff]
  %v2605 = vld [vmem:[%s5 + $0x600] sm:$0xff]
  %v2606 = vld [vmem:[%s5 + $0x608] sm:$0xff]
  %v2607 = vld [vmem:[%s5 + $0x610] sm:$0xff]
  %v2608 = vld [vmem:[%s5 + $0x618] sm:$0xff]
  %v2609 = vld [vmem:[%s5 + $0x620] sm:$0xff]
  %v2610 = vld [vmem:[%s5 + $0x628] sm:$0xff]
  %v2611 = vld [vmem:[%s5 + $0x630] sm:$0xff]
  %v2612 = vld [vmem:[%s5 + $0x638] sm:$0xff]
  %v2613 = vld [vmem:[%s5 + $0x640] sm:$0xff]
  %v2614 = vld [vmem:[%s5 + $0x648] sm:$0xff]
  %v2615 = vld [vmem:[%s5 + $0x650] sm:$0xff]
  %v2616 = vld [vmem:[%s5 + $0x658] sm:$0xff]
  %v2617 = vld [vmem:[%s5 + $0x660] sm:$0xff]
  %v2618 = vld [vmem:[%s5 + $0x668] sm:$0xff]
  %v2619 = vld [vmem:[%s5 + $0x670] sm:$0xff]
  %v2620 = vld [vmem:[%s5 + $0x678] sm:$0xff]
  %v2621 = vld [vmem:[%s5 + $0x680] sm:$0xff]
  %v2622 = vld [vmem:[%s5 + $0x688] sm:$0xff]
  %v2623 = vld [vmem:[%s5 + $0x690] sm:$0xff]
  %v2624 = vld [vmem:[%s5 + $0x698] sm:$0xff]
  %v2625 = vld [vmem:[%s5 + $0x6a0] sm:$0xff]
  %v2626 = vld [vmem:[%s5 + $0x6a8] sm:$0xff]
  %v2627 = vld [vmem:[%s5 + $0x6b0] sm:$0xff]
  %v2628 = vld [vmem:[%s5 + $0x6b8] sm:$0xff]
  %v2629 = vld [vmem:[%s5 + $0x6c0] sm:$0xff]
  %v2630 = vld [vmem:[%s5 + $0x6c8] sm:$0xff]
  %v2631 = vld [vmem:[%s5 + $0x6d0] sm:$0xff]
  %v2632 = vld [vmem:[%s5 + $0x6d8] sm:$0xff]
  %v2633 = vld [vmem:[%s5 + $0x6e0] sm:$0xff]
  %v2634 = vld [vmem:[%s5 + $0x6e8] sm:$0xff]
  %v2635 = vld [vmem:[%s5 + $0x6f0] sm:$0xff]
  %v2636 = vld [vmem:[%s5 + $0x6f8] sm:$0xff]
  %v2637 = vld [vmem:[%s5 + $0x700] sm:$0xff]
  %v2638 = vld [vmem:[%s5 + $0x708] sm:$0xff]
  %v2639 = vld [vmem:[%s5 + $0x710] sm:$0xff]
  %v2640 = vld [vmem:[%s5 + $0x718] sm:$0xff]
  %v2641 = vld [vmem:[%s5 + $0x720] sm:$0xff]
  %v2642 = vld [vmem:[%s5 + $0x728] sm:$0xff]
  %v2643 = vld [vmem:[%s5 + $0x730] sm:$0xff]
  %v2644 = vld [vmem:[%s5 + $0x738] sm:$0xff]
  %v2645 = vld [vmem:[%s5 + $0x740] sm:$0xff]
  %v2646 = vld [vmem:[%s5 + $0x748] sm:$0xff]
  %v2647 = vld [vmem:[%s5 + $0x750] sm:$0xff]
  %v2648 = vld [vmem:[%s5 + $0x758] sm:$0xff]
  %v2649 = vld [vmem:[%s5 + $0x760] sm:$0xff]
  %v2650 = vld [vmem:[%s5 + $0x768] sm:$0xff]
  %v2651 = vld [vmem:[%s5 + $0x770] sm:$0xff]
  %v2652 = vld [vmem:[%s5 + $0x778] sm:$0xff]
  %v2653 = vld [vmem:[%s5 + $0x780] sm:$0xff]
  %v2654 = vld [vmem:[%s5 + $0x788] sm:$0xff]
  %v2655 = vld [vmem:[%s5 + $0x790] sm:$0xff]
  %v2656 = vld [vmem:[%s5 + $0x798] sm:$0xff]
  %v2657 = vld [vmem:[%s5 + $0x7a0] sm:$0xff]
  %v2658 = vld [vmem:[%s5 + $0x7a8] sm:$0xff]
  %v2659 = vld [vmem:[%s5 + $0x7b0] sm:$0xff]
  %v2660 = vld [vmem:[%s5 + $0x7b8] sm:$0xff]
  %v2661 = vld [vmem:[%s5 + $0x7c0] sm:$0xff]
  %v2662 = vld [vmem:[%s5 + $0x7c8] sm:$0xff]
  %v2663 = vld [vmem:[%s5 + $0x7d0] sm:$0xff]
  %v2664 = vld [vmem:[%s5 + $0x7d8] sm:$0xff]
  %v2665 = vld [vmem:[%s5 + $0x7e0] sm:$0xff]
  %v2666 = vld [vmem:[%s5 + $0x7e8] sm:$0xff]
  %v2667 = vld [vmem:[%s5 + $0x7f0] sm:$0xff]
  %v2668 = vld [vmem:[%s5 + $0x7f8] sm:$0xff]
  %v2669 = vld [vmem:[%s5 + $0x800] sm:$0xff]
  %v2670 = vld [vmem:[%s5 + $0x808] sm:$0xff]
  %v2671 = vld [vmem:[%s5 + $0x810] sm:$0xff]
  %v2672 = vld [vmem:[%s5 + $0x818] sm:$0xff]
  %v2673 = vld [vmem:[%s5 + $0x820] sm:$0xff]
  %v2674 = vld [vmem:[%s5 + $0x828] sm:$0xff]
  %v2675 = vld [vmem:[%s5 + $0x830] sm:$0xff]
  %v2676 = vld [vmem:[%s5 + $0x838] sm:$0xff]
  %v2677 = vld [vmem:[%s5 + $0x840] sm:$0xff]
  %v2678 = vld [vmem:[%s5 + $0x848] sm:$0xff]
  %v2679 = vld [vmem:[%s5 + $0x850] sm:$0xff]
  %v2680 = vld [vmem:[%s5 + $0x858] sm:$0xff]
  %v2681 = vld [vmem:[%s5 + $0x860] sm:$0xff]
  %v2682 = vld [vmem:[%s5 + $0x868] sm:$0xff]
  %v2683 = vld [vmem:[%s5 + $0x870] sm:$0xff]
  %v2684 = vld [vmem:[%s5 + $0x878] sm:$0xff]
  %v2685 = vld [vmem:[%s5 + $0x880] sm:$0xff]
  %v2686 = vld [vmem:[%s5 + $0x888] sm:$0xff]
  %v2687 = vld [vmem:[%s5 + $0x890] sm:$0xff]
  %v2688 = vld [vmem:[%s5 + $0x898] sm:$0xff]
  %v2689 = vld [vmem:[%s5 + $0x8a0] sm:$0xff]
  %v2690 = vld [vmem:[%s5 + $0x8a8] sm:$0xff]
  %v2691 = vld [vmem:[%s5 + $0x8b0] sm:$0xff]
  %v2692 = vld [vmem:[%s5 + $0x8b8] sm:$0xff]
  %v2693 = vld [vmem:[%s5 + $0x8c0] sm:$0xff]
  %v2694 = vld [vmem:[%s5 + $0x8c8] sm:$0xff]
  %v2695 = vld [vmem:[%s5 + $0x8d0] sm:$0xff]
  %v2696 = vld [vmem:[%s5 + $0x8d8] sm:$0xff]
  %v2697 = vld [vmem:[%s5 + $0x8e0] sm:$0xff]
  %v2698 = vld [vmem:[%s5 + $0x8e8] sm:$0xff]
  %v2699 = vld [vmem:[%s5 + $0x8f0] sm:$0xff]
  %v2700 = vld [vmem:[%s5 + $0x8f8] sm:$0xff]
  %v2701 = vld [vmem:[%s5 + $0x900] sm:$0xff]
  %v2702 = vld [vmem:[%s5 + $0x908] sm:$0xff]
  %v2703 = vld [vmem:[%s5 + $0x910] sm:$0xff]
  %v2704 = vld [vmem:[%s5 + $0x918] sm:$0xff]
  %v2705 = vld [vmem:[%s5 + $0x920] sm:$0xff]
  %v2706 = vld [vmem:[%s5 + $0x928] sm:$0xff]
  %v2707 = vld [vmem:[%s5 + $0x930] sm:$0xff]
  %v2708 = vld [vmem:[%s5 + $0x938] sm:$0xff]
  %v2709 = vld [vmem:[%s5 + $0x940] sm:$0xff]
  %v2710 = vld [vmem:[%s5 + $0x948] sm:$0xff]
  %v2711 = vld [vmem:[%s5 + $0x950] sm:$0xff]
  %v2712 = vld [vmem:[%s5 + $0x958] sm:$0xff]
  %v2713 = vld [vmem:[%s5 + $0x960] sm:$0xff]
  %v2714 = vld [vmem:[%s5 + $0x968] sm:$0xff]
  %v2715 = vld [vmem:[%s5 + $0x970] sm:$0xff]
  %v2716 = vld [vmem:[%s5 + $0x978] sm:$0xff]
  %v2717 = vld [vmem:[%s5 + $0x980] sm:$0xff]
  %v2718 = vld [vmem:[%s5 + $0x988] sm:$0xff]
  %v2719 = vld [vmem:[%s5 + $0x990] sm:$0xff]
  %v2720 = vld [vmem:[%s5 + $0x998] sm:$0xff]
  %v2721 = vld [vmem:[%s5 + $0x9a0] sm:$0xff]
  %v2722 = vld [vmem:[%s5 + $0x9a8] sm:$0xff]
  %v2723 = vld [vmem:[%s5 + $0x9b0] sm:$0xff]
  %v2724 = vld [vmem:[%s5 + $0x9b8] sm:$0xff]
  %v2725 = vld [vmem:[%s5 + $0x9c0] sm:$0xff]
  %v2726 = vld [vmem:[%s5 + $0x9c8] sm:$0xff]
  %v2727 = vld [vmem:[%s5 + $0x9d0] sm:$0xff]
  %v2728 = vld [vmem:[%s5 + $0x9d8] sm:$0xff]
  %v2729 = vld [vmem:[%s5 + $0x9e0] sm:$0xff]
  %v2730 = vld [vmem:[%s5 + $0x9e8] sm:$0xff]
  %v2731 = vld [vmem:[%s5 + $0x9f0] sm:$0xff]
  %v2732 = vld [vmem:[%s5 + $0x9f8] sm:$0xff]
  %v2733 = vld [vmem:[%s5 + $0xa00] sm:$0xff]
  %v2734 = vld [vmem:[%s5 + $0xa08] sm:$0xff]
  %v2735 = vld [vmem:[%s5 + $0xa10] sm:$0xff]
  %v2736 = vld [vmem:[%s5 + $0xa18] sm:$0xff]
  %v2737 = vld [vmem:[%s5 + $0xa20] sm:$0xff]
  %v2738 = vld [vmem:[%s5 + $0xa28] sm:$0xff]
  %v2739 = vld [vmem:[%s5 + $0xa30] sm:$0xff]
  %v2740 = vld [vmem:[%s5 + $0xa38] sm:$0xff]
  %v2741 = vld [vmem:[%s5 + $0xa40] sm:$0xff]
  %v2742 = vld [vmem:[%s5 + $0xa48] sm:$0xff]
  %v2743 = vld [vmem:[%s5 + $0xa50] sm:$0xff]
  %v2744 = vld [vmem:[%s5 + $0xa58] sm:$0xff]
  %v2745 = vld [vmem:[%s5 + $0xa60] sm:$0xff]
  %v2746 = vld [vmem:[%s5 + $0xa68] sm:$0xff]
  %v2747 = vld [vmem:[%s5 + $0xa70] sm:$0xff]
  %v2748 = vld [vmem:[%s5 + $0xa78] sm:$0xff]
  %v2749 = vld [vmem:[%s5 + $0xa80] sm:$0xff]
  %v2750 = vld [vmem:[%s5 + $0xa88] sm:$0xff]
  %v2751 = vld [vmem:[%s5 + $0xa90] sm:$0xff]
  %v2752 = vld [vmem:[%s5 + $0xa98] sm:$0xff]
  %v2753 = vld [vmem:[%s5 + $0xaa0] sm:$0xff]
  %v2754 = vld [vmem:[%s5 + $0xaa8] sm:$0xff]
  %v2755 = vld [vmem:[%s5 + $0xab0] sm:$0xff]
  %v2756 = vld [vmem:[%s5 + $0xab8] sm:$0xff]
  %v2757 = vld [vmem:[%s5 + $0xac0] sm:$0xff]
  %v2758 = vld [vmem:[%s5 + $0xac8] sm:$0xff]
  %v2759 = vld [vmem:[%s5 + $0xad0] sm:$0xff]
  %v2760 = vld [vmem:[%s5 + $0xad8] sm:$0xff]
  %v2761 = vld [vmem:[%s5 + $0xae0] sm:$0xff]
  %v2762 = vld [vmem:[%s5 + $0xae8] sm:$0xff]
  %v2763 = vld [vmem:[%s5 + $0xaf0] sm:$0xff]
  %v2764 = vld [vmem:[%s5 + $0xaf8] sm:$0xff]
  %v2765 = vld [vmem:[%s5 + $0xb00] sm:$0xff]
  %v2766 = vld [vmem:[%s5 + $0xb08] sm:$0xff]
  %v2767 = vld [vmem:[%s5 + $0xb10] sm:$0xff]
  %v2768 = vld [vmem:[%s5 + $0xb18] sm:$0xff]
  %v2769 = vld [vmem:[%s5 + $0xb20] sm:$0xff]
  %v2770 = vld [vmem:[%s5 + $0xb28] sm:$0xff]
  %v2771 = vld [vmem:[%s5 + $0xb30] sm:$0xff]
  %v2772 = vld [vmem:[%s5 + $0xb38] sm:$0xff]
  %v2773 = vld [vmem:[%s5 + $0xb40] sm:$0xff]
  %v2774 = vld [vmem:[%s5 + $0xb48] sm:$0xff]
  %v2775 = vld [vmem:[%s5 + $0xb50] sm:$0xff]
  %v2776 = vld [vmem:[%s5 + $0xb58] sm:$0xff]
  %v2777 = vld [vmem:[%s5 + $0xb60] sm:$0xff]
  %v2778 = vld [vmem:[%s5 + $0xb68] sm:$0xff]
  %v2779 = vld [vmem:[%s5 + $0xb70] sm:$0xff]
  %v2780 = vld [vmem:[%s5 + $0xb78] sm:$0xff]
  %v2781 = vld [vmem:[%s5 + $0xb80] sm:$0xff]
  %v2782 = vld [vmem:[%s5 + $0xb88] sm:$0xff]
  %v2783 = vld [vmem:[%s5 + $0xb90] sm:$0xff]
  %v2784 = vld [vmem:[%s5 + $0xb98] sm:$0xff]
  %v2785 = vld [vmem:[%s5 + $0xba0] sm:$0xff]
  %v2786 = vld [vmem:[%s5 + $0xba8] sm:$0xff]
  %v2787 = vld [vmem:[%s5 + $0xbb0] sm:$0xff]
  %v2788 = vld [vmem:[%s5 + $0xbb8] sm:$0xff]
  %v2789 = vld [vmem:[%s5 + $0xbc0] sm:$0xff]
  %v2790 = vld [vmem:[%s5 + $0xbc8] sm:$0xff]
  %v2791 = vld [vmem:[%s5 + $0xbd0] sm:$0xff]
  %v2792 = vld [vmem:[%s5 + $0xbd8] sm:$0xff]
  %v2793 = vld [vmem:[%s5 + $0xbe0] sm:$0xff]
  %v2794 = vld [vmem:[%s5 + $0xbe8] sm:$0xff]
  %v2795 = vld [vmem:[%s5 + $0xbf0] sm:$0xff]
  %v2796 = vld [vmem:[%s5 + $0xbf8] sm:$0xff]
  %v2797 = vld [vmem:[%s5 + $0xc00] sm:$0xff]
  %v2798 = vld [vmem:[%s5 + $0xc08] sm:$0xff]
  %v2799 = vld [vmem:[%s5 + $0xc10] sm:$0xff]
  %v2800 = vld [vmem:[%s5 + $0xc18] sm:$0xff]
  %v2801 = vld [vmem:[%s5 + $0xc20] sm:$0xff]
  %v2802 = vld [vmem:[%s5 + $0xc28] sm:$0xff]
  %v2803 = vld [vmem:[%s5 + $0xc30] sm:$0xff]
  %v2804 = vld [vmem:[%s5 + $0xc38] sm:$0xff]
  %v2805 = vld [vmem:[%s5 + $0xc40] sm:$0xff]
  %v2806 = vld [vmem:[%s5 + $0xc48] sm:$0xff]
  %v2807 = vld [vmem:[%s5 + $0xc50] sm:$0xff]
  %v2808 = vld [vmem:[%s5 + $0xc58] sm:$0xff]
  %v2809 = vld [vmem:[%s5 + $0xc60] sm:$0xff]
  %v2810 = vld [vmem:[%s5 + $0xc68] sm:$0xff]
  %v2811 = vld [vmem:[%s5 + $0xc70] sm:$0xff]
  %v2812 = vld [vmem:[%s5 + $0xc78] sm:$0xff]
  %v2813 = vld [vmem:[%s5 + $0xc80] sm:$0xff]
  %v2814 = vld [vmem:[%s5 + $0xc88] sm:$0xff]
  %v2815 = vld [vmem:[%s5 + $0xc90] sm:$0xff]
  %v2816 = vld [vmem:[%s5 + $0xc98] sm:$0xff]
  %v2817 = vld [vmem:[%s5 + $0xca0] sm:$0xff]
  %v2818 = vld [vmem:[%s5 + $0xca8] sm:$0xff]
  %v2819 = vld [vmem:[%s5 + $0xcb0] sm:$0xff]
  %v2820 = vld [vmem:[%s5 + $0xcb8] sm:$0xff]
  %v2821 = vld [vmem:[%s5 + $0xcc0] sm:$0xff]
  %v2822 = vld [vmem:[%s5 + $0xcc8] sm:$0xff]
  %v2823 = vld [vmem:[%s5 + $0xcd0] sm:$0xff]
  %v2824 = vld [vmem:[%s5 + $0xcd8] sm:$0xff]
  %v2825 = vld [vmem:[%s5 + $0xce0] sm:$0xff]
  %v2826 = vld [vmem:[%s5 + $0xce8] sm:$0xff]
  %v2827 = vld [vmem:[%s5 + $0xcf0] sm:$0xff]
  %v2828 = vld [vmem:[%s5 + $0xcf8] sm:$0xff]
  %v2829 = vld [vmem:[%s5 + $0xd00] sm:$0xff]
  %v2830 = vld [vmem:[%s5 + $0xd08] sm:$0xff]
  %v2831 = vld [vmem:[%s5 + $0xd10] sm:$0xff]
  %v2832 = vld [vmem:[%s5 + $0xd18] sm:$0xff]
  %v2833 = vld [vmem:[%s5 + $0xd20] sm:$0xff]
  %v2834 = vld [vmem:[%s5 + $0xd28] sm:$0xff]
  %v2835 = vld [vmem:[%s5 + $0xd30] sm:$0xff]
  %v2836 = vld [vmem:[%s5 + $0xd38] sm:$0xff]
  %v2837 = vld [vmem:[%s5 + $0xd40] sm:$0xff]
  %v2838 = vld [vmem:[%s5 + $0xd48] sm:$0xff]
  %v2839 = vld [vmem:[%s5 + $0xd50] sm:$0xff]
  %v2840 = vld [vmem:[%s5 + $0xd58] sm:$0xff]
  %v2841 = vld [vmem:[%s5 + $0xd60] sm:$0xff]
  %v2842 = vld [vmem:[%s5 + $0xd68] sm:$0xff]
  %v2843 = vld [vmem:[%s5 + $0xd70] sm:$0xff]
  %v2844 = vld [vmem:[%s5 + $0xd78] sm:$0xff]
  %v2845 = vld [vmem:[%s5 + $0xd80] sm:$0xff]
  %v2846 = vld [vmem:[%s5 + $0xd88] sm:$0xff]
  %v2847 = vld [vmem:[%s5 + $0xd90] sm:$0xff]
  %v2848 = vld [vmem:[%s5 + $0xd98] sm:$0xff]
  %v2849 = vld [vmem:[%s5 + $0xda0] sm:$0xff]
  %v2850 = vld [vmem:[%s5 + $0xda8] sm:$0xff]
  %v2851 = vld [vmem:[%s5 + $0xdb0] sm:$0xff]
  %v2852 = vld [vmem:[%s5 + $0xdb8] sm:$0xff]
  %v2853 = vld [vmem:[%s5 + $0xdc0] sm:$0xff]
  %v2854 = vld [vmem:[%s5 + $0xdc8] sm:$0xff]
  %v2855 = vld [vmem:[%s5 + $0xdd0] sm:$0xff]
  %v2856 = vld [vmem:[%s5 + $0xdd8] sm:$0xff]
  %v2857 = vld [vmem:[%s5 + $0xde0] sm:$0xff]
  %v2858 = vld [vmem:[%s5 + $0xde8] sm:$0xff]
  %v2859 = vld [vmem:[%s5 + $0xdf0] sm:$0xff]
  %v2860 = vld [vmem:[%s5 + $0xdf8] sm:$0xff]
  %v2861 = vld [vmem:[%s5 + $0xe00] sm:$0xff]
  %v2862 = vld [vmem:[%s5 + $0xe08] sm:$0xff]
  %v2863 = vld [vmem:[%s5 + $0xe10] sm:$0xff]
  %v2864 = vld [vmem:[%s5 + $0xe18] sm:$0xff]
  %v2865 = vld [vmem:[%s5 + $0xe20] sm:$0xff]
  %v2866 = vld [vmem:[%s5 + $0xe28] sm:$0xff]
  %v2867 = vld [vmem:[%s5 + $0xe30] sm:$0xff]
  %v2868 = vld [vmem:[%s5 + $0xe38] sm:$0xff]
  %v2869 = vld [vmem:[%s5 + $0xe40] sm:$0xff]
  %v2870 = vld [vmem:[%s5 + $0xe48] sm:$0xff]
  %v2871 = vld [vmem:[%s5 + $0xe50] sm:$0xff]
  %v2872 = vld [vmem:[%s5 + $0xe58] sm:$0xff]
  %v2873 = vld [vmem:[%s5 + $0xe60] sm:$0xff]
  %v2874 = vld [vmem:[%s5 + $0xe68] sm:$0xff]
  %v2875 = vld [vmem:[%s5 + $0xe70] sm:$0xff]
  %v2876 = vld [vmem:[%s5 + $0xe78] sm:$0xff]
  %v2877 = vld [vmem:[%s5 + $0xe80] sm:$0xff]
  %v2878 = vld [vmem:[%s5 + $0xe88] sm:$0xff]
  %v2879 = vld [vmem:[%s5 + $0xe90] sm:$0xff]
  %v2880 = vld [vmem:[%s5 + $0xe98] sm:$0xff]
  %v2881 = vld [vmem:[%s5 + $0xea0] sm:$0xff]
  %v2882 = vld [vmem:[%s5 + $0xea8] sm:$0xff]
  %v2883 = vld [vmem:[%s5 + $0xeb0] sm:$0xff]
  %v2884 = vld [vmem:[%s5 + $0xeb8] sm:$0xff]
  %v2885 = vld [vmem:[%s5 + $0xec0] sm:$0xff]
  %v2886 = vld [vmem:[%s5 + $0xec8] sm:$0xff]
  %v2887 = vld [vmem:[%s5 + $0xed0] sm:$0xff]
  %v2888 = vld [vmem:[%s5 + $0xed8] sm:$0xff]
  %v2889 = vld [vmem:[%s5 + $0xee0] sm:$0xff]
  %v2890 = vld [vmem:[%s5 + $0xee8] sm:$0xff]
  %v2891 = vld [vmem:[%s5 + $0xef0] sm:$0xff]
  %v2892 = vld [vmem:[%s5 + $0xef8] sm:$0xff]
  %v2893 = vld [vmem:[%s5 + $0xf00] sm:$0xff]
  %v2894 = vld [vmem:[%s5 + $0xf08] sm:$0xff]
  %v2895 = vld [vmem:[%s5 + $0xf10] sm:$0xff]
  %v2896 = vld [vmem:[%s5 + $0xf18] sm:$0xff]
  %v2897 = vld [vmem:[%s5 + $0xf20] sm:$0xff]
  %v2898 = vld [vmem:[%s5 + $0xf28] sm:$0xff]
  %v2899 = vld [vmem:[%s5 + $0xf30] sm:$0xff]
  %v2900 = vld [vmem:[%s5 + $0xf38] sm:$0xff]
  %v2901 = vld [vmem:[%s5 + $0xf40] sm:$0xff]
  %v2902 = vld [vmem:[%s5 + $0xf48] sm:$0xff]
  %v2903 = vld [vmem:[%s5 + $0xf50] sm:$0xff]
  %v2904 = vld [vmem:[%s5 + $0xf58] sm:$0xff]
  %v2905 = vld [vmem:[%s5 + $0xf60] sm:$0xff]
  %v2906 = vld [vmem:[%s5 + $0xf68] sm:$0xff]
  %v2907 = vld [vmem:[%s5 + $0xf70] sm:$0xff]
  %v2908 = vld [vmem:[%s5 + $0xf78] sm:$0xff]
  %v2909 = vld [vmem:[%s5 + $0xf80] sm:$0xff]
  %v2910 = vld [vmem:[%s5 + $0xf88] sm:$0xff]
  %v2911 = vld [vmem:[%s5 + $0xf90] sm:$0xff]
  %v2912 = vld [vmem:[%s5 + $0xf98] sm:$0xff]
  %v2913 = vld [vmem:[%s5 + $0xfa0] sm:$0xff]
  %v2914 = vld [vmem:[%s5 + $0xfa8] sm:$0xff]
  %v2915 = vld [vmem:[%s5 + $0xfb0] sm:$0xff]
  %v2916 = vld [vmem:[%s5 + $0xfb8] sm:$0xff]
  %v2917 = vld [vmem:[%s5 + $0xfc0] sm:$0xff]
  %v2918 = vld [vmem:[%s5 + $0xfc8] sm:$0xff]
  %v2919 = vld [vmem:[%s5 + $0xfd0] sm:$0xff]
  %v2920 = vld [vmem:[%s5 + $0xfd8] sm:$0xff]
  %v2921 = vld [vmem:[%s5 + $0xfe0] sm:$0xff]
  %v2922 = vld [vmem:[%s5 + $0xfe8] sm:$0xff]
  %v2923 = vld [vmem:[%s5 + $0xff0] sm:$0xff]
  %v2924 = vld [vmem:[%s5 + $0xff8] sm:$0xff]
  %v2925 = vld [vmem:[%s6] sm:$0xff]
  %v2927 = vlaneseq
  %v2928 = vshrl.u32 %v2927, 7
  %v2929 = vsub.s32 0, %v2928
  %v2930 = vrot.slane %v2925, %v2929
  %v2931 = vlaneseq
  %v2932 = vshrl.u32 %v2931, 7
  %v2933 = vsub.s32 1, %v2932
  %v2934 = vrot.slane %v2925, %v2933
  %v2935 = vlaneseq
  %v2936 = vshrl.u32 %v2935, 7
  %v2937 = vsub.s32 2, %v2936
  %v2938 = vrot.slane %v2925, %v2937
  %v2939 = vlaneseq
  %v2940 = vshrl.u32 %v2939, 7
  %v2941 = vsub.s32 3, %v2940
  %v2942 = vrot.slane %v2925, %v2941
  %v2943 = vlaneseq
  %v2944 = vshrl.u32 %v2943, 7
  %v2945 = vsub.s32 4, %v2944
  %v2946 = vrot.slane %v2925, %v2945
  %v2947 = vlaneseq
  %v2948 = vshrl.u32 %v2947, 7
  %v2949 = vsub.s32 5, %v2948
  %v2950 = vrot.slane %v2925, %v2949
  %v2951 = vlaneseq
  %v2952 = vshrl.u32 %v2951, 7
  %v2953 = vsub.s32 6, %v2952
  %v2954 = vrot.slane %v2925, %v2953
  %v2955 = vlaneseq
  %v2956 = vshrl.u32 %v2955, 7
  %v2957 = vsub.s32 7, %v2956
  %v2958 = vrot.slane %v2925, %v2957
  %v3479 = vunpack.c.l.b16 %v2413
  %v3480 = vunpack.c.h.b16 %v2413
  %v3481 = vunpack.c.l.b16 %v2414
  %v3482 = vunpack.c.h.b16 %v2414
  %v3483 = vunpack.c.l.b16 %v2415
  %v3484 = vunpack.c.h.b16 %v2415
  %v3485 = vunpack.c.l.b16 %v2416
  %v3486 = vunpack.c.h.b16 %v2416
  %v3487 = vunpack.c.l.b16 %v2417
  %v3488 = vunpack.c.h.b16 %v2417
  %v3489 = vunpack.c.l.b16 %v2418
  %v3490 = vunpack.c.h.b16 %v2418
  %v3491 = vunpack.c.l.b16 %v2419
  %v3492 = vunpack.c.h.b16 %v2419
  %v3493 = vunpack.c.l.b16 %v2420
  %v3494 = vunpack.c.h.b16 %v2420
  %v3495 = vunpack.c.l.b16 %v2421
  %v3496 = vunpack.c.h.b16 %v2421
  %v3497 = vunpack.c.l.b16 %v2422
  %v3498 = vunpack.c.h.b16 %v2422
  %v3499 = vunpack.c.l.b16 %v2423
  %v3500 = vunpack.c.h.b16 %v2423
  %v3501 = vunpack.c.l.b16 %v2424
  %v3502 = vunpack.c.h.b16 %v2424
  %v3503 = vunpack.c.l.b16 %v2425
  %v3504 = vunpack.c.h.b16 %v2425
  %v3505 = vunpack.c.l.b16 %v2426
  %v3506 = vunpack.c.h.b16 %v2426
  %v3507 = vunpack.c.l.b16 %v2427
  %v3508 = vunpack.c.h.b16 %v2427
  %v3509 = vunpack.c.l.b16 %v2428
  %v3510 = vunpack.c.h.b16 %v2428
  %v3511 = vunpack.c.l.b16 %v2429
  %v3512 = vunpack.c.h.b16 %v2429
  %v3513 = vunpack.c.l.b16 %v2430
  %v3514 = vunpack.c.h.b16 %v2430
  %v3515 = vunpack.c.l.b16 %v2431
  %v3516 = vunpack.c.h.b16 %v2431
  %v3517 = vunpack.c.l.b16 %v2432
  %v3518 = vunpack.c.h.b16 %v2432
  %v3519 = vunpack.c.l.b16 %v2433
  %v3520 = vunpack.c.h.b16 %v2433
  %v3521 = vunpack.c.l.b16 %v2434
  %v3522 = vunpack.c.h.b16 %v2434
  %v3523 = vunpack.c.l.b16 %v2435
  %v3524 = vunpack.c.h.b16 %v2435
  %v3525 = vunpack.c.l.b16 %v2436
  %v3526 = vunpack.c.h.b16 %v2436
  %v3527 = vunpack.c.l.b16 %v2437
  %v3528 = vunpack.c.h.b16 %v2437
  %v3529 = vunpack.c.l.b16 %v2438
  %v3530 = vunpack.c.h.b16 %v2438
  %v3531 = vunpack.c.l.b16 %v2439
  %v3532 = vunpack.c.h.b16 %v2439
  %v3533 = vunpack.c.l.b16 %v2440
  %v3534 = vunpack.c.h.b16 %v2440
  %v3535 = vunpack.c.l.b16 %v2441
  %v3536 = vunpack.c.h.b16 %v2441
  %v3537 = vunpack.c.l.b16 %v2442
  %v3538 = vunpack.c.h.b16 %v2442
  %v3539 = vunpack.c.l.b16 %v2443
  %v3540 = vunpack.c.h.b16 %v2443
  %v3541 = vunpack.c.l.b16 %v2444
  %v3542 = vunpack.c.h.b16 %v2444
  %v3543 = vunpack.c.l.b16 %v2445
  %v3544 = vunpack.c.h.b16 %v2445
  %v3545 = vunpack.c.l.b16 %v2446
  %v3546 = vunpack.c.h.b16 %v2446
  %v3547 = vunpack.c.l.b16 %v2447
  %v3548 = vunpack.c.h.b16 %v2447
  %v3549 = vunpack.c.l.b16 %v2448
  %v3550 = vunpack.c.h.b16 %v2448
  %v3551 = vunpack.c.l.b16 %v2449
  %v3552 = vunpack.c.h.b16 %v2449
  %v3553 = vunpack.c.l.b16 %v2450
  %v3554 = vunpack.c.h.b16 %v2450
  %v3555 = vunpack.c.l.b16 %v2451
  %v3556 = vunpack.c.h.b16 %v2451
  %v3557 = vunpack.c.l.b16 %v2452
  %v3558 = vunpack.c.h.b16 %v2452
  %v3559 = vunpack.c.l.b16 %v2453
  %v3560 = vunpack.c.h.b16 %v2453
  %v3561 = vunpack.c.l.b16 %v2454
  %v3562 = vunpack.c.h.b16 %v2454
  %v3563 = vunpack.c.l.b16 %v2455
  %v3564 = vunpack.c.h.b16 %v2455
  %v3565 = vunpack.c.l.b16 %v2456
  %v3566 = vunpack.c.h.b16 %v2456
  %v3567 = vunpack.c.l.b16 %v2457
  %v3568 = vunpack.c.h.b16 %v2457
  %v3569 = vunpack.c.l.b16 %v2458
  %v3570 = vunpack.c.h.b16 %v2458
  %v3571 = vunpack.c.l.b16 %v2459
  %v3572 = vunpack.c.h.b16 %v2459
  %v3573 = vunpack.c.l.b16 %v2460
  %v3574 = vunpack.c.h.b16 %v2460
  %v3575 = vunpack.c.l.b16 %v2461
  %v3576 = vunpack.c.h.b16 %v2461
  %v3577 = vunpack.c.l.b16 %v2462
  %v3578 = vunpack.c.h.b16 %v2462
  %v3579 = vunpack.c.l.b16 %v2463
  %v3580 = vunpack.c.h.b16 %v2463
  %v3581 = vunpack.c.l.b16 %v2464
  %v3582 = vunpack.c.h.b16 %v2464
  %v3583 = vunpack.c.l.b16 %v2465
  %v3584 = vunpack.c.h.b16 %v2465
  %v3585 = vunpack.c.l.b16 %v2466
  %v3586 = vunpack.c.h.b16 %v2466
  %v3587 = vunpack.c.l.b16 %v2467
  %v3588 = vunpack.c.h.b16 %v2467
  %v3589 = vunpack.c.l.b16 %v2468
  %v3590 = vunpack.c.h.b16 %v2468
  %v3591 = vunpack.c.l.b16 %v2469
  %v3592 = vunpack.c.h.b16 %v2469
  %v3593 = vunpack.c.l.b16 %v2470
  %v3594 = vunpack.c.h.b16 %v2470
  %v3595 = vunpack.c.l.b16 %v2471
  %v3596 = vunpack.c.h.b16 %v2471
  %v3597 = vunpack.c.l.b16 %v2472
  %v3598 = vunpack.c.h.b16 %v2472
  %v3599 = vunpack.c.l.b16 %v2473
  %v3600 = vunpack.c.h.b16 %v2473
  %v3601 = vunpack.c.l.b16 %v2474
  %v3602 = vunpack.c.h.b16 %v2474
  %v3603 = vunpack.c.l.b16 %v2475
  %v3604 = vunpack.c.h.b16 %v2475
  %v3605 = vunpack.c.l.b16 %v2476
  %v3606 = vunpack.c.h.b16 %v2476
  %v3607 = vunpack.c.l.b16 %v2477
  %v3608 = vunpack.c.h.b16 %v2477
  %v3609 = vunpack.c.l.b16 %v2478
  %v3610 = vunpack.c.h.b16 %v2478
  %v3611 = vunpack.c.l.b16 %v2479
  %v3612 = vunpack.c.h.b16 %v2479
  %v3613 = vunpack.c.l.b16 %v2480
  %v3614 = vunpack.c.h.b16 %v2480
  %v3615 = vunpack.c.l.b16 %v2481
  %v3616 = vunpack.c.h.b16 %v2481
  %v3617 = vunpack.c.l.b16 %v2482
  %v3618 = vunpack.c.h.b16 %v2482
  %v3619 = vunpack.c.l.b16 %v2483
  %v3620 = vunpack.c.h.b16 %v2483
  %v3621 = vunpack.c.l.b16 %v2484
  %v3622 = vunpack.c.h.b16 %v2484
  %v3623 = vunpack.c.l.b16 %v2485
  %v3624 = vunpack.c.h.b16 %v2485
  %v3625 = vunpack.c.l.b16 %v2486
  %v3626 = vunpack.c.h.b16 %v2486
  %v3627 = vunpack.c.l.b16 %v2487
  %v3628 = vunpack.c.h.b16 %v2487
  %v3629 = vunpack.c.l.b16 %v2488
  %v3630 = vunpack.c.h.b16 %v2488
  %v3631 = vunpack.c.l.b16 %v2489
  %v3632 = vunpack.c.h.b16 %v2489
  %v3633 = vunpack.c.l.b16 %v2490
  %v3634 = vunpack.c.h.b16 %v2490
  %v3635 = vunpack.c.l.b16 %v2491
  %v3636 = vunpack.c.h.b16 %v2491
  %v3637 = vunpack.c.l.b16 %v2492
  %v3638 = vunpack.c.h.b16 %v2492
  %v3639 = vunpack.c.l.b16 %v2493
  %v3640 = vunpack.c.h.b16 %v2493
  %v3641 = vunpack.c.l.b16 %v2494
  %v3642 = vunpack.c.h.b16 %v2494
  %v3643 = vunpack.c.l.b16 %v2495
  %v3644 = vunpack.c.h.b16 %v2495
  %v3645 = vunpack.c.l.b16 %v2496
  %v3646 = vunpack.c.h.b16 %v2496
  %v3647 = vunpack.c.l.b16 %v2497
  %v3648 = vunpack.c.h.b16 %v2497
  %v3649 = vunpack.c.l.b16 %v2498
  %v3650 = vunpack.c.h.b16 %v2498
  %v3651 = vunpack.c.l.b16 %v2499
  %v3652 = vunpack.c.h.b16 %v2499
  %v3653 = vunpack.c.l.b16 %v2500
  %v3654 = vunpack.c.h.b16 %v2500
  %v3655 = vunpack.c.l.b16 %v2501
  %v3656 = vunpack.c.h.b16 %v2501
  %v3657 = vunpack.c.l.b16 %v2502
  %v3658 = vunpack.c.h.b16 %v2502
  %v3659 = vunpack.c.l.b16 %v2503
  %v3660 = vunpack.c.h.b16 %v2503
  %v3661 = vunpack.c.l.b16 %v2504
  %v3662 = vunpack.c.h.b16 %v2504
  %v3663 = vunpack.c.l.b16 %v2505
  %v3664 = vunpack.c.h.b16 %v2505
  %v3665 = vunpack.c.l.b16 %v2506
  %v3666 = vunpack.c.h.b16 %v2506
  %v3667 = vunpack.c.l.b16 %v2507
  %v3668 = vunpack.c.h.b16 %v2507
  %v3669 = vunpack.c.l.b16 %v2508
  %v3670 = vunpack.c.h.b16 %v2508
  %v3671 = vunpack.c.l.b16 %v2509
  %v3672 = vunpack.c.h.b16 %v2509
  %v3673 = vunpack.c.l.b16 %v2510
  %v3674 = vunpack.c.h.b16 %v2510
  %v3675 = vunpack.c.l.b16 %v2511
  %v3676 = vunpack.c.h.b16 %v2511
  %v3677 = vunpack.c.l.b16 %v2512
  %v3678 = vunpack.c.h.b16 %v2512
  %v3679 = vunpack.c.l.b16 %v2513
  %v3680 = vunpack.c.h.b16 %v2513
  %v3681 = vunpack.c.l.b16 %v2514
  %v3682 = vunpack.c.h.b16 %v2514
  %v3683 = vunpack.c.l.b16 %v2515
  %v3684 = vunpack.c.h.b16 %v2515
  %v3685 = vunpack.c.l.b16 %v2516
  %v3686 = vunpack.c.h.b16 %v2516
  %v3687 = vunpack.c.l.b16 %v2517
  %v3688 = vunpack.c.h.b16 %v2517
  %v3689 = vunpack.c.l.b16 %v2518
  %v3690 = vunpack.c.h.b16 %v2518
  %v3691 = vunpack.c.l.b16 %v2519
  %v3692 = vunpack.c.h.b16 %v2519
  %v3693 = vunpack.c.l.b16 %v2520
  %v3694 = vunpack.c.h.b16 %v2520
  %v3695 = vunpack.c.l.b16 %v2521
  %v3696 = vunpack.c.h.b16 %v2521
  %v3697 = vunpack.c.l.b16 %v2522
  %v3698 = vunpack.c.h.b16 %v2522
  %v3699 = vunpack.c.l.b16 %v2523
  %v3700 = vunpack.c.h.b16 %v2523
  %v3701 = vunpack.c.l.b16 %v2524
  %v3702 = vunpack.c.h.b16 %v2524
  %v3703 = vunpack.c.l.b16 %v2525
  %v3704 = vunpack.c.h.b16 %v2525
  %v3705 = vunpack.c.l.b16 %v2526
  %v3706 = vunpack.c.h.b16 %v2526
  %v3707 = vunpack.c.l.b16 %v2527
  %v3708 = vunpack.c.h.b16 %v2527
  %v3709 = vunpack.c.l.b16 %v2528
  %v3710 = vunpack.c.h.b16 %v2528
  %v3711 = vunpack.c.l.b16 %v2529
  %v3712 = vunpack.c.h.b16 %v2529
  %v3713 = vunpack.c.l.b16 %v2530
  %v3714 = vunpack.c.h.b16 %v2530
  %v3715 = vunpack.c.l.b16 %v2531
  %v3716 = vunpack.c.h.b16 %v2531
  %v3717 = vunpack.c.l.b16 %v2532
  %v3718 = vunpack.c.h.b16 %v2532
  %v3719 = vunpack.c.l.b16 %v2533
  %v3720 = vunpack.c.h.b16 %v2533
  %v3721 = vunpack.c.l.b16 %v2534
  %v3722 = vunpack.c.h.b16 %v2534
  %v3723 = vunpack.c.l.b16 %v2535
  %v3724 = vunpack.c.h.b16 %v2535
  %v3725 = vunpack.c.l.b16 %v2536
  %v3726 = vunpack.c.h.b16 %v2536
  %v3727 = vunpack.c.l.b16 %v2537
  %v3728 = vunpack.c.h.b16 %v2537
  %v3729 = vunpack.c.l.b16 %v2538
  %v3730 = vunpack.c.h.b16 %v2538
  %v3731 = vunpack.c.l.b16 %v2539
  %v3732 = vunpack.c.h.b16 %v2539
  %v3733 = vunpack.c.l.b16 %v2540
  %v3734 = vunpack.c.h.b16 %v2540
  %v3735 = vunpack.c.l.b16 %v2541
  %v3736 = vunpack.c.h.b16 %v2541
  %v3737 = vunpack.c.l.b16 %v2542
  %v3738 = vunpack.c.h.b16 %v2542
  %v3739 = vunpack.c.l.b16 %v2543
  %v3740 = vunpack.c.h.b16 %v2543
  %v3741 = vunpack.c.l.b16 %v2544
  %v3742 = vunpack.c.h.b16 %v2544
  %v3743 = vunpack.c.l.b16 %v2545
  %v3744 = vunpack.c.h.b16 %v2545
  %v3745 = vunpack.c.l.b16 %v2546
  %v3746 = vunpack.c.h.b16 %v2546
  %v3747 = vunpack.c.l.b16 %v2547
  %v3748 = vunpack.c.h.b16 %v2547
  %v3749 = vunpack.c.l.b16 %v2548
  %v3750 = vunpack.c.h.b16 %v2548
  %v3751 = vunpack.c.l.b16 %v2549
  %v3752 = vunpack.c.h.b16 %v2549
  %v3753 = vunpack.c.l.b16 %v2550
  %v3754 = vunpack.c.h.b16 %v2550
  %v3755 = vunpack.c.l.b16 %v2551
  %v3756 = vunpack.c.h.b16 %v2551
  %v3757 = vunpack.c.l.b16 %v2552
  %v3758 = vunpack.c.h.b16 %v2552
  %v3759 = vunpack.c.l.b16 %v2553
  %v3760 = vunpack.c.h.b16 %v2553
  %v3761 = vunpack.c.l.b16 %v2554
  %v3762 = vunpack.c.h.b16 %v2554
  %v3763 = vunpack.c.l.b16 %v2555
  %v3764 = vunpack.c.h.b16 %v2555
  %v3765 = vunpack.c.l.b16 %v2556
  %v3766 = vunpack.c.h.b16 %v2556
  %v3767 = vunpack.c.l.b16 %v2557
  %v3768 = vunpack.c.h.b16 %v2557
  %v3769 = vunpack.c.l.b16 %v2558
  %v3770 = vunpack.c.h.b16 %v2558
  %v3771 = vunpack.c.l.b16 %v2559
  %v3772 = vunpack.c.h.b16 %v2559
  %v3773 = vunpack.c.l.b16 %v2560
  %v3774 = vunpack.c.h.b16 %v2560
  %v3775 = vunpack.c.l.b16 %v2561
  %v3776 = vunpack.c.h.b16 %v2561
  %v3777 = vunpack.c.l.b16 %v2562
  %v3778 = vunpack.c.h.b16 %v2562
  %v3779 = vunpack.c.l.b16 %v2563
  %v3780 = vunpack.c.h.b16 %v2563
  %v3781 = vunpack.c.l.b16 %v2564
  %v3782 = vunpack.c.h.b16 %v2564
  %v3783 = vunpack.c.l.b16 %v2565
  %v3784 = vunpack.c.h.b16 %v2565
  %v3785 = vunpack.c.l.b16 %v2566
  %v3786 = vunpack.c.h.b16 %v2566
  %v3787 = vunpack.c.l.b16 %v2567
  %v3788 = vunpack.c.h.b16 %v2567
  %v3789 = vunpack.c.l.b16 %v2568
  %v3790 = vunpack.c.h.b16 %v2568
  %v3791 = vunpack.c.l.b16 %v2569
  %v3792 = vunpack.c.h.b16 %v2569
  %v3793 = vunpack.c.l.b16 %v2570
  %v3794 = vunpack.c.h.b16 %v2570
  %v3795 = vunpack.c.l.b16 %v2571
  %v3796 = vunpack.c.h.b16 %v2571
  %v3797 = vunpack.c.l.b16 %v2572
  %v3798 = vunpack.c.h.b16 %v2572
  %v3799 = vunpack.c.l.b16 %v2573
  %v3800 = vunpack.c.h.b16 %v2573
  %v3801 = vunpack.c.l.b16 %v2574
  %v3802 = vunpack.c.h.b16 %v2574
  %v3803 = vunpack.c.l.b16 %v2575
  %v3804 = vunpack.c.h.b16 %v2575
  %v3805 = vunpack.c.l.b16 %v2576
  %v3806 = vunpack.c.h.b16 %v2576
  %v3807 = vunpack.c.l.b16 %v2577
  %v3808 = vunpack.c.h.b16 %v2577
  %v3809 = vunpack.c.l.b16 %v2578
  %v3810 = vunpack.c.h.b16 %v2578
  %v3811 = vunpack.c.l.b16 %v2579
  %v3812 = vunpack.c.h.b16 %v2579
  %v3813 = vunpack.c.l.b16 %v2580
  %v3814 = vunpack.c.h.b16 %v2580
  %v3815 = vunpack.c.l.b16 %v2581
  %v3816 = vunpack.c.h.b16 %v2581
  %v3817 = vunpack.c.l.b16 %v2582
  %v3818 = vunpack.c.h.b16 %v2582
  %v3819 = vunpack.c.l.b16 %v2583
  %v3820 = vunpack.c.h.b16 %v2583
  %v3821 = vunpack.c.l.b16 %v2584
  %v3822 = vunpack.c.h.b16 %v2584
  %v3823 = vunpack.c.l.b16 %v2585
  %v3824 = vunpack.c.h.b16 %v2585
  %v3825 = vunpack.c.l.b16 %v2586
  %v3826 = vunpack.c.h.b16 %v2586
  %v3827 = vunpack.c.l.b16 %v2587
  %v3828 = vunpack.c.h.b16 %v2587
  %v3829 = vunpack.c.l.b16 %v2588
  %v3830 = vunpack.c.h.b16 %v2588
  %v3831 = vunpack.c.l.b16 %v2589
  %v3832 = vunpack.c.h.b16 %v2589
  %v3833 = vunpack.c.l.b16 %v2590
  %v3834 = vunpack.c.h.b16 %v2590
  %v3835 = vunpack.c.l.b16 %v2591
  %v3836 = vunpack.c.h.b16 %v2591
  %v3837 = vunpack.c.l.b16 %v2592
  %v3838 = vunpack.c.h.b16 %v2592
  %v3839 = vunpack.c.l.b16 %v2593
  %v3840 = vunpack.c.h.b16 %v2593
  %v3841 = vunpack.c.l.b16 %v2594
  %v3842 = vunpack.c.h.b16 %v2594
  %v3843 = vunpack.c.l.b16 %v2595
  %v3844 = vunpack.c.h.b16 %v2595
  %v3845 = vunpack.c.l.b16 %v2596
  %v3846 = vunpack.c.h.b16 %v2596
  %v3847 = vunpack.c.l.b16 %v2597
  %v3848 = vunpack.c.h.b16 %v2597
  %v3849 = vunpack.c.l.b16 %v2598
  %v3850 = vunpack.c.h.b16 %v2598
  %v3851 = vunpack.c.l.b16 %v2599
  %v3852 = vunpack.c.h.b16 %v2599
  %v3853 = vunpack.c.l.b16 %v2600
  %v3854 = vunpack.c.h.b16 %v2600
  %v3855 = vunpack.c.l.b16 %v2601
  %v3856 = vunpack.c.h.b16 %v2601
  %v3857 = vunpack.c.l.b16 %v2602
  %v3858 = vunpack.c.h.b16 %v2602
  %v3859 = vunpack.c.l.b16 %v2603
  %v3860 = vunpack.c.h.b16 %v2603
  %v3861 = vunpack.c.l.b16 %v2604
  %v3862 = vunpack.c.h.b16 %v2604
  %v3863 = vunpack.c.l.b16 %v2605
  %v3864 = vunpack.c.h.b16 %v2605
  %v3865 = vunpack.c.l.b16 %v2606
  %v3866 = vunpack.c.h.b16 %v2606
  %v3867 = vunpack.c.l.b16 %v2607
  %v3868 = vunpack.c.h.b16 %v2607
  %v3869 = vunpack.c.l.b16 %v2608
  %v3870 = vunpack.c.h.b16 %v2608
  %v3871 = vunpack.c.l.b16 %v2609
  %v3872 = vunpack.c.h.b16 %v2609
  %v3873 = vunpack.c.l.b16 %v2610
  %v3874 = vunpack.c.h.b16 %v2610
  %v3875 = vunpack.c.l.b16 %v2611
  %v3876 = vunpack.c.h.b16 %v2611
  %v3877 = vunpack.c.l.b16 %v2612
  %v3878 = vunpack.c.h.b16 %v2612
  %v3879 = vunpack.c.l.b16 %v2613
  %v3880 = vunpack.c.h.b16 %v2613
  %v3881 = vunpack.c.l.b16 %v2614
  %v3882 = vunpack.c.h.b16 %v2614
  %v3883 = vunpack.c.l.b16 %v2615
  %v3884 = vunpack.c.h.b16 %v2615
  %v3885 = vunpack.c.l.b16 %v2616
  %v3886 = vunpack.c.h.b16 %v2616
  %v3887 = vunpack.c.l.b16 %v2617
  %v3888 = vunpack.c.h.b16 %v2617
  %v3889 = vunpack.c.l.b16 %v2618
  %v3890 = vunpack.c.h.b16 %v2618
  %v3891 = vunpack.c.l.b16 %v2619
  %v3892 = vunpack.c.h.b16 %v2619
  %v3893 = vunpack.c.l.b16 %v2620
  %v3894 = vunpack.c.h.b16 %v2620
  %v3895 = vunpack.c.l.b16 %v2621
  %v3896 = vunpack.c.h.b16 %v2621
  %v3897 = vunpack.c.l.b16 %v2622
  %v3898 = vunpack.c.h.b16 %v2622
  %v3899 = vunpack.c.l.b16 %v2623
  %v3900 = vunpack.c.h.b16 %v2623
  %v3901 = vunpack.c.l.b16 %v2624
  %v3902 = vunpack.c.h.b16 %v2624
  %v3903 = vunpack.c.l.b16 %v2625
  %v3904 = vunpack.c.h.b16 %v2625
  %v3905 = vunpack.c.l.b16 %v2626
  %v3906 = vunpack.c.h.b16 %v2626
  %v3907 = vunpack.c.l.b16 %v2627
  %v3908 = vunpack.c.h.b16 %v2627
  %v3909 = vunpack.c.l.b16 %v2628
  %v3910 = vunpack.c.h.b16 %v2628
  %v3911 = vunpack.c.l.b16 %v2629
  %v3912 = vunpack.c.h.b16 %v2629
  %v3913 = vunpack.c.l.b16 %v2630
  %v3914 = vunpack.c.h.b16 %v2630
  %v3915 = vunpack.c.l.b16 %v2631
  %v3916 = vunpack.c.h.b16 %v2631
  %v3917 = vunpack.c.l.b16 %v2632
  %v3918 = vunpack.c.h.b16 %v2632
  %v3919 = vunpack.c.l.b16 %v2633
  %v3920 = vunpack.c.h.b16 %v2633
  %v3921 = vunpack.c.l.b16 %v2634
  %v3922 = vunpack.c.h.b16 %v2634
  %v3923 = vunpack.c.l.b16 %v2635
  %v3924 = vunpack.c.h.b16 %v2635
  %v3925 = vunpack.c.l.b16 %v2636
  %v3926 = vunpack.c.h.b16 %v2636
  %v3927 = vunpack.c.l.b16 %v2637
  %v3928 = vunpack.c.h.b16 %v2637
  %v3929 = vunpack.c.l.b16 %v2638
  %v3930 = vunpack.c.h.b16 %v2638
  %v3931 = vunpack.c.l.b16 %v2639
  %v3932 = vunpack.c.h.b16 %v2639
  %v3933 = vunpack.c.l.b16 %v2640
  %v3934 = vunpack.c.h.b16 %v2640
  %v3935 = vunpack.c.l.b16 %v2641
  %v3936 = vunpack.c.h.b16 %v2641
  %v3937 = vunpack.c.l.b16 %v2642
  %v3938 = vunpack.c.h.b16 %v2642
  %v3939 = vunpack.c.l.b16 %v2643
  %v3940 = vunpack.c.h.b16 %v2643
  %v3941 = vunpack.c.l.b16 %v2644
  %v3942 = vunpack.c.h.b16 %v2644
  %v3943 = vunpack.c.l.b16 %v2645
  %v3944 = vunpack.c.h.b16 %v2645
  %v3945 = vunpack.c.l.b16 %v2646
  %v3946 = vunpack.c.h.b16 %v2646
  %v3947 = vunpack.c.l.b16 %v2647
  %v3948 = vunpack.c.h.b16 %v2647
  %v3949 = vunpack.c.l.b16 %v2648
  %v3950 = vunpack.c.h.b16 %v2648
  %v3951 = vunpack.c.l.b16 %v2649
  %v3952 = vunpack.c.h.b16 %v2649
  %v3953 = vunpack.c.l.b16 %v2650
  %v3954 = vunpack.c.h.b16 %v2650
  %v3955 = vunpack.c.l.b16 %v2651
  %v3956 = vunpack.c.h.b16 %v2651
  %v3957 = vunpack.c.l.b16 %v2652
  %v3958 = vunpack.c.h.b16 %v2652
  %v3959 = vunpack.c.l.b16 %v2653
  %v3960 = vunpack.c.h.b16 %v2653
  %v3961 = vunpack.c.l.b16 %v2654
  %v3962 = vunpack.c.h.b16 %v2654
  %v3963 = vunpack.c.l.b16 %v2655
  %v3964 = vunpack.c.h.b16 %v2655
  %v3965 = vunpack.c.l.b16 %v2656
  %v3966 = vunpack.c.h.b16 %v2656
  %v3967 = vunpack.c.l.b16 %v2657
  %v3968 = vunpack.c.h.b16 %v2657
  %v3969 = vunpack.c.l.b16 %v2658
  %v3970 = vunpack.c.h.b16 %v2658
  %v3971 = vunpack.c.l.b16 %v2659
  %v3972 = vunpack.c.h.b16 %v2659
  %v3973 = vunpack.c.l.b16 %v2660
  %v3974 = vunpack.c.h.b16 %v2660
  %v3975 = vunpack.c.l.b16 %v2661
  %v3976 = vunpack.c.h.b16 %v2661
  %v3977 = vunpack.c.l.b16 %v2662
  %v3978 = vunpack.c.h.b16 %v2662
  %v3979 = vunpack.c.l.b16 %v2663
  %v3980 = vunpack.c.h.b16 %v2663
  %v3981 = vunpack.c.l.b16 %v2664
  %v3982 = vunpack.c.h.b16 %v2664
  %v3983 = vunpack.c.l.b16 %v2665
  %v3984 = vunpack.c.h.b16 %v2665
  %v3985 = vunpack.c.l.b16 %v2666
  %v3986 = vunpack.c.h.b16 %v2666
  %v3987 = vunpack.c.l.b16 %v2667
  %v3988 = vunpack.c.h.b16 %v2667
  %v3989 = vunpack.c.l.b16 %v2668
  %v3990 = vunpack.c.h.b16 %v2668
  %v3991 = vunpack.c.l.b16 %v2669
  %v3992 = vunpack.c.h.b16 %v2669
  %v3993 = vunpack.c.l.b16 %v2670
  %v3994 = vunpack.c.h.b16 %v2670
  %v3995 = vunpack.c.l.b16 %v2671
  %v3996 = vunpack.c.h.b16 %v2671
  %v3997 = vunpack.c.l.b16 %v2672
  %v3998 = vunpack.c.h.b16 %v2672
  %v3999 = vunpack.c.l.b16 %v2673
  %v4000 = vunpack.c.h.b16 %v2673
  %v4001 = vunpack.c.l.b16 %v2674
  %v4002 = vunpack.c.h.b16 %v2674
  %v4003 = vunpack.c.l.b16 %v2675
  %v4004 = vunpack.c.h.b16 %v2675
  %v4005 = vunpack.c.l.b16 %v2676
  %v4006 = vunpack.c.h.b16 %v2676
  %v4007 = vunpack.c.l.b16 %v2677
  %v4008 = vunpack.c.h.b16 %v2677
  %v4009 = vunpack.c.l.b16 %v2678
  %v4010 = vunpack.c.h.b16 %v2678
  %v4011 = vunpack.c.l.b16 %v2679
  %v4012 = vunpack.c.h.b16 %v2679
  %v4013 = vunpack.c.l.b16 %v2680
  %v4014 = vunpack.c.h.b16 %v2680
  %v4015 = vunpack.c.l.b16 %v2681
  %v4016 = vunpack.c.h.b16 %v2681
  %v4017 = vunpack.c.l.b16 %v2682
  %v4018 = vunpack.c.h.b16 %v2682
  %v4019 = vunpack.c.l.b16 %v2683
  %v4020 = vunpack.c.h.b16 %v2683
  %v4021 = vunpack.c.l.b16 %v2684
  %v4022 = vunpack.c.h.b16 %v2684
  %v4023 = vunpack.c.l.b16 %v2685
  %v4024 = vunpack.c.h.b16 %v2685
  %v4025 = vunpack.c.l.b16 %v2686
  %v4026 = vunpack.c.h.b16 %v2686
  %v4027 = vunpack.c.l.b16 %v2687
  %v4028 = vunpack.c.h.b16 %v2687
  %v4029 = vunpack.c.l.b16 %v2688
  %v4030 = vunpack.c.h.b16 %v2688
  %v4031 = vunpack.c.l.b16 %v2689
  %v4032 = vunpack.c.h.b16 %v2689
  %v4033 = vunpack.c.l.b16 %v2690
  %v4034 = vunpack.c.h.b16 %v2690
  %v4035 = vunpack.c.l.b16 %v2691
  %v4036 = vunpack.c.h.b16 %v2691
  %v4037 = vunpack.c.l.b16 %v2692
  %v4038 = vunpack.c.h.b16 %v2692
  %v4039 = vunpack.c.l.b16 %v2693
  %v4040 = vunpack.c.h.b16 %v2693
  %v4041 = vunpack.c.l.b16 %v2694
  %v4042 = vunpack.c.h.b16 %v2694
  %v4043 = vunpack.c.l.b16 %v2695
  %v4044 = vunpack.c.h.b16 %v2695
  %v4045 = vunpack.c.l.b16 %v2696
  %v4046 = vunpack.c.h.b16 %v2696
  %v4047 = vunpack.c.l.b16 %v2697
  %v4048 = vunpack.c.h.b16 %v2697
  %v4049 = vunpack.c.l.b16 %v2698
  %v4050 = vunpack.c.h.b16 %v2698
  %v4051 = vunpack.c.l.b16 %v2699
  %v4052 = vunpack.c.h.b16 %v2699
  %v4053 = vunpack.c.l.b16 %v2700
  %v4054 = vunpack.c.h.b16 %v2700
  %v4055 = vunpack.c.l.b16 %v2701
  %v4056 = vunpack.c.h.b16 %v2701
  %v4057 = vunpack.c.l.b16 %v2702
  %v4058 = vunpack.c.h.b16 %v2702
  %v4059 = vunpack.c.l.b16 %v2703
  %v4060 = vunpack.c.h.b16 %v2703
  %v4061 = vunpack.c.l.b16 %v2704
  %v4062 = vunpack.c.h.b16 %v2704
  %v4063 = vunpack.c.l.b16 %v2705
  %v4064 = vunpack.c.h.b16 %v2705
  %v4065 = vunpack.c.l.b16 %v2706
  %v4066 = vunpack.c.h.b16 %v2706
  %v4067 = vunpack.c.l.b16 %v2707
  %v4068 = vunpack.c.h.b16 %v2707
  %v4069 = vunpack.c.l.b16 %v2708
  %v4070 = vunpack.c.h.b16 %v2708
  %v4071 = vunpack.c.l.b16 %v2709
  %v4072 = vunpack.c.h.b16 %v2709
  %v4073 = vunpack.c.l.b16 %v2710
  %v4074 = vunpack.c.h.b16 %v2710
  %v4075 = vunpack.c.l.b16 %v2711
  %v4076 = vunpack.c.h.b16 %v2711
  %v4077 = vunpack.c.l.b16 %v2712
  %v4078 = vunpack.c.h.b16 %v2712
  %v4079 = vunpack.c.l.b16 %v2713
  %v4080 = vunpack.c.h.b16 %v2713
  %v4081 = vunpack.c.l.b16 %v2714
  %v4082 = vunpack.c.h.b16 %v2714
  %v4083 = vunpack.c.l.b16 %v2715
  %v4084 = vunpack.c.h.b16 %v2715
  %v4085 = vunpack.c.l.b16 %v2716
  %v4086 = vunpack.c.h.b16 %v2716
  %v4087 = vunpack.c.l.b16 %v2717
  %v4088 = vunpack.c.h.b16 %v2717
  %v4089 = vunpack.c.l.b16 %v2718
  %v4090 = vunpack.c.h.b16 %v2718
  %v4091 = vunpack.c.l.b16 %v2719
  %v4092 = vunpack.c.h.b16 %v2719
  %v4093 = vunpack.c.l.b16 %v2720
  %v4094 = vunpack.c.h.b16 %v2720
  %v4095 = vunpack.c.l.b16 %v2721
  %v4096 = vunpack.c.h.b16 %v2721
  %v4097 = vunpack.c.l.b16 %v2722
  %v4098 = vunpack.c.h.b16 %v2722
  %v4099 = vunpack.c.l.b16 %v2723
  %v4100 = vunpack.c.h.b16 %v2723
  %v4101 = vunpack.c.l.b16 %v2724
  %v4102 = vunpack.c.h.b16 %v2724
  %v4103 = vunpack.c.l.b16 %v2725
  %v4104 = vunpack.c.h.b16 %v2725
  %v4105 = vunpack.c.l.b16 %v2726
  %v4106 = vunpack.c.h.b16 %v2726
  %v4107 = vunpack.c.l.b16 %v2727
  %v4108 = vunpack.c.h.b16 %v2727
  %v4109 = vunpack.c.l.b16 %v2728
  %v4110 = vunpack.c.h.b16 %v2728
  %v4111 = vunpack.c.l.b16 %v2729
  %v4112 = vunpack.c.h.b16 %v2729
  %v4113 = vunpack.c.l.b16 %v2730
  %v4114 = vunpack.c.h.b16 %v2730
  %v4115 = vunpack.c.l.b16 %v2731
  %v4116 = vunpack.c.h.b16 %v2731
  %v4117 = vunpack.c.l.b16 %v2732
  %v4118 = vunpack.c.h.b16 %v2732
  %v4119 = vunpack.c.l.b16 %v2733
  %v4120 = vunpack.c.h.b16 %v2733
  %v4121 = vunpack.c.l.b16 %v2734
  %v4122 = vunpack.c.h.b16 %v2734
  %v4123 = vunpack.c.l.b16 %v2735
  %v4124 = vunpack.c.h.b16 %v2735
  %v4125 = vunpack.c.l.b16 %v2736
  %v4126 = vunpack.c.h.b16 %v2736
  %v4127 = vunpack.c.l.b16 %v2737
  %v4128 = vunpack.c.h.b16 %v2737
  %v4129 = vunpack.c.l.b16 %v2738
  %v4130 = vunpack.c.h.b16 %v2738
  %v4131 = vunpack.c.l.b16 %v2739
  %v4132 = vunpack.c.h.b16 %v2739
  %v4133 = vunpack.c.l.b16 %v2740
  %v4134 = vunpack.c.h.b16 %v2740
  %v4135 = vunpack.c.l.b16 %v2741
  %v4136 = vunpack.c.h.b16 %v2741
  %v4137 = vunpack.c.l.b16 %v2742
  %v4138 = vunpack.c.h.b16 %v2742
  %v4139 = vunpack.c.l.b16 %v2743
  %v4140 = vunpack.c.h.b16 %v2743
  %v4141 = vunpack.c.l.b16 %v2744
  %v4142 = vunpack.c.h.b16 %v2744
  %v4143 = vunpack.c.l.b16 %v2745
  %v4144 = vunpack.c.h.b16 %v2745
  %v4145 = vunpack.c.l.b16 %v2746
  %v4146 = vunpack.c.h.b16 %v2746
  %v4147 = vunpack.c.l.b16 %v2747
  %v4148 = vunpack.c.h.b16 %v2747
  %v4149 = vunpack.c.l.b16 %v2748
  %v4150 = vunpack.c.h.b16 %v2748
  %v4151 = vunpack.c.l.b16 %v2749
  %v4152 = vunpack.c.h.b16 %v2749
  %v4153 = vunpack.c.l.b16 %v2750
  %v4154 = vunpack.c.h.b16 %v2750
  %v4155 = vunpack.c.l.b16 %v2751
  %v4156 = vunpack.c.h.b16 %v2751
  %v4157 = vunpack.c.l.b16 %v2752
  %v4158 = vunpack.c.h.b16 %v2752
  %v4159 = vunpack.c.l.b16 %v2753
  %v4160 = vunpack.c.h.b16 %v2753
  %v4161 = vunpack.c.l.b16 %v2754
  %v4162 = vunpack.c.h.b16 %v2754
  %v4163 = vunpack.c.l.b16 %v2755
  %v4164 = vunpack.c.h.b16 %v2755
  %v4165 = vunpack.c.l.b16 %v2756
  %v4166 = vunpack.c.h.b16 %v2756
  %v4167 = vunpack.c.l.b16 %v2757
  %v4168 = vunpack.c.h.b16 %v2757
  %v4169 = vunpack.c.l.b16 %v2758
  %v4170 = vunpack.c.h.b16 %v2758
  %v4171 = vunpack.c.l.b16 %v2759
  %v4172 = vunpack.c.h.b16 %v2759
  %v4173 = vunpack.c.l.b16 %v2760
  %v4174 = vunpack.c.h.b16 %v2760
  %v4175 = vunpack.c.l.b16 %v2761
  %v4176 = vunpack.c.h.b16 %v2761
  %v4177 = vunpack.c.l.b16 %v2762
  %v4178 = vunpack.c.h.b16 %v2762
  %v4179 = vunpack.c.l.b16 %v2763
  %v4180 = vunpack.c.h.b16 %v2763
  %v4181 = vunpack.c.l.b16 %v2764
  %v4182 = vunpack.c.h.b16 %v2764
  %v4183 = vunpack.c.l.b16 %v2765
  %v4184 = vunpack.c.h.b16 %v2765
  %v4185 = vunpack.c.l.b16 %v2766
  %v4186 = vunpack.c.h.b16 %v2766
  %v4187 = vunpack.c.l.b16 %v2767
  %v4188 = vunpack.c.h.b16 %v2767
  %v4189 = vunpack.c.l.b16 %v2768
  %v4190 = vunpack.c.h.b16 %v2768
  %v4191 = vunpack.c.l.b16 %v2769
  %v4192 = vunpack.c.h.b16 %v2769
  %v4193 = vunpack.c.l.b16 %v2770
  %v4194 = vunpack.c.h.b16 %v2770
  %v4195 = vunpack.c.l.b16 %v2771
  %v4196 = vunpack.c.h.b16 %v2771
  %v4197 = vunpack.c.l.b16 %v2772
  %v4198 = vunpack.c.h.b16 %v2772
  %v4199 = vunpack.c.l.b16 %v2773
  %v4200 = vunpack.c.h.b16 %v2773
  %v4201 = vunpack.c.l.b16 %v2774
  %v4202 = vunpack.c.h.b16 %v2774
  %v4203 = vunpack.c.l.b16 %v2775
  %v4204 = vunpack.c.h.b16 %v2775
  %v4205 = vunpack.c.l.b16 %v2776
  %v4206 = vunpack.c.h.b16 %v2776
  %v4207 = vunpack.c.l.b16 %v2777
  %v4208 = vunpack.c.h.b16 %v2777
  %v4209 = vunpack.c.l.b16 %v2778
  %v4210 = vunpack.c.h.b16 %v2778
  %v4211 = vunpack.c.l.b16 %v2779
  %v4212 = vunpack.c.h.b16 %v2779
  %v4213 = vunpack.c.l.b16 %v2780
  %v4214 = vunpack.c.h.b16 %v2780
  %v4215 = vunpack.c.l.b16 %v2781
  %v4216 = vunpack.c.h.b16 %v2781
  %v4217 = vunpack.c.l.b16 %v2782
  %v4218 = vunpack.c.h.b16 %v2782
  %v4219 = vunpack.c.l.b16 %v2783
  %v4220 = vunpack.c.h.b16 %v2783
  %v4221 = vunpack.c.l.b16 %v2784
  %v4222 = vunpack.c.h.b16 %v2784
  %v4223 = vunpack.c.l.b16 %v2785
  %v4224 = vunpack.c.h.b16 %v2785
  %v4225 = vunpack.c.l.b16 %v2786
  %v4226 = vunpack.c.h.b16 %v2786
  %v4227 = vunpack.c.l.b16 %v2787
  %v4228 = vunpack.c.h.b16 %v2787
  %v4229 = vunpack.c.l.b16 %v2788
  %v4230 = vunpack.c.h.b16 %v2788
  %v4231 = vunpack.c.l.b16 %v2789
  %v4232 = vunpack.c.h.b16 %v2789
  %v4233 = vunpack.c.l.b16 %v2790
  %v4234 = vunpack.c.h.b16 %v2790
  %v4235 = vunpack.c.l.b16 %v2791
  %v4236 = vunpack.c.h.b16 %v2791
  %v4237 = vunpack.c.l.b16 %v2792
  %v4238 = vunpack.c.h.b16 %v2792
  %v4239 = vunpack.c.l.b16 %v2793
  %v4240 = vunpack.c.h.b16 %v2793
  %v4241 = vunpack.c.l.b16 %v2794
  %v4242 = vunpack.c.h.b16 %v2794
  %v4243 = vunpack.c.l.b16 %v2795
  %v4244 = vunpack.c.h.b16 %v2795
  %v4245 = vunpack.c.l.b16 %v2796
  %v4246 = vunpack.c.h.b16 %v2796
  %v4247 = vunpack.c.l.b16 %v2797
  %v4248 = vunpack.c.h.b16 %v2797
  %v4249 = vunpack.c.l.b16 %v2798
  %v4250 = vunpack.c.h.b16 %v2798
  %v4251 = vunpack.c.l.b16 %v2799
  %v4252 = vunpack.c.h.b16 %v2799
  %v4253 = vunpack.c.l.b16 %v2800
  %v4254 = vunpack.c.h.b16 %v2800
  %v4255 = vunpack.c.l.b16 %v2801
  %v4256 = vunpack.c.h.b16 %v2801
  %v4257 = vunpack.c.l.b16 %v2802
  %v4258 = vunpack.c.h.b16 %v2802
  %v4259 = vunpack.c.l.b16 %v2803
  %v4260 = vunpack.c.h.b16 %v2803
  %v4261 = vunpack.c.l.b16 %v2804
  %v4262 = vunpack.c.h.b16 %v2804
  %v4263 = vunpack.c.l.b16 %v2805
  %v4264 = vunpack.c.h.b16 %v2805
  %v4265 = vunpack.c.l.b16 %v2806
  %v4266 = vunpack.c.h.b16 %v2806
  %v4267 = vunpack.c.l.b16 %v2807
  %v4268 = vunpack.c.h.b16 %v2807
  %v4269 = vunpack.c.l.b16 %v2808
  %v4270 = vunpack.c.h.b16 %v2808
  %v4271 = vunpack.c.l.b16 %v2809
  %v4272 = vunpack.c.h.b16 %v2809
  %v4273 = vunpack.c.l.b16 %v2810
  %v4274 = vunpack.c.h.b16 %v2810
  %v4275 = vunpack.c.l.b16 %v2811
  %v4276 = vunpack.c.h.b16 %v2811
  %v4277 = vunpack.c.l.b16 %v2812
  %v4278 = vunpack.c.h.b16 %v2812
  %v4279 = vunpack.c.l.b16 %v2813
  %v4280 = vunpack.c.h.b16 %v2813
  %v4281 = vunpack.c.l.b16 %v2814
  %v4282 = vunpack.c.h.b16 %v2814
  %v4283 = vunpack.c.l.b16 %v2815
  %v4284 = vunpack.c.h.b16 %v2815
  %v4285 = vunpack.c.l.b16 %v2816
  %v4286 = vunpack.c.h.b16 %v2816
  %v4287 = vunpack.c.l.b16 %v2817
  %v4288 = vunpack.c.h.b16 %v2817
  %v4289 = vunpack.c.l.b16 %v2818
  %v4290 = vunpack.c.h.b16 %v2818
  %v4291 = vunpack.c.l.b16 %v2819
  %v4292 = vunpack.c.h.b16 %v2819
  %v4293 = vunpack.c.l.b16 %v2820
  %v4294 = vunpack.c.h.b16 %v2820
  %v4295 = vunpack.c.l.b16 %v2821
  %v4296 = vunpack.c.h.b16 %v2821
  %v4297 = vunpack.c.l.b16 %v2822
  %v4298 = vunpack.c.h.b16 %v2822
  %v4299 = vunpack.c.l.b16 %v2823
  %v4300 = vunpack.c.h.b16 %v2823
  %v4301 = vunpack.c.l.b16 %v2824
  %v4302 = vunpack.c.h.b16 %v2824
  %v4303 = vunpack.c.l.b16 %v2825
  %v4304 = vunpack.c.h.b16 %v2825
  %v4305 = vunpack.c.l.b16 %v2826
  %v4306 = vunpack.c.h.b16 %v2826
  %v4307 = vunpack.c.l.b16 %v2827
  %v4308 = vunpack.c.h.b16 %v2827
  %v4309 = vunpack.c.l.b16 %v2828
  %v4310 = vunpack.c.h.b16 %v2828
  %v4311 = vunpack.c.l.b16 %v2829
  %v4312 = vunpack.c.h.b16 %v2829
  %v4313 = vunpack.c.l.b16 %v2830
  %v4314 = vunpack.c.h.b16 %v2830
  %v4315 = vunpack.c.l.b16 %v2831
  %v4316 = vunpack.c.h.b16 %v2831
  %v4317 = vunpack.c.l.b16 %v2832
  %v4318 = vunpack.c.h.b16 %v2832
  %v4319 = vunpack.c.l.b16 %v2833
  %v4320 = vunpack.c.h.b16 %v2833
  %v4321 = vunpack.c.l.b16 %v2834
  %v4322 = vunpack.c.h.b16 %v2834
  %v4323 = vunpack.c.l.b16 %v2835
  %v4324 = vunpack.c.h.b16 %v2835
  %v4325 = vunpack.c.l.b16 %v2836
  %v4326 = vunpack.c.h.b16 %v2836
  %v4327 = vunpack.c.l.b16 %v2837
  %v4328 = vunpack.c.h.b16 %v2837
  %v4329 = vunpack.c.l.b16 %v2838
  %v4330 = vunpack.c.h.b16 %v2838
  %v4331 = vunpack.c.l.b16 %v2839
  %v4332 = vunpack.c.h.b16 %v2839
  %v4333 = vunpack.c.l.b16 %v2840
  %v4334 = vunpack.c.h.b16 %v2840
  %v4335 = vunpack.c.l.b16 %v2841
  %v4336 = vunpack.c.h.b16 %v2841
  %v4337 = vunpack.c.l.b16 %v2842
  %v4338 = vunpack.c.h.b16 %v2842
  %v4339 = vunpack.c.l.b16 %v2843
  %v4340 = vunpack.c.h.b16 %v2843
  %v4341 = vunpack.c.l.b16 %v2844
  %v4342 = vunpack.c.h.b16 %v2844
  %v4343 = vunpack.c.l.b16 %v2845
  %v4344 = vunpack.c.h.b16 %v2845
  %v4345 = vunpack.c.l.b16 %v2846
  %v4346 = vunpack.c.h.b16 %v2846
  %v4347 = vunpack.c.l.b16 %v2847
  %v4348 = vunpack.c.h.b16 %v2847
  %v4349 = vunpack.c.l.b16 %v2848
  %v4350 = vunpack.c.h.b16 %v2848
  %v4351 = vunpack.c.l.b16 %v2849
  %v4352 = vunpack.c.h.b16 %v2849
  %v4353 = vunpack.c.l.b16 %v2850
  %v4354 = vunpack.c.h.b16 %v2850
  %v4355 = vunpack.c.l.b16 %v2851
  %v4356 = vunpack.c.h.b16 %v2851
  %v4357 = vunpack.c.l.b16 %v2852
  %v4358 = vunpack.c.h.b16 %v2852
  %v4359 = vunpack.c.l.b16 %v2853
  %v4360 = vunpack.c.h.b16 %v2853
  %v4361 = vunpack.c.l.b16 %v2854
  %v4362 = vunpack.c.h.b16 %v2854
  %v4363 = vunpack.c.l.b16 %v2855
  %v4364 = vunpack.c.h.b16 %v2855
  %v4365 = vunpack.c.l.b16 %v2856
  %v4366 = vunpack.c.h.b16 %v2856
  %v4367 = vunpack.c.l.b16 %v2857
  %v4368 = vunpack.c.h.b16 %v2857
  %v4369 = vunpack.c.l.b16 %v2858
  %v4370 = vunpack.c.h.b16 %v2858
  %v4371 = vunpack.c.l.b16 %v2859
  %v4372 = vunpack.c.h.b16 %v2859
  %v4373 = vunpack.c.l.b16 %v2860
  %v4374 = vunpack.c.h.b16 %v2860
  %v4375 = vunpack.c.l.b16 %v2861
  %v4376 = vunpack.c.h.b16 %v2861
  %v4377 = vunpack.c.l.b16 %v2862
  %v4378 = vunpack.c.h.b16 %v2862
  %v4379 = vunpack.c.l.b16 %v2863
  %v4380 = vunpack.c.h.b16 %v2863
  %v4381 = vunpack.c.l.b16 %v2864
  %v4382 = vunpack.c.h.b16 %v2864
  %v4383 = vunpack.c.l.b16 %v2865
  %v4384 = vunpack.c.h.b16 %v2865
  %v4385 = vunpack.c.l.b16 %v2866
  %v4386 = vunpack.c.h.b16 %v2866
  %v4387 = vunpack.c.l.b16 %v2867
  %v4388 = vunpack.c.h.b16 %v2867
  %v4389 = vunpack.c.l.b16 %v2868
  %v4390 = vunpack.c.h.b16 %v2868
  %v4391 = vunpack.c.l.b16 %v2869
  %v4392 = vunpack.c.h.b16 %v2869
  %v4393 = vunpack.c.l.b16 %v2870
  %v4394 = vunpack.c.h.b16 %v2870
  %v4395 = vunpack.c.l.b16 %v2871
  %v4396 = vunpack.c.h.b16 %v2871
  %v4397 = vunpack.c.l.b16 %v2872
  %v4398 = vunpack.c.h.b16 %v2872
  %v4399 = vunpack.c.l.b16 %v2873
  %v4400 = vunpack.c.h.b16 %v2873
  %v4401 = vunpack.c.l.b16 %v2874
  %v4402 = vunpack.c.h.b16 %v2874
  %v4403 = vunpack.c.l.b16 %v2875
  %v4404 = vunpack.c.h.b16 %v2875
  %v4405 = vunpack.c.l.b16 %v2876
  %v4406 = vunpack.c.h.b16 %v2876
  %v4407 = vunpack.c.l.b16 %v2877
  %v4408 = vunpack.c.h.b16 %v2877
  %v4409 = vunpack.c.l.b16 %v2878
  %v4410 = vunpack.c.h.b16 %v2878
  %v4411 = vunpack.c.l.b16 %v2879
  %v4412 = vunpack.c.h.b16 %v2879
  %v4413 = vunpack.c.l.b16 %v2880
  %v4414 = vunpack.c.h.b16 %v2880
  %v4415 = vunpack.c.l.b16 %v2881
  %v4416 = vunpack.c.h.b16 %v2881
  %v4417 = vunpack.c.l.b16 %v2882
  %v4418 = vunpack.c.h.b16 %v2882
  %v4419 = vunpack.c.l.b16 %v2883
  %v4420 = vunpack.c.h.b16 %v2883
  %v4421 = vunpack.c.l.b16 %v2884
  %v4422 = vunpack.c.h.b16 %v2884
  %v4423 = vunpack.c.l.b16 %v2885
  %v4424 = vunpack.c.h.b16 %v2885
  %v4425 = vunpack.c.l.b16 %v2886
  %v4426 = vunpack.c.h.b16 %v2886
  %v4427 = vunpack.c.l.b16 %v2887
  %v4428 = vunpack.c.h.b16 %v2887
  %v4429 = vunpack.c.l.b16 %v2888
  %v4430 = vunpack.c.h.b16 %v2888
  %v4431 = vunpack.c.l.b16 %v2889
  %v4432 = vunpack.c.h.b16 %v2889
  %v4433 = vunpack.c.l.b16 %v2890
  %v4434 = vunpack.c.h.b16 %v2890
  %v4435 = vunpack.c.l.b16 %v2891
  %v4436 = vunpack.c.h.b16 %v2891
  %v4437 = vunpack.c.l.b16 %v2892
  %v4438 = vunpack.c.h.b16 %v2892
  %v4439 = vunpack.c.l.b16 %v2893
  %v4440 = vunpack.c.h.b16 %v2893
  %v4441 = vunpack.c.l.b16 %v2894
  %v4442 = vunpack.c.h.b16 %v2894
  %v4443 = vunpack.c.l.b16 %v2895
  %v4444 = vunpack.c.h.b16 %v2895
  %v4445 = vunpack.c.l.b16 %v2896
  %v4446 = vunpack.c.h.b16 %v2896
  %v4447 = vunpack.c.l.b16 %v2897
  %v4448 = vunpack.c.h.b16 %v2897
  %v4449 = vunpack.c.l.b16 %v2898
  %v4450 = vunpack.c.h.b16 %v2898
  %v4451 = vunpack.c.l.b16 %v2899
  %v4452 = vunpack.c.h.b16 %v2899
  %v4453 = vunpack.c.l.b16 %v2900
  %v4454 = vunpack.c.h.b16 %v2900
  %v4455 = vunpack.c.l.b16 %v2901
  %v4456 = vunpack.c.h.b16 %v2901
  %v4457 = vunpack.c.l.b16 %v2902
  %v4458 = vunpack.c.h.b16 %v2902
  %v4459 = vunpack.c.l.b16 %v2903
  %v4460 = vunpack.c.h.b16 %v2903
  %v4461 = vunpack.c.l.b16 %v2904
  %v4462 = vunpack.c.h.b16 %v2904
  %v4463 = vunpack.c.l.b16 %v2905
  %v4464 = vunpack.c.h.b16 %v2905
  %v4465 = vunpack.c.l.b16 %v2906
  %v4466 = vunpack.c.h.b16 %v2906
  %v4467 = vunpack.c.l.b16 %v2907
  %v4468 = vunpack.c.h.b16 %v2907
  %v4469 = vunpack.c.l.b16 %v2908
  %v4470 = vunpack.c.h.b16 %v2908
  %v4471 = vunpack.c.l.b16 %v2909
  %v4472 = vunpack.c.h.b16 %v2909
  %v4473 = vunpack.c.l.b16 %v2910
  %v4474 = vunpack.c.h.b16 %v2910
  %v4475 = vunpack.c.l.b16 %v2911
  %v4476 = vunpack.c.h.b16 %v2911
  %v4477 = vunpack.c.l.b16 %v2912
  %v4478 = vunpack.c.h.b16 %v2912
  %v4479 = vunpack.c.l.b16 %v2913
  %v4480 = vunpack.c.h.b16 %v2913
  %v4481 = vunpack.c.l.b16 %v2914
  %v4482 = vunpack.c.h.b16 %v2914
  %v4483 = vunpack.c.l.b16 %v2915
  %v4484 = vunpack.c.h.b16 %v2915
  %v4485 = vunpack.c.l.b16 %v2916
  %v4486 = vunpack.c.h.b16 %v2916
  %v4487 = vunpack.c.l.b16 %v2917
  %v4488 = vunpack.c.h.b16 %v2917
  %v4489 = vunpack.c.l.b16 %v2918
  %v4490 = vunpack.c.h.b16 %v2918
  %v4491 = vunpack.c.l.b16 %v2919
  %v4492 = vunpack.c.h.b16 %v2919
  %v4493 = vunpack.c.l.b16 %v2920
  %v4494 = vunpack.c.h.b16 %v2920
  %v4495 = vunpack.c.l.b16 %v2921
  %v4496 = vunpack.c.h.b16 %v2921
  %v4497 = vunpack.c.l.b16 %v2922
  %v4498 = vunpack.c.h.b16 %v2922
  %v4499 = vunpack.c.l.b16 %v2923
  %v4500 = vunpack.c.h.b16 %v2923
  %v4501 = vunpack.c.l.b16 %v2924
  %v4502 = vunpack.c.h.b16 %v2924
  %v4503 = vpack.c.b16 %v3487, %v3479
  %v4504 = vpack.c.b16 %v3488, %v3480
  %v4505 = vpack.c.b16 %v3489, %v3481
  %v4506 = vpack.c.b16 %v3490, %v3482
  %v4507 = vpack.c.b16 %v3491, %v3483
  %v4508 = vpack.c.b16 %v3492, %v3484
  %v4509 = vpack.c.b16 %v3493, %v3485
  %v4510 = vpack.c.b16 %v3494, %v3486
  %v4511 = vpack.c.b16 %v3503, %v3495
  %v4512 = vpack.c.b16 %v3504, %v3496
  %v4513 = vpack.c.b16 %v3505, %v3497
  %v4514 = vpack.c.b16 %v3506, %v3498
  %v4515 = vpack.c.b16 %v3507, %v3499
  %v4516 = vpack.c.b16 %v3508, %v3500
  %v4517 = vpack.c.b16 %v3509, %v3501
  %v4518 = vpack.c.b16 %v3510, %v3502
  %v4519 = vpack.c.b16 %v3519, %v3511
  %v4520 = vpack.c.b16 %v3520, %v3512
  %v4521 = vpack.c.b16 %v3521, %v3513
  %v4522 = vpack.c.b16 %v3522, %v3514
  %v4523 = vpack.c.b16 %v3523, %v3515
  %v4524 = vpack.c.b16 %v3524, %v3516
  %v4525 = vpack.c.b16 %v3525, %v3517
  %v4526 = vpack.c.b16 %v3526, %v3518
  %v4527 = vpack.c.b16 %v3535, %v3527
  %v4528 = vpack.c.b16 %v3536, %v3528
  %v4529 = vpack.c.b16 %v3537, %v3529
  %v4530 = vpack.c.b16 %v3538, %v3530
  %v4531 = vpack.c.b16 %v3539, %v3531
  %v4532 = vpack.c.b16 %v3540, %v3532
  %v4533 = vpack.c.b16 %v3541, %v3533
  %v4534 = vpack.c.b16 %v3542, %v3534
  %v4535 = vpack.c.b16 %v3551, %v3543
  %v4536 = vpack.c.b16 %v3552, %v3544
  %v4537 = vpack.c.b16 %v3553, %v3545
  %v4538 = vpack.c.b16 %v3554, %v3546
  %v4539 = vpack.c.b16 %v3555, %v3547
  %v4540 = vpack.c.b16 %v3556, %v3548
  %v4541 = vpack.c.b16 %v3557, %v3549
  %v4542 = vpack.c.b16 %v3558, %v3550
  %v4543 = vpack.c.b16 %v3567, %v3559
  %v4544 = vpack.c.b16 %v3568, %v3560
  %v4545 = vpack.c.b16 %v3569, %v3561
  %v4546 = vpack.c.b16 %v3570, %v3562
  %v4547 = vpack.c.b16 %v3571, %v3563
  %v4548 = vpack.c.b16 %v3572, %v3564
  %v4549 = vpack.c.b16 %v3573, %v3565
  %v4550 = vpack.c.b16 %v3574, %v3566
  %v4551 = vpack.c.b16 %v3583, %v3575
  %v4552 = vpack.c.b16 %v3584, %v3576
  %v4553 = vpack.c.b16 %v3585, %v3577
  %v4554 = vpack.c.b16 %v3586, %v3578
  %v4555 = vpack.c.b16 %v3587, %v3579
  %v4556 = vpack.c.b16 %v3588, %v3580
  %v4557 = vpack.c.b16 %v3589, %v3581
  %v4558 = vpack.c.b16 %v3590, %v3582
  %v4559 = vpack.c.b16 %v3599, %v3591
  %v4560 = vpack.c.b16 %v3600, %v3592
  %v4561 = vpack.c.b16 %v3601, %v3593
  %v4562 = vpack.c.b16 %v3602, %v3594
  %v4563 = vpack.c.b16 %v3603, %v3595
  %v4564 = vpack.c.b16 %v3604, %v3596
  %v4565 = vpack.c.b16 %v3605, %v3597
  %v4566 = vpack.c.b16 %v3606, %v3598
  %v4567 = vpack.c.b16 %v3615, %v3607
  %v4568 = vpack.c.b16 %v3616, %v3608
  %v4569 = vpack.c.b16 %v3617, %v3609
  %v4570 = vpack.c.b16 %v3618, %v3610
  %v4571 = vpack.c.b16 %v3619, %v3611
  %v4572 = vpack.c.b16 %v3620, %v3612
  %v4573 = vpack.c.b16 %v3621, %v3613
  %v4574 = vpack.c.b16 %v3622, %v3614
  %v4575 = vpack.c.b16 %v3631, %v3623
  %v4576 = vpack.c.b16 %v3632, %v3624
  %v4577 = vpack.c.b16 %v3633, %v3625
  %v4578 = vpack.c.b16 %v3634, %v3626
  %v4579 = vpack.c.b16 %v3635, %v3627
  %v4580 = vpack.c.b16 %v3636, %v3628
  %v4581 = vpack.c.b16 %v3637, %v3629
  %v4582 = vpack.c.b16 %v3638, %v3630
  %v4583 = vpack.c.b16 %v3647, %v3639
  %v4584 = vpack.c.b16 %v3648, %v3640
  %v4585 = vpack.c.b16 %v3649, %v3641
  %v4586 = vpack.c.b16 %v3650, %v3642
  %v4587 = vpack.c.b16 %v3651, %v3643
  %v4588 = vpack.c.b16 %v3652, %v3644
  %v4589 = vpack.c.b16 %v3653, %v3645
  %v4590 = vpack.c.b16 %v3654, %v3646
  %v4591 = vpack.c.b16 %v3663, %v3655
  %v4592 = vpack.c.b16 %v3664, %v3656
  %v4593 = vpack.c.b16 %v3665, %v3657
  %v4594 = vpack.c.b16 %v3666, %v3658
  %v4595 = vpack.c.b16 %v3667, %v3659
  %v4596 = vpack.c.b16 %v3668, %v3660
  %v4597 = vpack.c.b16 %v3669, %v3661
  %v4598 = vpack.c.b16 %v3670, %v3662
  %v4599 = vpack.c.b16 %v3679, %v3671
  %v4600 = vpack.c.b16 %v3680, %v3672
  %v4601 = vpack.c.b16 %v3681, %v3673
  %v4602 = vpack.c.b16 %v3682, %v3674
  %v4603 = vpack.c.b16 %v3683, %v3675
  %v4604 = vpack.c.b16 %v3684, %v3676
  %v4605 = vpack.c.b16 %v3685, %v3677
  %v4606 = vpack.c.b16 %v3686, %v3678
  %v4607 = vpack.c.b16 %v3695, %v3687
  %v4608 = vpack.c.b16 %v3696, %v3688
  %v4609 = vpack.c.b16 %v3697, %v3689
  %v4610 = vpack.c.b16 %v3698, %v3690
  %v4611 = vpack.c.b16 %v3699, %v3691
  %v4612 = vpack.c.b16 %v3700, %v3692
  %v4613 = vpack.c.b16 %v3701, %v3693
  %v4614 = vpack.c.b16 %v3702, %v3694
  %v4615 = vpack.c.b16 %v3711, %v3703
  %v4616 = vpack.c.b16 %v3712, %v3704
  %v4617 = vpack.c.b16 %v3713, %v3705
  %v4618 = vpack.c.b16 %v3714, %v3706
  %v4619 = vpack.c.b16 %v3715, %v3707
  %v4620 = vpack.c.b16 %v3716, %v3708
  %v4621 = vpack.c.b16 %v3717, %v3709
  %v4622 = vpack.c.b16 %v3718, %v3710
  %v4623 = vpack.c.b16 %v3727, %v3719
  %v4624 = vpack.c.b16 %v3728, %v3720
  %v4625 = vpack.c.b16 %v3729, %v3721
  %v4626 = vpack.c.b16 %v3730, %v3722
  %v4627 = vpack.c.b16 %v3731, %v3723
  %v4628 = vpack.c.b16 %v3732, %v3724
  %v4629 = vpack.c.b16 %v3733, %v3725
  %v4630 = vpack.c.b16 %v3734, %v3726
  %v4631 = vpack.c.b16 %v3743, %v3735
  %v4632 = vpack.c.b16 %v3744, %v3736
  %v4633 = vpack.c.b16 %v3745, %v3737
  %v4634 = vpack.c.b16 %v3746, %v3738
  %v4635 = vpack.c.b16 %v3747, %v3739
  %v4636 = vpack.c.b16 %v3748, %v3740
  %v4637 = vpack.c.b16 %v3749, %v3741
  %v4638 = vpack.c.b16 %v3750, %v3742
  %v4639 = vpack.c.b16 %v3759, %v3751
  %v4640 = vpack.c.b16 %v3760, %v3752
  %v4641 = vpack.c.b16 %v3761, %v3753
  %v4642 = vpack.c.b16 %v3762, %v3754
  %v4643 = vpack.c.b16 %v3763, %v3755
  %v4644 = vpack.c.b16 %v3764, %v3756
  %v4645 = vpack.c.b16 %v3765, %v3757
  %v4646 = vpack.c.b16 %v3766, %v3758
  %v4647 = vpack.c.b16 %v3775, %v3767
  %v4648 = vpack.c.b16 %v3776, %v3768
  %v4649 = vpack.c.b16 %v3777, %v3769
  %v4650 = vpack.c.b16 %v3778, %v3770
  %v4651 = vpack.c.b16 %v3779, %v3771
  %v4652 = vpack.c.b16 %v3780, %v3772
  %v4653 = vpack.c.b16 %v3781, %v3773
  %v4654 = vpack.c.b16 %v3782, %v3774
  %v4655 = vpack.c.b16 %v3791, %v3783
  %v4656 = vpack.c.b16 %v3792, %v3784
  %v4657 = vpack.c.b16 %v3793, %v3785
  %v4658 = vpack.c.b16 %v3794, %v3786
  %v4659 = vpack.c.b16 %v3795, %v3787
  %v4660 = vpack.c.b16 %v3796, %v3788
  %v4661 = vpack.c.b16 %v3797, %v3789
  %v4662 = vpack.c.b16 %v3798, %v3790
  %v4663 = vpack.c.b16 %v3807, %v3799
  %v4664 = vpack.c.b16 %v3808, %v3800
  %v4665 = vpack.c.b16 %v3809, %v3801
  %v4666 = vpack.c.b16 %v3810, %v3802
  %v4667 = vpack.c.b16 %v3811, %v3803
  %v4668 = vpack.c.b16 %v3812, %v3804
  %v4669 = vpack.c.b16 %v3813, %v3805
  %v4670 = vpack.c.b16 %v3814, %v3806
  %v4671 = vpack.c.b16 %v3823, %v3815
  %v4672 = vpack.c.b16 %v3824, %v3816
  %v4673 = vpack.c.b16 %v3825, %v3817
  %v4674 = vpack.c.b16 %v3826, %v3818
  %v4675 = vpack.c.b16 %v3827, %v3819
  %v4676 = vpack.c.b16 %v3828, %v3820
  %v4677 = vpack.c.b16 %v3829, %v3821
  %v4678 = vpack.c.b16 %v3830, %v3822
  %v4679 = vpack.c.b16 %v3839, %v3831
  %v4680 = vpack.c.b16 %v3840, %v3832
  %v4681 = vpack.c.b16 %v3841, %v3833
  %v4682 = vpack.c.b16 %v3842, %v3834
  %v4683 = vpack.c.b16 %v3843, %v3835
  %v4684 = vpack.c.b16 %v3844, %v3836
  %v4685 = vpack.c.b16 %v3845, %v3837
  %v4686 = vpack.c.b16 %v3846, %v3838
  %v4687 = vpack.c.b16 %v3855, %v3847
  %v4688 = vpack.c.b16 %v3856, %v3848
  %v4689 = vpack.c.b16 %v3857, %v3849
  %v4690 = vpack.c.b16 %v3858, %v3850
  %v4691 = vpack.c.b16 %v3859, %v3851
  %v4692 = vpack.c.b16 %v3860, %v3852
  %v4693 = vpack.c.b16 %v3861, %v3853
  %v4694 = vpack.c.b16 %v3862, %v3854
  %v4695 = vpack.c.b16 %v3871, %v3863
  %v4696 = vpack.c.b16 %v3872, %v3864
  %v4697 = vpack.c.b16 %v3873, %v3865
  %v4698 = vpack.c.b16 %v3874, %v3866
  %v4699 = vpack.c.b16 %v3875, %v3867
  %v4700 = vpack.c.b16 %v3876, %v3868
  %v4701 = vpack.c.b16 %v3877, %v3869
  %v4702 = vpack.c.b16 %v3878, %v3870
  %v4703 = vpack.c.b16 %v3887, %v3879
  %v4704 = vpack.c.b16 %v3888, %v3880
  %v4705 = vpack.c.b16 %v3889, %v3881
  %v4706 = vpack.c.b16 %v3890, %v3882
  %v4707 = vpack.c.b16 %v3891, %v3883
  %v4708 = vpack.c.b16 %v3892, %v3884
  %v4709 = vpack.c.b16 %v3893, %v3885
  %v4710 = vpack.c.b16 %v3894, %v3886
  %v4711 = vpack.c.b16 %v3903, %v3895
  %v4712 = vpack.c.b16 %v3904, %v3896
  %v4713 = vpack.c.b16 %v3905, %v3897
  %v4714 = vpack.c.b16 %v3906, %v3898
  %v4715 = vpack.c.b16 %v3907, %v3899
  %v4716 = vpack.c.b16 %v3908, %v3900
  %v4717 = vpack.c.b16 %v3909, %v3901
  %v4718 = vpack.c.b16 %v3910, %v3902
  %v4719 = vpack.c.b16 %v3919, %v3911
  %v4720 = vpack.c.b16 %v3920, %v3912
  %v4721 = vpack.c.b16 %v3921, %v3913
  %v4722 = vpack.c.b16 %v3922, %v3914
  %v4723 = vpack.c.b16 %v3923, %v3915
  %v4724 = vpack.c.b16 %v3924, %v3916
  %v4725 = vpack.c.b16 %v3925, %v3917
  %v4726 = vpack.c.b16 %v3926, %v3918
  %v4727 = vpack.c.b16 %v3935, %v3927
  %v4728 = vpack.c.b16 %v3936, %v3928
  %v4729 = vpack.c.b16 %v3937, %v3929
  %v4730 = vpack.c.b16 %v3938, %v3930
  %v4731 = vpack.c.b16 %v3939, %v3931
  %v4732 = vpack.c.b16 %v3940, %v3932
  %v4733 = vpack.c.b16 %v3941, %v3933
  %v4734 = vpack.c.b16 %v3942, %v3934
  %v4735 = vpack.c.b16 %v3951, %v3943
  %v4736 = vpack.c.b16 %v3952, %v3944
  %v4737 = vpack.c.b16 %v3953, %v3945
  %v4738 = vpack.c.b16 %v3954, %v3946
  %v4739 = vpack.c.b16 %v3955, %v3947
  %v4740 = vpack.c.b16 %v3956, %v3948
  %v4741 = vpack.c.b16 %v3957, %v3949
  %v4742 = vpack.c.b16 %v3958, %v3950
  %v4743 = vpack.c.b16 %v3967, %v3959
  %v4744 = vpack.c.b16 %v3968, %v3960
  %v4745 = vpack.c.b16 %v3969, %v3961
  %v4746 = vpack.c.b16 %v3970, %v3962
  %v4747 = vpack.c.b16 %v3971, %v3963
  %v4748 = vpack.c.b16 %v3972, %v3964
  %v4749 = vpack.c.b16 %v3973, %v3965
  %v4750 = vpack.c.b16 %v3974, %v3966
  %v4751 = vpack.c.b16 %v3983, %v3975
  %v4752 = vpack.c.b16 %v3984, %v3976
  %v4753 = vpack.c.b16 %v3985, %v3977
  %v4754 = vpack.c.b16 %v3986, %v3978
  %v4755 = vpack.c.b16 %v3987, %v3979
  %v4756 = vpack.c.b16 %v3988, %v3980
  %v4757 = vpack.c.b16 %v3989, %v3981
  %v4758 = vpack.c.b16 %v3990, %v3982
  %v4759 = vpack.c.b16 %v3999, %v3991
  %v4760 = vpack.c.b16 %v4000, %v3992
  %v4761 = vpack.c.b16 %v4001, %v3993
  %v4762 = vpack.c.b16 %v4002, %v3994
  %v4763 = vpack.c.b16 %v4003, %v3995
  %v4764 = vpack.c.b16 %v4004, %v3996
  %v4765 = vpack.c.b16 %v4005, %v3997
  %v4766 = vpack.c.b16 %v4006, %v3998
  %v4767 = vpack.c.b16 %v4015, %v4007
  %v4768 = vpack.c.b16 %v4016, %v4008
  %v4769 = vpack.c.b16 %v4017, %v4009
  %v4770 = vpack.c.b16 %v4018, %v4010
  %v4771 = vpack.c.b16 %v4019, %v4011
  %v4772 = vpack.c.b16 %v4020, %v4012
  %v4773 = vpack.c.b16 %v4021, %v4013
  %v4774 = vpack.c.b16 %v4022, %v4014
  %v4775 = vpack.c.b16 %v4031, %v4023
  %v4776 = vpack.c.b16 %v4032, %v4024
  %v4777 = vpack.c.b16 %v4033, %v4025
  %v4778 = vpack.c.b16 %v4034, %v4026
  %v4779 = vpack.c.b16 %v4035, %v4027
  %v4780 = vpack.c.b16 %v4036, %v4028
  %v4781 = vpack.c.b16 %v4037, %v4029
  %v4782 = vpack.c.b16 %v4038, %v4030
  %v4783 = vpack.c.b16 %v4047, %v4039
  %v4784 = vpack.c.b16 %v4048, %v4040
  %v4785 = vpack.c.b16 %v4049, %v4041
  %v4786 = vpack.c.b16 %v4050, %v4042
  %v4787 = vpack.c.b16 %v4051, %v4043
  %v4788 = vpack.c.b16 %v4052, %v4044
  %v4789 = vpack.c.b16 %v4053, %v4045
  %v4790 = vpack.c.b16 %v4054, %v4046
  %v4791 = vpack.c.b16 %v4063, %v4055
  %v4792 = vpack.c.b16 %v4064, %v4056
  %v4793 = vpack.c.b16 %v4065, %v4057
  %v4794 = vpack.c.b16 %v4066, %v4058
  %v4795 = vpack.c.b16 %v4067, %v4059
  %v4796 = vpack.c.b16 %v4068, %v4060
  %v4797 = vpack.c.b16 %v4069, %v4061
  %v4798 = vpack.c.b16 %v4070, %v4062
  %v4799 = vpack.c.b16 %v4079, %v4071
  %v4800 = vpack.c.b16 %v4080, %v4072
  %v4801 = vpack.c.b16 %v4081, %v4073
  %v4802 = vpack.c.b16 %v4082, %v4074
  %v4803 = vpack.c.b16 %v4083, %v4075
  %v4804 = vpack.c.b16 %v4084, %v4076
  %v4805 = vpack.c.b16 %v4085, %v4077
  %v4806 = vpack.c.b16 %v4086, %v4078
  %v4807 = vpack.c.b16 %v4095, %v4087
  %v4808 = vpack.c.b16 %v4096, %v4088
  %v4809 = vpack.c.b16 %v4097, %v4089
  %v4810 = vpack.c.b16 %v4098, %v4090
  %v4811 = vpack.c.b16 %v4099, %v4091
  %v4812 = vpack.c.b16 %v4100, %v4092
  %v4813 = vpack.c.b16 %v4101, %v4093
  %v4814 = vpack.c.b16 %v4102, %v4094
  %v4815 = vpack.c.b16 %v4111, %v4103
  %v4816 = vpack.c.b16 %v4112, %v4104
  %v4817 = vpack.c.b16 %v4113, %v4105
  %v4818 = vpack.c.b16 %v4114, %v4106
  %v4819 = vpack.c.b16 %v4115, %v4107
  %v4820 = vpack.c.b16 %v4116, %v4108
  %v4821 = vpack.c.b16 %v4117, %v4109
  %v4822 = vpack.c.b16 %v4118, %v4110
  %v4823 = vpack.c.b16 %v4127, %v4119
  %v4824 = vpack.c.b16 %v4128, %v4120
  %v4825 = vpack.c.b16 %v4129, %v4121
  %v4826 = vpack.c.b16 %v4130, %v4122
  %v4827 = vpack.c.b16 %v4131, %v4123
  %v4828 = vpack.c.b16 %v4132, %v4124
  %v4829 = vpack.c.b16 %v4133, %v4125
  %v4830 = vpack.c.b16 %v4134, %v4126
  %v4831 = vpack.c.b16 %v4143, %v4135
  %v4832 = vpack.c.b16 %v4144, %v4136
  %v4833 = vpack.c.b16 %v4145, %v4137
  %v4834 = vpack.c.b16 %v4146, %v4138
  %v4835 = vpack.c.b16 %v4147, %v4139
  %v4836 = vpack.c.b16 %v4148, %v4140
  %v4837 = vpack.c.b16 %v4149, %v4141
  %v4838 = vpack.c.b16 %v4150, %v4142
  %v4839 = vpack.c.b16 %v4159, %v4151
  %v4840 = vpack.c.b16 %v4160, %v4152
  %v4841 = vpack.c.b16 %v4161, %v4153
  %v4842 = vpack.c.b16 %v4162, %v4154
  %v4843 = vpack.c.b16 %v4163, %v4155
  %v4844 = vpack.c.b16 %v4164, %v4156
  %v4845 = vpack.c.b16 %v4165, %v4157
  %v4846 = vpack.c.b16 %v4166, %v4158
  %v4847 = vpack.c.b16 %v4175, %v4167
  %v4848 = vpack.c.b16 %v4176, %v4168
  %v4849 = vpack.c.b16 %v4177, %v4169
  %v4850 = vpack.c.b16 %v4178, %v4170
  %v4851 = vpack.c.b16 %v4179, %v4171
  %v4852 = vpack.c.b16 %v4180, %v4172
  %v4853 = vpack.c.b16 %v4181, %v4173
  %v4854 = vpack.c.b16 %v4182, %v4174
  %v4855 = vpack.c.b16 %v4191, %v4183
  %v4856 = vpack.c.b16 %v4192, %v4184
  %v4857 = vpack.c.b16 %v4193, %v4185
  %v4858 = vpack.c.b16 %v4194, %v4186
  %v4859 = vpack.c.b16 %v4195, %v4187
  %v4860 = vpack.c.b16 %v4196, %v4188
  %v4861 = vpack.c.b16 %v4197, %v4189
  %v4862 = vpack.c.b16 %v4198, %v4190
  %v4863 = vpack.c.b16 %v4207, %v4199
  %v4864 = vpack.c.b16 %v4208, %v4200
  %v4865 = vpack.c.b16 %v4209, %v4201
  %v4866 = vpack.c.b16 %v4210, %v4202
  %v4867 = vpack.c.b16 %v4211, %v4203
  %v4868 = vpack.c.b16 %v4212, %v4204
  %v4869 = vpack.c.b16 %v4213, %v4205
  %v4870 = vpack.c.b16 %v4214, %v4206
  %v4871 = vpack.c.b16 %v4223, %v4215
  %v4872 = vpack.c.b16 %v4224, %v4216
  %v4873 = vpack.c.b16 %v4225, %v4217
  %v4874 = vpack.c.b16 %v4226, %v4218
  %v4875 = vpack.c.b16 %v4227, %v4219
  %v4876 = vpack.c.b16 %v4228, %v4220
  %v4877 = vpack.c.b16 %v4229, %v4221
  %v4878 = vpack.c.b16 %v4230, %v4222
  %v4879 = vpack.c.b16 %v4239, %v4231
  %v4880 = vpack.c.b16 %v4240, %v4232
  %v4881 = vpack.c.b16 %v4241, %v4233
  %v4882 = vpack.c.b16 %v4242, %v4234
  %v4883 = vpack.c.b16 %v4243, %v4235
  %v4884 = vpack.c.b16 %v4244, %v4236
  %v4885 = vpack.c.b16 %v4245, %v4237
  %v4886 = vpack.c.b16 %v4246, %v4238
  %v4887 = vpack.c.b16 %v4255, %v4247
  %v4888 = vpack.c.b16 %v4256, %v4248
  %v4889 = vpack.c.b16 %v4257, %v4249
  %v4890 = vpack.c.b16 %v4258, %v4250
  %v4891 = vpack.c.b16 %v4259, %v4251
  %v4892 = vpack.c.b16 %v4260, %v4252
  %v4893 = vpack.c.b16 %v4261, %v4253
  %v4894 = vpack.c.b16 %v4262, %v4254
  %v4895 = vpack.c.b16 %v4271, %v4263
  %v4896 = vpack.c.b16 %v4272, %v4264
  %v4897 = vpack.c.b16 %v4273, %v4265
  %v4898 = vpack.c.b16 %v4274, %v4266
  %v4899 = vpack.c.b16 %v4275, %v4267
  %v4900 = vpack.c.b16 %v4276, %v4268
  %v4901 = vpack.c.b16 %v4277, %v4269
  %v4902 = vpack.c.b16 %v4278, %v4270
  %v4903 = vpack.c.b16 %v4287, %v4279
  %v4904 = vpack.c.b16 %v4288, %v4280
  %v4905 = vpack.c.b16 %v4289, %v4281
  %v4906 = vpack.c.b16 %v4290, %v4282
  %v4907 = vpack.c.b16 %v4291, %v4283
  %v4908 = vpack.c.b16 %v4292, %v4284
  %v4909 = vpack.c.b16 %v4293, %v4285
  %v4910 = vpack.c.b16 %v4294, %v4286
  %v4911 = vpack.c.b16 %v4303, %v4295
  %v4912 = vpack.c.b16 %v4304, %v4296
  %v4913 = vpack.c.b16 %v4305, %v4297
  %v4914 = vpack.c.b16 %v4306, %v4298
  %v4915 = vpack.c.b16 %v4307, %v4299
  %v4916 = vpack.c.b16 %v4308, %v4300
  %v4917 = vpack.c.b16 %v4309, %v4301
  %v4918 = vpack.c.b16 %v4310, %v4302
  %v4919 = vpack.c.b16 %v4319, %v4311
  %v4920 = vpack.c.b16 %v4320, %v4312
  %v4921 = vpack.c.b16 %v4321, %v4313
  %v4922 = vpack.c.b16 %v4322, %v4314
  %v4923 = vpack.c.b16 %v4323, %v4315
  %v4924 = vpack.c.b16 %v4324, %v4316
  %v4925 = vpack.c.b16 %v4325, %v4317
  %v4926 = vpack.c.b16 %v4326, %v4318
  %v4927 = vpack.c.b16 %v4335, %v4327
  %v4928 = vpack.c.b16 %v4336, %v4328
  %v4929 = vpack.c.b16 %v4337, %v4329
  %v4930 = vpack.c.b16 %v4338, %v4330
  %v4931 = vpack.c.b16 %v4339, %v4331
  %v4932 = vpack.c.b16 %v4340, %v4332
  %v4933 = vpack.c.b16 %v4341, %v4333
  %v4934 = vpack.c.b16 %v4342, %v4334
  %v4935 = vpack.c.b16 %v4351, %v4343
  %v4936 = vpack.c.b16 %v4352, %v4344
  %v4937 = vpack.c.b16 %v4353, %v4345
  %v4938 = vpack.c.b16 %v4354, %v4346
  %v4939 = vpack.c.b16 %v4355, %v4347
  %v4940 = vpack.c.b16 %v4356, %v4348
  %v4941 = vpack.c.b16 %v4357, %v4349
  %v4942 = vpack.c.b16 %v4358, %v4350
  %v4943 = vpack.c.b16 %v4367, %v4359
  %v4944 = vpack.c.b16 %v4368, %v4360
  %v4945 = vpack.c.b16 %v4369, %v4361
  %v4946 = vpack.c.b16 %v4370, %v4362
  %v4947 = vpack.c.b16 %v4371, %v4363
  %v4948 = vpack.c.b16 %v4372, %v4364
  %v4949 = vpack.c.b16 %v4373, %v4365
  %v4950 = vpack.c.b16 %v4374, %v4366
  %v4951 = vpack.c.b16 %v4383, %v4375
  %v4952 = vpack.c.b16 %v4384, %v4376
  %v4953 = vpack.c.b16 %v4385, %v4377
  %v4954 = vpack.c.b16 %v4386, %v4378
  %v4955 = vpack.c.b16 %v4387, %v4379
  %v4956 = vpack.c.b16 %v4388, %v4380
  %v4957 = vpack.c.b16 %v4389, %v4381
  %v4958 = vpack.c.b16 %v4390, %v4382
  %v4959 = vpack.c.b16 %v4399, %v4391
  %v4960 = vpack.c.b16 %v4400, %v4392
  %v4961 = vpack.c.b16 %v4401, %v4393
  %v4962 = vpack.c.b16 %v4402, %v4394
  %v4963 = vpack.c.b16 %v4403, %v4395
  %v4964 = vpack.c.b16 %v4404, %v4396
  %v4965 = vpack.c.b16 %v4405, %v4397
  %v4966 = vpack.c.b16 %v4406, %v4398
  %v4967 = vpack.c.b16 %v4415, %v4407
  %v4968 = vpack.c.b16 %v4416, %v4408
  %v4969 = vpack.c.b16 %v4417, %v4409
  %v4970 = vpack.c.b16 %v4418, %v4410
  %v4971 = vpack.c.b16 %v4419, %v4411
  %v4972 = vpack.c.b16 %v4420, %v4412
  %v4973 = vpack.c.b16 %v4421, %v4413
  %v4974 = vpack.c.b16 %v4422, %v4414
  %v4975 = vpack.c.b16 %v4431, %v4423
  %v4976 = vpack.c.b16 %v4432, %v4424
  %v4977 = vpack.c.b16 %v4433, %v4425
  %v4978 = vpack.c.b16 %v4434, %v4426
  %v4979 = vpack.c.b16 %v4435, %v4427
  %v4980 = vpack.c.b16 %v4436, %v4428
  %v4981 = vpack.c.b16 %v4437, %v4429
  %v4982 = vpack.c.b16 %v4438, %v4430
  %v4983 = vpack.c.b16 %v4447, %v4439
  %v4984 = vpack.c.b16 %v4448, %v4440
  %v4985 = vpack.c.b16 %v4449, %v4441
  %v4986 = vpack.c.b16 %v4450, %v4442
  %v4987 = vpack.c.b16 %v4451, %v4443
  %v4988 = vpack.c.b16 %v4452, %v4444
  %v4989 = vpack.c.b16 %v4453, %v4445
  %v4990 = vpack.c.b16 %v4454, %v4446
  %v4991 = vpack.c.b16 %v4463, %v4455
  %v4992 = vpack.c.b16 %v4464, %v4456
  %v4993 = vpack.c.b16 %v4465, %v4457
  %v4994 = vpack.c.b16 %v4466, %v4458
  %v4995 = vpack.c.b16 %v4467, %v4459
  %v4996 = vpack.c.b16 %v4468, %v4460
  %v4997 = vpack.c.b16 %v4469, %v4461
  %v4998 = vpack.c.b16 %v4470, %v4462
  %v4999 = vpack.c.b16 %v4479, %v4471
  %v5000 = vpack.c.b16 %v4480, %v4472
  %v5001 = vpack.c.b16 %v4481, %v4473
  %v5002 = vpack.c.b16 %v4482, %v4474
  %v5003 = vpack.c.b16 %v4483, %v4475
  %v5004 = vpack.c.b16 %v4484, %v4476
  %v5005 = vpack.c.b16 %v4485, %v4477
  %v5006 = vpack.c.b16 %v4486, %v4478
  %v5007 = vpack.c.b16 %v4495, %v4487
  %v5008 = vpack.c.b16 %v4496, %v4488
  %v5009 = vpack.c.b16 %v4497, %v4489
  %v5010 = vpack.c.b16 %v4498, %v4490
  %v5011 = vpack.c.b16 %v4499, %v4491
  %v5012 = vpack.c.b16 %v4500, %v4492
  %v5013 = vpack.c.b16 %v4501, %v4493
  %v5014 = vpack.c.b16 %v4502, %v4494
  %5527 = vmatprep.subr.bf16.mxu0 %v4560
  %5528 = vmatpush1.bf16.msra.mxu0 %v4559
  %5529 = vmatprep.subr.bf16.mxu0 %v4552
  %5530 = vmatpush1.bf16.msra.mxu0 %v4551
  %5531 = vmatprep.subr.bf16.mxu0 %v4544
  %5532 = vmatpush1.bf16.msra.mxu0 %v4543
  %5533 = vmatprep.subr.bf16.mxu0 %v4536
  %5534 = vmatpush1.bf16.msra.mxu0 %v4535
  %5535 = vmatprep.subr.bf16.mxu0 %v4528
  %5536 = vmatpush1.bf16.msra.mxu0 %v4527
  %5537 = vmatprep.subr.bf16.mxu0 %v4520
  %5538 = vmatpush1.bf16.msra.mxu0 %v4519
  %5539 = vmatprep.subr.bf16.mxu0 %v4512
  %5540 = vmatpush1.bf16.msra.mxu0 %v4511
  %5541 = vmatprep.subr.bf16.mxu0 %v4504
  %5542 = vmatpush1.bf16.msra.mxu0 %v4503
  %5543 = vmatprep.subr.bf16.mxu0 %v4624
  %5544 = vmatpush2.bf16.msra.mxu0 %v4623
  %5545 = vmatprep.subr.bf16.mxu0 %v4616
  %5546 = vmatpush2.bf16.msra.mxu0 %v4615
  %5547 = vmatprep.subr.bf16.mxu0 %v4608
  %5548 = vmatpush2.bf16.msra.mxu0 %v4607
  %5549 = vmatprep.subr.bf16.mxu0 %v4600
  %5550 = vmatpush2.bf16.msra.mxu0 %v4599
  %5551 = vmatprep.subr.bf16.mxu0 %v4592
  %5552 = vmatpush2.bf16.msra.mxu0 %v4591
  %5553 = vmatprep.subr.bf16.mxu0 %v4584
  %5554 = vmatpush2.bf16.msra.mxu0 %v4583
  %5555 = vmatprep.subr.bf16.mxu0 %v4576
  %5556 = vmatpush2.bf16.msra.mxu0 %v4575
  %5557 = vmatprep.subr.bf16.mxu0 %v4568
  %5558 = vmatpush2.bf16.msra.mxu0 %v4567
  %5559 = vmatprep.mubr.bf16.mxu0 %v2398
  %5560 = vmatmul.mubr.bf16.gmra.mxu0 %v2397
  %v5561 = vpop.f32.mrf.mxu0
  %v5562 = vadd.f32 %v2930, %v5561
  %v5563 = vpop.f32.mrf.mxu0
  %v5564 = vadd.f32 %v2934, %v5563
  %v5565 = vpop.f32.mrf.mxu0
  %v5566 = vadd.f32 %v2930, %v5565
  %v5567 = vpop.f32.mrf.mxu0
  %v5568 = vadd.f32 %v2934, %v5567
  %5569 = vmatprep.mubr.bf16.mxu0 %v2406
  %5570 = vmatmul.mubr.bf16.gmra.mxu0 %v2405
  %v5571 = vpop.f32.mrf.mxu0
  %v5572 = vadd.f32 %v2930, %v5571
  %v5573 = vpop.f32.mrf.mxu0
  %v5574 = vadd.f32 %v2934, %v5573
  %v5575 = vpop.f32.mrf.mxu0
  %v5576 = vadd.f32 %v2930, %v5575
  %v5577 = vpop.f32.mrf.mxu0
  %v5578 = vadd.f32 %v2934, %v5577
  %5579 = vdwg.mxu0
  %5580 = vmatprep.subr.bf16.mxu0 %v4688
  %5581 = vmatpush1.bf16.msra.mxu0 %v4687
  %5582 = vmatprep.subr.bf16.mxu0 %v4680
  %5583 = vmatpush1.bf16.msra.mxu0 %v4679
  %5584 = vmatprep.subr.bf16.mxu0 %v4672
  %5585 = vmatpush1.bf16.msra.mxu0 %v4671
  %5586 = vmatprep.subr.bf16.mxu0 %v4664
  %5587 = vmatpush1.bf16.msra.mxu0 %v4663
  %5588 = vmatprep.subr.bf16.mxu0 %v4656
  %5589 = vmatpush1.bf16.msra.mxu0 %v4655
  %5590 = vmatprep.subr.bf16.mxu0 %v4648
  %5591 = vmatpush1.bf16.msra.mxu0 %v4647
  %5592 = vmatprep.subr.bf16.mxu0 %v4640
  %5593 = vmatpush1.bf16.msra.mxu0 %v4639
  %5594 = vmatprep.subr.bf16.mxu0 %v4632
  %5595 = vmatpush1.bf16.msra.mxu0 %v4631
  %5596 = vmatprep.subr.bf16.mxu0 %v4752
  %5597 = vmatpush2.bf16.msra.mxu0 %v4751
  %5598 = vmatprep.subr.bf16.mxu0 %v4744
  %5599 = vmatpush2.bf16.msra.mxu0 %v4743
  %5600 = vmatprep.subr.bf16.mxu0 %v4736
  %5601 = vmatpush2.bf16.msra.mxu0 %v4735
  %5602 = vmatprep.subr.bf16.mxu0 %v4728
  %5603 = vmatpush2.bf16.msra.mxu0 %v4727
  %5604 = vmatprep.subr.bf16.mxu0 %v4720
  %5605 = vmatpush2.bf16.msra.mxu0 %v4719
  %5606 = vmatprep.subr.bf16.mxu0 %v4712
  %5607 = vmatpush2.bf16.msra.mxu0 %v4711
  %5608 = vmatprep.subr.bf16.mxu0 %v4704
  %5609 = vmatpush2.bf16.msra.mxu0 %v4703
  %5610 = vmatprep.subr.bf16.mxu0 %v4696
  %5611 = vmatpush2.bf16.msra.mxu0 %v4695
  %5612 = vmatprep.mubr.bf16.mxu0 %v2400
  %5613 = vmatmul.mubr.bf16.gmra.mxu0 %v2399
  %v5614 = vpop.f32.mrf.mxu0
  %v5615 = vadd.f32 %v5562, %v5614
  %v5616 = vpop.f32.mrf.mxu0
  %v5617 = vadd.f32 %v5564, %v5616
  %v5618 = vpop.f32.mrf.mxu0
  %v5619 = vadd.f32 %v5566, %v5618
  %v5620 = vpop.f32.mrf.mxu0
  %v5621 = vadd.f32 %v5568, %v5620
  %5622 = vmatprep.mubr.bf16.mxu0 %v2408
  %5623 = vmatmul.mubr.bf16.gmra.mxu0 %v2407
  %v5624 = vpop.f32.mrf.mxu0
  %v5625 = vadd.f32 %v5572, %v5624
  %v5626 = vpop.f32.mrf.mxu0
  %v5627 = vadd.f32 %v5574, %v5626
  %v5628 = vpop.f32.mrf.mxu0
  %v5629 = vadd.f32 %v5576, %v5628
  %v5630 = vpop.f32.mrf.mxu0
  %v5631 = vadd.f32 %v5578, %v5630
  %5632 = vdwg.mxu0
  %5633 = vmatprep.subr.bf16.mxu0 %v4816
  %5634 = vmatpush1.bf16.msra.mxu0 %v4815
  %5635 = vmatprep.subr.bf16.mxu0 %v4808
  %5636 = vmatpush1.bf16.msra.mxu0 %v4807
  %5637 = vmatprep.subr.bf16.mxu0 %v4800
  %5638 = vmatpush1.bf16.msra.mxu0 %v4799
  %5639 = vmatprep.subr.bf16.mxu0 %v4792
  %5640 = vmatpush1.bf16.msra.mxu0 %v4791
  %5641 = vmatprep.subr.bf16.mxu0 %v4784
  %5642 = vmatpush1.bf16.msra.mxu0 %v4783
  %5643 = vmatprep.subr.bf16.mxu0 %v4776
  %5644 = vmatpush1.bf16.msra.mxu0 %v4775
  %5645 = vmatprep.subr.bf16.mxu0 %v4768
  %5646 = vmatpush1.bf16.msra.mxu0 %v4767
  %5647 = vmatprep.subr.bf16.mxu0 %v4760
  %5648 = vmatpush1.bf16.msra.mxu0 %v4759
  %5649 = vmatprep.subr.bf16.mxu0 %v4880
  %5650 = vmatpush2.bf16.msra.mxu0 %v4879
  %5651 = vmatprep.subr.bf16.mxu0 %v4872
  %5652 = vmatpush2.bf16.msra.mxu0 %v4871
  %5653 = vmatprep.subr.bf16.mxu0 %v4864
  %5654 = vmatpush2.bf16.msra.mxu0 %v4863
  %5655 = vmatprep.subr.bf16.mxu0 %v4856
  %5656 = vmatpush2.bf16.msra.mxu0 %v4855
  %5657 = vmatprep.subr.bf16.mxu0 %v4848
  %5658 = vmatpush2.bf16.msra.mxu0 %v4847
  %5659 = vmatprep.subr.bf16.mxu0 %v4840
  %5660 = vmatpush2.bf16.msra.mxu0 %v4839
  %5661 = vmatprep.subr.bf16.mxu0 %v4832
  %5662 = vmatpush2.bf16.msra.mxu0 %v4831
  %5663 = vmatprep.subr.bf16.mxu0 %v4824
  %5664 = vmatpush2.bf16.msra.mxu0 %v4823
  %5665 = vmatprep.mubr.bf16.mxu0 %v2402
  %5666 = vmatmul.mubr.bf16.gmra.mxu0 %v2401
  %v5667 = vpop.f32.mrf.mxu0
  %v5668 = vadd.f32 %v5615, %v5667
  %v5669 = vpop.f32.mrf.mxu0
  %v5670 = vadd.f32 %v5617, %v5669
  %v5671 = vpop.f32.mrf.mxu0
  %v5672 = vadd.f32 %v5619, %v5671
  %v5673 = vpop.f32.mrf.mxu0
  %v5674 = vadd.f32 %v5621, %v5673
  %5675 = vmatprep.mubr.bf16.mxu0 %v2410
  %5676 = vmatmul.mubr.bf16.gmra.mxu0 %v2409
  %v5677 = vpop.f32.mrf.mxu0
  %v5678 = vadd.f32 %v5625, %v5677
  %v5679 = vpop.f32.mrf.mxu0
  %v5680 = vadd.f32 %v5627, %v5679
  %v5681 = vpop.f32.mrf.mxu0
  %v5682 = vadd.f32 %v5629, %v5681
  %v5683 = vpop.f32.mrf.mxu0
  %v5684 = vadd.f32 %v5631, %v5683
  %5685 = vdwg.mxu0
  %5686 = vmatprep.subr.bf16.mxu0 %v4944
  %5687 = vmatpush1.bf16.msra.mxu0 %v4943
  %5688 = vmatprep.subr.bf16.mxu0 %v4936
  %5689 = vmatpush1.bf16.msra.mxu0 %v4935
  %5690 = vmatprep.subr.bf16.mxu0 %v4928
  %5691 = vmatpush1.bf16.msra.mxu0 %v4927
  %5692 = vmatprep.subr.bf16.mxu0 %v4920
  %5693 = vmatpush1.bf16.msra.mxu0 %v4919
  %5694 = vmatprep.subr.bf16.mxu0 %v4912
  %5695 = vmatpush1.bf16.msra.mxu0 %v4911
  %5696 = vmatprep.subr.bf16.mxu0 %v4904
  %5697 = vmatpush1.bf16.msra.mxu0 %v4903
  %5698 = vmatprep.subr.bf16.mxu0 %v4896
  %5699 = vmatpush1.bf16.msra.mxu0 %v4895
  %5700 = vmatprep.subr.bf16.mxu0 %v4888
  %5701 = vmatpush1.bf16.msra.mxu0 %v4887
  %5702 = vmatprep.subr.bf16.mxu0 %v5008
  %5703 = vmatpush2.bf16.msra.mxu0 %v5007
  %5704 = vmatprep.subr.bf16.mxu0 %v5000
  %5705 = vmatpush2.bf16.msra.mxu0 %v4999
  %5706 = vmatprep.subr.bf16.mxu0 %v4992
  %5707 = vmatpush2.bf16.msra.mxu0 %v4991
  %5708 = vmatprep.subr.bf16.mxu0 %v4984
  %5709 = vmatpush2.bf16.msra.mxu0 %v4983
  %5710 = vmatprep.subr.bf16.mxu0 %v4976
  %5711 = vmatpush2.bf16.msra.mxu0 %v4975
  %5712 = vmatprep.subr.bf16.mxu0 %v4968
  %5713 = vmatpush2.bf16.msra.mxu0 %v4967
  %5714 = vmatprep.subr.bf16.mxu0 %v4960
  %5715 = vmatpush2.bf16.msra.mxu0 %v4959
  %5716 = vmatprep.subr.bf16.mxu0 %v4952
  %5717 = vmatpush2.bf16.msra.mxu0 %v4951
  %5718 = vmatprep.mubr.bf16.mxu0 %v2404
  %5719 = vmatmul.mubr.bf16.gmra.mxu0 %v2403
  %v5720 = vpop.f32.mrf.mxu0
  %v5721 = vadd.f32 %v5668, %v5720
  %v5722 = vpop.f32.mrf.mxu0
  %v5723 = vadd.f32 %v5670, %v5722
  %v5724 = vpop.f32.mrf.mxu0
  %v5725 = vadd.f32 %v5672, %v5724
  %v5726 = vpop.f32.mrf.mxu0
  %v5727 = vadd.f32 %v5674, %v5726
  %5728 = vmatprep.mubr.bf16.mxu0 %v2412
  %5729 = vmatmul.mubr.bf16.gmra.mxu0 %v2411
  %v5730 = vpop.f32.mrf.mxu0
  %v5731 = vadd.f32 %v5678, %v5730
  %v5732 = vpop.f32.mrf.mxu0
  %v5733 = vadd.f32 %v5680, %v5732
  %v5734 = vpop.f32.mrf.mxu0
  %v5735 = vadd.f32 %v5682, %v5734
  %v5736 = vpop.f32.mrf.mxu0
  %v5737 = vadd.f32 %v5684, %v5736
  %5738 = vdwg.mxu0
  %5739 = vmatprep.subr.bf16.mxu0 %v4562
  %5740 = vmatpush1.bf16.msra.mxu0 %v4561
  %5741 = vmatprep.subr.bf16.mxu0 %v4554
  %5742 = vmatpush1.bf16.msra.mxu0 %v4553
  %5743 = vmatprep.subr.bf16.mxu0 %v4546
  %5744 = vmatpush1.bf16.msra.mxu0 %v4545
  %5745 = vmatprep.subr.bf16.mxu0 %v4538
  %5746 = vmatpush1.bf16.msra.mxu0 %v4537
  %5747 = vmatprep.subr.bf16.mxu0 %v4530
  %5748 = vmatpush1.bf16.msra.mxu0 %v4529
  %5749 = vmatprep.subr.bf16.mxu0 %v4522
  %5750 = vmatpush1.bf16.msra.mxu0 %v4521
  %5751 = vmatprep.subr.bf16.mxu0 %v4514
  %5752 = vmatpush1.bf16.msra.mxu0 %v4513
  %5753 = vmatprep.subr.bf16.mxu0 %v4506
  %5754 = vmatpush1.bf16.msra.mxu0 %v4505
  %5755 = vmatprep.subr.bf16.mxu0 %v4626
  %5756 = vmatpush2.bf16.msra.mxu0 %v4625
  %5757 = vmatprep.subr.bf16.mxu0 %v4618
  %5758 = vmatpush2.bf16.msra.mxu0 %v4617
  %5759 = vmatprep.subr.bf16.mxu0 %v4610
  %5760 = vmatpush2.bf16.msra.mxu0 %v4609
  %5761 = vmatprep.subr.bf16.mxu0 %v4602
  %5762 = vmatpush2.bf16.msra.mxu0 %v4601
  %5763 = vmatprep.subr.bf16.mxu0 %v4594
  %5764 = vmatpush2.bf16.msra.mxu0 %v4593
  %5765 = vmatprep.subr.bf16.mxu0 %v4586
  %5766 = vmatpush2.bf16.msra.mxu0 %v4585
  %5767 = vmatprep.subr.bf16.mxu0 %v4578
  %5768 = vmatpush2.bf16.msra.mxu0 %v4577
  %5769 = vmatprep.subr.bf16.mxu0 %v4570
  %5770 = vmatpush2.bf16.msra.mxu0 %v4569
  %5771 = vmatprep.mubr.bf16.mxu0 %v2398
  %5772 = vmatmul.mubr.bf16.gmra.mxu0 %v2397
  %v5773 = vpop.f32.mrf.mxu0
  %v5774 = vadd.f32 %v2938, %v5773
  %v5775 = vpop.f32.mrf.mxu0
  %v5776 = vadd.f32 %v2942, %v5775
  %v5777 = vpop.f32.mrf.mxu0
  %v5778 = vadd.f32 %v2938, %v5777
  %v5779 = vpop.f32.mrf.mxu0
  %v5780 = vadd.f32 %v2942, %v5779
  %5781 = vmatprep.mubr.bf16.mxu0 %v2406
  %5782 = vmatmul.mubr.bf16.gmra.mxu0 %v2405
  %v5783 = vpop.f32.mrf.mxu0
  %v5784 = vadd.f32 %v2938, %v5783
  %v5785 = vpop.f32.mrf.mxu0
  %v5786 = vadd.f32 %v2942, %v5785
  %v5787 = vpop.f32.mrf.mxu0
  %v5788 = vadd.f32 %v2938, %v5787
  %v5789 = vpop.f32.mrf.mxu0
  %v5790 = vadd.f32 %v2942, %v5789
  %5791 = vdwg.mxu0
  %5792 = vmatprep.subr.bf16.mxu0 %v4690
  %5793 = vmatpush1.bf16.msra.mxu0 %v4689
  %5794 = vmatprep.subr.bf16.mxu0 %v4682
  %5795 = vmatpush1.bf16.msra.mxu0 %v4681
  %5796 = vmatprep.subr.bf16.mxu0 %v4674
  %5797 = vmatpush1.bf16.msra.mxu0 %v4673
  %5798 = vmatprep.subr.bf16.mxu0 %v4666
  %5799 = vmatpush1.bf16.msra.mxu0 %v4665
  %5800 = vmatprep.subr.bf16.mxu0 %v4658
  %5801 = vmatpush1.bf16.msra.mxu0 %v4657
  %5802 = vmatprep.subr.bf16.mxu0 %v4650
  %5803 = vmatpush1.bf16.msra.mxu0 %v4649
  %5804 = vmatprep.subr.bf16.mxu0 %v4642
  %5805 = vmatpush1.bf16.msra.mxu0 %v4641
  %5806 = vmatprep.subr.bf16.mxu0 %v4634
  %5807 = vmatpush1.bf16.msra.mxu0 %v4633
  %5808 = vmatprep.subr.bf16.mxu0 %v4754
  %5809 = vmatpush2.bf16.msra.mxu0 %v4753
  %5810 = vmatprep.subr.bf16.mxu0 %v4746
  %5811 = vmatpush2.bf16.msra.mxu0 %v4745
  %5812 = vmatprep.subr.bf16.mxu0 %v4738
  %5813 = vmatpush2.bf16.msra.mxu0 %v4737
  %5814 = vmatprep.subr.bf16.mxu0 %v4730
  %5815 = vmatpush2.bf16.msra.mxu0 %v4729
  %5816 = vmatprep.subr.bf16.mxu0 %v4722
  %5817 = vmatpush2.bf16.msra.mxu0 %v4721
  %5818 = vmatprep.subr.bf16.mxu0 %v4714
  %5819 = vmatpush2.bf16.msra.mxu0 %v4713
  %5820 = vmatprep.subr.bf16.mxu0 %v4706
  %5821 = vmatpush2.bf16.msra.mxu0 %v4705
  %5822 = vmatprep.subr.bf16.mxu0 %v4698
  %5823 = vmatpush2.bf16.msra.mxu0 %v4697
  %5824 = vmatprep.mubr.bf16.mxu0 %v2400
  %5825 = vmatmul.mubr.bf16.gmra.mxu0 %v2399
  %v5826 = vpop.f32.mrf.mxu0
  %v5827 = vadd.f32 %v5774, %v5826
  %v5828 = vpop.f32.mrf.mxu0
  %v5829 = vadd.f32 %v5776, %v5828
  %v5830 = vpop.f32.mrf.mxu0
  %v5831 = vadd.f32 %v5778, %v5830
  %v5832 = vpop.f32.mrf.mxu0
  %v5833 = vadd.f32 %v5780, %v5832
  %5834 = vmatprep.mubr.bf16.mxu0 %v2408
  %5835 = vmatmul.mubr.bf16.gmra.mxu0 %v2407
  %v5836 = vpop.f32.mrf.mxu0
  %v5837 = vadd.f32 %v5784, %v5836
  %v5838 = vpop.f32.mrf.mxu0
  %v5839 = vadd.f32 %v5786, %v5838
  %v5840 = vpop.f32.mrf.mxu0
  %v5841 = vadd.f32 %v5788, %v5840
  %v5842 = vpop.f32.mrf.mxu0
  %v5843 = vadd.f32 %v5790, %v5842
  %5844 = vdwg.mxu0
  %5845 = vmatprep.subr.bf16.mxu0 %v4818
  %5846 = vmatpush1.bf16.msra.mxu0 %v4817
  %5847 = vmatprep.subr.bf16.mxu0 %v4810
  %5848 = vmatpush1.bf16.msra.mxu0 %v4809
  %5849 = vmatprep.subr.bf16.mxu0 %v4802
  %5850 = vmatpush1.bf16.msra.mxu0 %v4801
  %5851 = vmatprep.subr.bf16.mxu0 %v4794
  %5852 = vmatpush1.bf16.msra.mxu0 %v4793
  %5853 = vmatprep.subr.bf16.mxu0 %v4786
  %5854 = vmatpush1.bf16.msra.mxu0 %v4785
  %5855 = vmatprep.subr.bf16.mxu0 %v4778
  %5856 = vmatpush1.bf16.msra.mxu0 %v4777
  %5857 = vmatprep.subr.bf16.mxu0 %v4770
  %5858 = vmatpush1.bf16.msra.mxu0 %v4769
  %5859 = vmatprep.subr.bf16.mxu0 %v4762
  %5860 = vmatpush1.bf16.msra.mxu0 %v4761
  %5861 = vmatprep.subr.bf16.mxu0 %v4882
  %5862 = vmatpush2.bf16.msra.mxu0 %v4881
  %5863 = vmatprep.subr.bf16.mxu0 %v4874
  %5864 = vmatpush2.bf16.msra.mxu0 %v4873
  %5865 = vmatprep.subr.bf16.mxu0 %v4866
  %5866 = vmatpush2.bf16.msra.mxu0 %v4865
  %5867 = vmatprep.subr.bf16.mxu0 %v4858
  %5868 = vmatpush2.bf16.msra.mxu0 %v4857
  %5869 = vmatprep.subr.bf16.mxu0 %v4850
  %5870 = vmatpush2.bf16.msra.mxu0 %v4849
  %5871 = vmatprep.subr.bf16.mxu0 %v4842
  %5872 = vmatpush2.bf16.msra.mxu0 %v4841
  %5873 = vmatprep.subr.bf16.mxu0 %v4834
  %5874 = vmatpush2.bf16.msra.mxu0 %v4833
  %5875 = vmatprep.subr.bf16.mxu0 %v4826
  %5876 = vmatpush2.bf16.msra.mxu0 %v4825
  %5877 = vmatprep.mubr.bf16.mxu0 %v2402
  %5878 = vmatmul.mubr.bf16.gmra.mxu0 %v2401
  %v5879 = vpop.f32.mrf.mxu0
  %v5880 = vadd.f32 %v5827, %v5879
  %v5881 = vpop.f32.mrf.mxu0
  %v5882 = vadd.f32 %v5829, %v5881
  %v5883 = vpop.f32.mrf.mxu0
  %v5884 = vadd.f32 %v5831, %v5883
  %v5885 = vpop.f32.mrf.mxu0
  %v5886 = vadd.f32 %v5833, %v5885
  %5887 = vmatprep.mubr.bf16.mxu0 %v2410
  %5888 = vmatmul.mubr.bf16.gmra.mxu0 %v2409
  %v5889 = vpop.f32.mrf.mxu0
  %v5890 = vadd.f32 %v5837, %v5889
  %v5891 = vpop.f32.mrf.mxu0
  %v5892 = vadd.f32 %v5839, %v5891
  %v5893 = vpop.f32.mrf.mxu0
  %v5894 = vadd.f32 %v5841, %v5893
  %v5895 = vpop.f32.mrf.mxu0
  %v5896 = vadd.f32 %v5843, %v5895
  %5897 = vdwg.mxu0
  %5898 = vmatprep.subr.bf16.mxu0 %v4946
  %5899 = vmatpush1.bf16.msra.mxu0 %v4945
  %5900 = vmatprep.subr.bf16.mxu0 %v4938
  %5901 = vmatpush1.bf16.msra.mxu0 %v4937
  %5902 = vmatprep.subr.bf16.mxu0 %v4930
  %5903 = vmatpush1.bf16.msra.mxu0 %v4929
  %5904 = vmatprep.subr.bf16.mxu0 %v4922
  %5905 = vmatpush1.bf16.msra.mxu0 %v4921
  %5906 = vmatprep.subr.bf16.mxu0 %v4914
  %5907 = vmatpush1.bf16.msra.mxu0 %v4913
  %5908 = vmatprep.subr.bf16.mxu0 %v4906
  %5909 = vmatpush1.bf16.msra.mxu0 %v4905
  %5910 = vmatprep.subr.bf16.mxu0 %v4898
  %5911 = vmatpush1.bf16.msra.mxu0 %v4897
  %5912 = vmatprep.subr.bf16.mxu0 %v4890
  %5913 = vmatpush1.bf16.msra.mxu0 %v4889
  %5914 = vmatprep.subr.bf16.mxu0 %v5010
  %5915 = vmatpush2.bf16.msra.mxu0 %v5009
  %5916 = vmatprep.subr.bf16.mxu0 %v5002
  %5917 = vmatpush2.bf16.msra.mxu0 %v5001
  %5918 = vmatprep.subr.bf16.mxu0 %v4994
  %5919 = vmatpush2.bf16.msra.mxu0 %v4993
  %5920 = vmatprep.subr.bf16.mxu0 %v4986
  %5921 = vmatpush2.bf16.msra.mxu0 %v4985
  %5922 = vmatprep.subr.bf16.mxu0 %v4978
  %5923 = vmatpush2.bf16.msra.mxu0 %v4977
  %5924 = vmatprep.subr.bf16.mxu0 %v4970
  %5925 = vmatpush2.bf16.msra.mxu0 %v4969
  %5926 = vmatprep.subr.bf16.mxu0 %v4962
  %5927 = vmatpush2.bf16.msra.mxu0 %v4961
  %5928 = vmatprep.subr.bf16.mxu0 %v4954
  %5929 = vmatpush2.bf16.msra.mxu0 %v4953
  %5930 = vmatprep.mubr.bf16.mxu0 %v2404
  %5931 = vmatmul.mubr.bf16.gmra.mxu0 %v2403
  %v5932 = vpop.f32.mrf.mxu0
  %v5933 = vadd.f32 %v5880, %v5932
  %v5934 = vpop.f32.mrf.mxu0
  %v5935 = vadd.f32 %v5882, %v5934
  %v5936 = vpop.f32.mrf.mxu0
  %v5937 = vadd.f32 %v5884, %v5936
  %v5938 = vpop.f32.mrf.mxu0
  %v5939 = vadd.f32 %v5886, %v5938
  %5940 = vmatprep.mubr.bf16.mxu0 %v2412
  %5941 = vmatmul.mubr.bf16.gmra.mxu0 %v2411
  %v5942 = vpop.f32.mrf.mxu0
  %v5943 = vadd.f32 %v5890, %v5942
  %v5944 = vpop.f32.mrf.mxu0
  %v5945 = vadd.f32 %v5892, %v5944
  %v5946 = vpop.f32.mrf.mxu0
  %v5947 = vadd.f32 %v5894, %v5946
  %v5948 = vpop.f32.mrf.mxu0
  %v5949 = vadd.f32 %v5896, %v5948
  %5950 = vdwg.mxu0
  %5951 = vmatprep.subr.bf16.mxu0 %v4564
  %5952 = vmatpush1.bf16.msra.mxu0 %v4563
  %5953 = vmatprep.subr.bf16.mxu0 %v4556
  %5954 = vmatpush1.bf16.msra.mxu0 %v4555
  %5955 = vmatprep.subr.bf16.mxu0 %v4548
  %5956 = vmatpush1.bf16.msra.mxu0 %v4547
  %5957 = vmatprep.subr.bf16.mxu0 %v4540
  %5958 = vmatpush1.bf16.msra.mxu0 %v4539
  %5959 = vmatprep.subr.bf16.mxu0 %v4532
  %5960 = vmatpush1.bf16.msra.mxu0 %v4531
  %5961 = vmatprep.subr.bf16.mxu0 %v4524
  %5962 = vmatpush1.bf16.msra.mxu0 %v4523
  %5963 = vmatprep.subr.bf16.mxu0 %v4516
  %5964 = vmatpush1.bf16.msra.mxu0 %v4515
  %5965 = vmatprep.subr.bf16.mxu0 %v4508
  %5966 = vmatpush1.bf16.msra.mxu0 %v4507
  %5967 = vmatprep.subr.bf16.mxu0 %v4628
  %5968 = vmatpush2.bf16.msra.mxu0 %v4627
  %5969 = vmatprep.subr.bf16.mxu0 %v4620
  %5970 = vmatpush2.bf16.msra.mxu0 %v4619
  %5971 = vmatprep.subr.bf16.mxu0 %v4612
  %5972 = vmatpush2.bf16.msra.mxu0 %v4611
  %5973 = vmatprep.subr.bf16.mxu0 %v4604
  %5974 = vmatpush2.bf16.msra.mxu0 %v4603
  %5975 = vmatprep.subr.bf16.mxu0 %v4596
  %5976 = vmatpush2.bf16.msra.mxu0 %v4595
  %5977 = vmatprep.subr.bf16.mxu0 %v4588
  %5978 = vmatpush2.bf16.msra.mxu0 %v4587
  %5979 = vmatprep.subr.bf16.mxu0 %v4580
  %5980 = vmatpush2.bf16.msra.mxu0 %v4579
  %5981 = vmatprep.subr.bf16.mxu0 %v4572
  %5982 = vmatpush2.bf16.msra.mxu0 %v4571
  %5983 = vmatprep.mubr.bf16.mxu0 %v2398
  %5984 = vmatmul.mubr.bf16.gmra.mxu0 %v2397
  %v5985 = vpop.f32.mrf.mxu0
  %v5986 = vadd.f32 %v2946, %v5985
  %v5987 = vpop.f32.mrf.mxu0
  %v5988 = vadd.f32 %v2950, %v5987
  %v5989 = vpop.f32.mrf.mxu0
  %v5990 = vadd.f32 %v2946, %v5989
  %v5991 = vpop.f32.mrf.mxu0
  %v5992 = vadd.f32 %v2950, %v5991
  %5993 = vmatprep.mubr.bf16.mxu0 %v2406
  %5994 = vmatmul.mubr.bf16.gmra.mxu0 %v2405
  %v5995 = vpop.f32.mrf.mxu0
  %v5996 = vadd.f32 %v2946, %v5995
  %v5997 = vpop.f32.mrf.mxu0
  %v5998 = vadd.f32 %v2950, %v5997
  %v5999 = vpop.f32.mrf.mxu0
  %v6000 = vadd.f32 %v2946, %v5999
  %v6001 = vpop.f32.mrf.mxu0
  %v6002 = vadd.f32 %v2950, %v6001
  %6003 = vdwg.mxu0
  %6004 = vmatprep.subr.bf16.mxu0 %v4692
  %6005 = vmatpush1.bf16.msra.mxu0 %v4691
  %6006 = vmatprep.subr.bf16.mxu0 %v4684
  %6007 = vmatpush1.bf16.msra.mxu0 %v4683
  %6008 = vmatprep.subr.bf16.mxu0 %v4676
  %6009 = vmatpush1.bf16.msra.mxu0 %v4675
  %6010 = vmatprep.subr.bf16.mxu0 %v4668
  %6011 = vmatpush1.bf16.msra.mxu0 %v4667
  %6012 = vmatprep.subr.bf16.mxu0 %v4660
  %6013 = vmatpush1.bf16.msra.mxu0 %v4659
  %6014 = vmatprep.subr.bf16.mxu0 %v4652
  %6015 = vmatpush1.bf16.msra.mxu0 %v4651
  %6016 = vmatprep.subr.bf16.mxu0 %v4644
  %6017 = vmatpush1.bf16.msra.mxu0 %v4643
  %6018 = vmatprep.subr.bf16.mxu0 %v4636
  %6019 = vmatpush1.bf16.msra.mxu0 %v4635
  %6020 = vmatprep.subr.bf16.mxu0 %v4756
  %6021 = vmatpush2.bf16.msra.mxu0 %v4755
  %6022 = vmatprep.subr.bf16.mxu0 %v4748
  %6023 = vmatpush2.bf16.msra.mxu0 %v4747
  %6024 = vmatprep.subr.bf16.mxu0 %v4740
  %6025 = vmatpush2.bf16.msra.mxu0 %v4739
  %6026 = vmatprep.subr.bf16.mxu0 %v4732
  %6027 = vmatpush2.bf16.msra.mxu0 %v4731
  %6028 = vmatprep.subr.bf16.mxu0 %v4724
  %6029 = vmatpush2.bf16.msra.mxu0 %v4723
  %6030 = vmatprep.subr.bf16.mxu0 %v4716
  %6031 = vmatpush2.bf16.msra.mxu0 %v4715
  %6032 = vmatprep.subr.bf16.mxu0 %v4708
  %6033 = vmatpush2.bf16.msra.mxu0 %v4707
  %6034 = vmatprep.subr.bf16.mxu0 %v4700
  %6035 = vmatpush2.bf16.msra.mxu0 %v4699
  %6036 = vmatprep.mubr.bf16.mxu0 %v2400
  %6037 = vmatmul.mubr.bf16.gmra.mxu0 %v2399
  %v6038 = vpop.f32.mrf.mxu0
  %v6039 = vadd.f32 %v5986, %v6038
  %v6040 = vpop.f32.mrf.mxu0
  %v6041 = vadd.f32 %v5988, %v6040
  %v6042 = vpop.f32.mrf.mxu0
  %v6043 = vadd.f32 %v5990, %v6042
  %v6044 = vpop.f32.mrf.mxu0
  %v6045 = vadd.f32 %v5992, %v6044
  %6046 = vmatprep.mubr.bf16.mxu0 %v2408
  %6047 = vmatmul.mubr.bf16.gmra.mxu0 %v2407
  %v6048 = vpop.f32.mrf.mxu0
  %v6049 = vadd.f32 %v5996, %v6048
  %v6050 = vpop.f32.mrf.mxu0
  %v6051 = vadd.f32 %v5998, %v6050
  %v6052 = vpop.f32.mrf.mxu0
  %v6053 = vadd.f32 %v6000, %v6052
  %v6054 = vpop.f32.mrf.mxu0
  %v6055 = vadd.f32 %v6002, %v6054
  %6056 = vdwg.mxu0
  %6057 = vmatprep.subr.bf16.mxu0 %v4820
  %6058 = vmatpush1.bf16.msra.mxu0 %v4819
  %6059 = vmatprep.subr.bf16.mxu0 %v4812
  %6060 = vmatpush1.bf16.msra.mxu0 %v4811
  %6061 = vmatprep.subr.bf16.mxu0 %v4804
  %6062 = vmatpush1.bf16.msra.mxu0 %v4803
  %6063 = vmatprep.subr.bf16.mxu0 %v4796
  %6064 = vmatpush1.bf16.msra.mxu0 %v4795
  %6065 = vmatprep.subr.bf16.mxu0 %v4788
  %6066 = vmatpush1.bf16.msra.mxu0 %v4787
  %6067 = vmatprep.subr.bf16.mxu0 %v4780
  %6068 = vmatpush1.bf16.msra.mxu0 %v4779
  %6069 = vmatprep.subr.bf16.mxu0 %v4772
  %6070 = vmatpush1.bf16.msra.mxu0 %v4771
  %6071 = vmatprep.subr.bf16.mxu0 %v4764
  %6072 = vmatpush1.bf16.msra.mxu0 %v4763
  %6073 = vmatprep.subr.bf16.mxu0 %v4884
  %6074 = vmatpush2.bf16.msra.mxu0 %v4883
  %6075 = vmatprep.subr.bf16.mxu0 %v4876
  %6076 = vmatpush2.bf16.msra.mxu0 %v4875
  %6077 = vmatprep.subr.bf16.mxu0 %v4868
  %6078 = vmatpush2.bf16.msra.mxu0 %v4867
  %6079 = vmatprep.subr.bf16.mxu0 %v4860
  %6080 = vmatpush2.bf16.msra.mxu0 %v4859
  %6081 = vmatprep.subr.bf16.mxu0 %v4852
  %6082 = vmatpush2.bf16.msra.mxu0 %v4851
  %6083 = vmatprep.subr.bf16.mxu0 %v4844
  %6084 = vmatpush2.bf16.msra.mxu0 %v4843
  %6085 = vmatprep.subr.bf16.mxu0 %v4836
  %6086 = vmatpush2.bf16.msra.mxu0 %v4835
  %6087 = vmatprep.subr.bf16.mxu0 %v4828
  %6088 = vmatpush2.bf16.msra.mxu0 %v4827
  %6089 = vmatprep.mubr.bf16.mxu0 %v2402
  %6090 = vmatmul.mubr.bf16.gmra.mxu0 %v2401
  %v6091 = vpop.f32.mrf.mxu0
  %v6092 = vadd.f32 %v6039, %v6091
  %v6093 = vpop.f32.mrf.mxu0
  %v6094 = vadd.f32 %v6041, %v6093
  %v6095 = vpop.f32.mrf.mxu0
  %v6096 = vadd.f32 %v6043, %v6095
  %v6097 = vpop.f32.mrf.mxu0
  %v6098 = vadd.f32 %v6045, %v6097
  %6099 = vmatprep.mubr.bf16.mxu0 %v2410
  %6100 = vmatmul.mubr.bf16.gmra.mxu0 %v2409
  %v6101 = vpop.f32.mrf.mxu0
  %v6102 = vadd.f32 %v6049, %v6101
  %v6103 = vpop.f32.mrf.mxu0
  %v6104 = vadd.f32 %v6051, %v6103
  %v6105 = vpop.f32.mrf.mxu0
  %v6106 = vadd.f32 %v6053, %v6105
  %v6107 = vpop.f32.mrf.mxu0
  %v6108 = vadd.f32 %v6055, %v6107
  %6109 = vdwg.mxu0
  %6110 = vmatprep.subr.bf16.mxu0 %v4948
  %6111 = vmatpush1.bf16.msra.mxu0 %v4947
  %6112 = vmatprep.subr.bf16.mxu0 %v4940
  %6113 = vmatpush1.bf16.msra.mxu0 %v4939
  %6114 = vmatprep.subr.bf16.mxu0 %v4932
  %6115 = vmatpush1.bf16.msra.mxu0 %v4931
  %6116 = vmatprep.subr.bf16.mxu0 %v4924
  %6117 = vmatpush1.bf16.msra.mxu0 %v4923
  %6118 = vmatprep.subr.bf16.mxu0 %v4916
  %6119 = vmatpush1.bf16.msra.mxu0 %v4915
  %6120 = vmatprep.subr.bf16.mxu0 %v4908
  %6121 = vmatpush1.bf16.msra.mxu0 %v4907
  %6122 = vmatprep.subr.bf16.mxu0 %v4900
  %6123 = vmatpush1.bf16.msra.mxu0 %v4899
  %6124 = vmatprep.subr.bf16.mxu0 %v4892
  %6125 = vmatpush1.bf16.msra.mxu0 %v4891
  %6126 = vmatprep.subr.bf16.mxu0 %v5012
  %6127 = vmatpush2.bf16.msra.mxu0 %v5011
  %6128 = vmatprep.subr.bf16.mxu0 %v5004
  %6129 = vmatpush2.bf16.msra.mxu0 %v5003
  %6130 = vmatprep.subr.bf16.mxu0 %v4996
  %6131 = vmatpush2.bf16.msra.mxu0 %v4995
  %6132 = vmatprep.subr.bf16.mxu0 %v4988
  %6133 = vmatpush2.bf16.msra.mxu0 %v4987
  %6134 = vmatprep.subr.bf16.mxu0 %v4980
  %6135 = vmatpush2.bf16.msra.mxu0 %v4979
  %6136 = vmatprep.subr.bf16.mxu0 %v4972
  %6137 = vmatpush2.bf16.msra.mxu0 %v4971
  %6138 = vmatprep.subr.bf16.mxu0 %v4964
  %6139 = vmatpush2.bf16.msra.mxu0 %v4963
  %6140 = vmatprep.subr.bf16.mxu0 %v4956
  %6141 = vmatpush2.bf16.msra.mxu0 %v4955
  %6142 = vmatprep.mubr.bf16.mxu0 %v2404
  %6143 = vmatmul.mubr.bf16.gmra.mxu0 %v2403
  %v6144 = vpop.f32.mrf.mxu0
  %v6145 = vadd.f32 %v6092, %v6144
  %v6146 = vpop.f32.mrf.mxu0
  %v6147 = vadd.f32 %v6094, %v6146
  %v6148 = vpop.f32.mrf.mxu0
  %v6149 = vadd.f32 %v6096, %v6148
  %v6150 = vpop.f32.mrf.mxu0
  %v6151 = vadd.f32 %v6098, %v6150
  %6152 = vmatprep.mubr.bf16.mxu0 %v2412
  %6153 = vmatmul.mubr.bf16.gmra.mxu0 %v2411
  %v6154 = vpop.f32.mrf.mxu0
  %v6155 = vadd.f32 %v6102, %v6154
  %v6156 = vpop.f32.mrf.mxu0
  %v6157 = vadd.f32 %v6104, %v6156
  %v6158 = vpop.f32.mrf.mxu0
  %v6159 = vadd.f32 %v6106, %v6158
  %v6160 = vpop.f32.mrf.mxu0
  %v6161 = vadd.f32 %v6108, %v6160
  %6162 = vdwg.mxu0
  %6163 = vmatprep.subr.bf16.mxu0 %v4566
  %6164 = vmatpush1.bf16.msra.mxu0 %v4565
  %6165 = vmatprep.subr.bf16.mxu0 %v4558
  %6166 = vmatpush1.bf16.msra.mxu0 %v4557
  %6167 = vmatprep.subr.bf16.mxu0 %v4550
  %6168 = vmatpush1.bf16.msra.mxu0 %v4549
  %6169 = vmatprep.subr.bf16.mxu0 %v4542
  %6170 = vmatpush1.bf16.msra.mxu0 %v4541
  %6171 = vmatprep.subr.bf16.mxu0 %v4534
  %6172 = vmatpush1.bf16.msra.mxu0 %v4533
  %6173 = vmatprep.subr.bf16.mxu0 %v4526
  %6174 = vmatpush1.bf16.msra.mxu0 %v4525
  %6175 = vmatprep.subr.bf16.mxu0 %v4518
  %6176 = vmatpush1.bf16.msra.mxu0 %v4517
  %6177 = vmatprep.subr.bf16.mxu0 %v4510
  %6178 = vmatpush1.bf16.msra.mxu0 %v4509
  %6179 = vmatprep.subr.bf16.mxu0 %v4630
  %6180 = vmatpush2.bf16.msra.mxu0 %v4629
  %6181 = vmatprep.subr.bf16.mxu0 %v4622
  %6182 = vmatpush2.bf16.msra.mxu0 %v4621
  %6183 = vmatprep.subr.bf16.mxu0 %v4614
  %6184 = vmatpush2.bf16.msra.mxu0 %v4613
  %6185 = vmatprep.subr.bf16.mxu0 %v4606
  %6186 = vmatpush2.bf16.msra.mxu0 %v4605
  %6187 = vmatprep.subr.bf16.mxu0 %v4598
  %6188 = vmatpush2.bf16.msra.mxu0 %v4597
  %6189 = vmatprep.subr.bf16.mxu0 %v4590
  %6190 = vmatpush2.bf16.msra.mxu0 %v4589
  %6191 = vmatprep.subr.bf16.mxu0 %v4582
  %6192 = vmatpush2.bf16.msra.mxu0 %v4581
  %6193 = vmatprep.subr.bf16.mxu0 %v4574
  %6194 = vmatpush2.bf16.msra.mxu0 %v4573
  %6195 = vmatprep.mubr.bf16.mxu0 %v2398
  %6196 = vmatmul.mubr.bf16.gmra.mxu0 %v2397
  %v6197 = vpop.f32.mrf.mxu0
  %v6198 = vadd.f32 %v2954, %v6197
  %v6199 = vpop.f32.mrf.mxu0
  %v6200 = vadd.f32 %v2958, %v6199
  %v6201 = vpop.f32.mrf.mxu0
  %v6202 = vadd.f32 %v2954, %v6201
  %v6203 = vpop.f32.mrf.mxu0
  %v6204 = vadd.f32 %v2958, %v6203
  %6205 = vmatprep.mubr.bf16.mxu0 %v2406
  %6206 = vmatmul.mubr.bf16.gmra.mxu0 %v2405
  %v6207 = vpop.f32.mrf.mxu0
  %v6208 = vadd.f32 %v2954, %v6207
  %v6209 = vpop.f32.mrf.mxu0
  %v6210 = vadd.f32 %v2958, %v6209
  %v6211 = vpop.f32.mrf.mxu0
  %v6212 = vadd.f32 %v2954, %v6211
  %v6213 = vpop.f32.mrf.mxu0
  %v6214 = vadd.f32 %v2958, %v6213
  %6215 = vdwg.mxu0
  %6216 = vmatprep.subr.bf16.mxu0 %v4694
  %6217 = vmatpush1.bf16.msra.mxu0 %v4693
  %6218 = vmatprep.subr.bf16.mxu0 %v4686
  %6219 = vmatpush1.bf16.msra.mxu0 %v4685
  %6220 = vmatprep.subr.bf16.mxu0 %v4678
  %6221 = vmatpush1.bf16.msra.mxu0 %v4677
  %6222 = vmatprep.subr.bf16.mxu0 %v4670
  %6223 = vmatpush1.bf16.msra.mxu0 %v4669
  %6224 = vmatprep.subr.bf16.mxu0 %v4662
  %6225 = vmatpush1.bf16.msra.mxu0 %v4661
  %6226 = vmatprep.subr.bf16.mxu0 %v4654
  %6227 = vmatpush1.bf16.msra.mxu0 %v4653
  %6228 = vmatprep.subr.bf16.mxu0 %v4646
  %6229 = vmatpush1.bf16.msra.mxu0 %v4645
  %6230 = vmatprep.subr.bf16.mxu0 %v4638
  %6231 = vmatpush1.bf16.msra.mxu0 %v4637
  %6232 = vmatprep.subr.bf16.mxu0 %v4758
  %6233 = vmatpush2.bf16.msra.mxu0 %v4757
  %6234 = vmatprep.subr.bf16.mxu0 %v4750
  %6235 = vmatpush2.bf16.msra.mxu0 %v4749
  %6236 = vmatprep.subr.bf16.mxu0 %v4742
  %6237 = vmatpush2.bf16.msra.mxu0 %v4741
  %6238 = vmatprep.subr.bf16.mxu0 %v4734
  %6239 = vmatpush2.bf16.msra.mxu0 %v4733
  %6240 = vmatprep.subr.bf16.mxu0 %v4726
  %6241 = vmatpush2.bf16.msra.mxu0 %v4725
  %6242 = vmatprep.subr.bf16.mxu0 %v4718
  %6243 = vmatpush2.bf16.msra.mxu0 %v4717
  %6244 = vmatprep.subr.bf16.mxu0 %v4710
  %6245 = vmatpush2.bf16.msra.mxu0 %v4709
  %6246 = vmatprep.subr.bf16.mxu0 %v4702
  %6247 = vmatpush2.bf16.msra.mxu0 %v4701
  %6248 = vmatprep.mubr.bf16.mxu0 %v2400
  %6249 = vmatmul.mubr.bf16.gmra.mxu0 %v2399
  %v6250 = vpop.f32.mrf.mxu0
  %v6251 = vadd.f32 %v6198, %v6250
  %v6252 = vpop.f32.mrf.mxu0
  %v6253 = vadd.f32 %v6200, %v6252
  %v6254 = vpop.f32.mrf.mxu0
  %v6255 = vadd.f32 %v6202, %v6254
  %v6256 = vpop.f32.mrf.mxu0
  %v6257 = vadd.f32 %v6204, %v6256
  %6258 = vmatprep.mubr.bf16.mxu0 %v2408
  %6259 = vmatmul.mubr.bf16.gmra.mxu0 %v2407
  %v6260 = vpop.f32.mrf.mxu0
  %v6261 = vadd.f32 %v6208, %v6260
  %v6262 = vpop.f32.mrf.mxu0
  %v6263 = vadd.f32 %v6210, %v6262
  %v6264 = vpop.f32.mrf.mxu0
  %v6265 = vadd.f32 %v6212, %v6264
  %v6266 = vpop.f32.mrf.mxu0
  %v6267 = vadd.f32 %v6214, %v6266
  %6268 = vdwg.mxu0
  %6269 = vmatprep.subr.bf16.mxu0 %v4822
  %6270 = vmatpush1.bf16.msra.mxu0 %v4821
  %6271 = vmatprep.subr.bf16.mxu0 %v4814
  %6272 = vmatpush1.bf16.msra.mxu0 %v4813
  %6273 = vmatprep.subr.bf16.mxu0 %v4806
  %6274 = vmatpush1.bf16.msra.mxu0 %v4805
  %6275 = vmatprep.subr.bf16.mxu0 %v4798
  %6276 = vmatpush1.bf16.msra.mxu0 %v4797
  %6277 = vmatprep.subr.bf16.mxu0 %v4790
  %6278 = vmatpush1.bf16.msra.mxu0 %v4789
  %6279 = vmatprep.subr.bf16.mxu0 %v4782
  %6280 = vmatpush1.bf16.msra.mxu0 %v4781
  %6281 = vmatprep.subr.bf16.mxu0 %v4774
  %6282 = vmatpush1.bf16.msra.mxu0 %v4773
  %6283 = vmatprep.subr.bf16.mxu0 %v4766
  %6284 = vmatpush1.bf16.msra.mxu0 %v4765
  %6285 = vmatprep.subr.bf16.mxu0 %v4886
  %6286 = vmatpush2.bf16.msra.mxu0 %v4885
  %6287 = vmatprep.subr.bf16.mxu0 %v4878
  %6288 = vmatpush2.bf16.msra.mxu0 %v4877
  %6289 = vmatprep.subr.bf16.mxu0 %v4870
  %6290 = vmatpush2.bf16.msra.mxu0 %v4869
  %6291 = vmatprep.subr.bf16.mxu0 %v4862
  %6292 = vmatpush2.bf16.msra.mxu0 %v4861
  %6293 = vmatprep.subr.bf16.mxu0 %v4854
  %6294 = vmatpush2.bf16.msra.mxu0 %v4853
  %6295 = vmatprep.subr.bf16.mxu0 %v4846
  %6296 = vmatpush2.bf16.msra.mxu0 %v4845
  %6297 = vmatprep.subr.bf16.mxu0 %v4838
  %6298 = vmatpush2.bf16.msra.mxu0 %v4837
  %6299 = vmatprep.subr.bf16.mxu0 %v4830
  %6300 = vmatpush2.bf16.msra.mxu0 %v4829
  %6301 = vmatprep.mubr.bf16.mxu0 %v2402
  %6302 = vmatmul.mubr.bf16.gmra.mxu0 %v2401
  %v6303 = vpop.f32.mrf.mxu0
  %v6304 = vadd.f32 %v6251, %v6303
  %v6305 = vpop.f32.mrf.mxu0
  %v6306 = vadd.f32 %v6253, %v6305
  %v6307 = vpop.f32.mrf.mxu0
  %v6308 = vadd.f32 %v6255, %v6307
  %v6309 = vpop.f32.mrf.mxu0
  %v6310 = vadd.f32 %v6257, %v6309
  %6311 = vmatprep.mubr.bf16.mxu0 %v2410
  %6312 = vmatmul.mubr.bf16.gmra.mxu0 %v2409
  %v6313 = vpop.f32.mrf.mxu0
  %v6314 = vadd.f32 %v6261, %v6313
  %v6315 = vpop.f32.mrf.mxu0
  %v6316 = vadd.f32 %v6263, %v6315
  %v6317 = vpop.f32.mrf.mxu0
  %v6318 = vadd.f32 %v6265, %v6317
  %v6319 = vpop.f32.mrf.mxu0
  %v6320 = vadd.f32 %v6267, %v6319
  %6321 = vdwg.mxu0
  %6322 = vmatprep.subr.bf16.mxu0 %v4950
  %6323 = vmatpush1.bf16.msra.mxu0 %v4949
  %6324 = vmatprep.subr.bf16.mxu0 %v4942
  %6325 = vmatpush1.bf16.msra.mxu0 %v4941
  %6326 = vmatprep.subr.bf16.mxu0 %v4934
  %6327 = vmatpush1.bf16.msra.mxu0 %v4933
  %6328 = vmatprep.subr.bf16.mxu0 %v4926
  %6329 = vmatpush1.bf16.msra.mxu0 %v4925
  %6330 = vmatprep.subr.bf16.mxu0 %v4918
  %6331 = vmatpush1.bf16.msra.mxu0 %v4917
  %6332 = vmatprep.subr.bf16.mxu0 %v4910
  %6333 = vmatpush1.bf16.msra.mxu0 %v4909
  %6334 = vmatprep.subr.bf16.mxu0 %v4902
  %6335 = vmatpush1.bf16.msra.mxu0 %v4901
  %6336 = vmatprep.subr.bf16.mxu0 %v4894
  %6337 = vmatpush1.bf16.msra.mxu0 %v4893
  %6338 = vmatprep.subr.bf16.mxu0 %v5014
  %6339 = vmatpush2.bf16.msra.mxu0 %v5013
  %6340 = vmatprep.subr.bf16.mxu0 %v5006
  %6341 = vmatpush2.bf16.msra.mxu0 %v5005
  %6342 = vmatprep.subr.bf16.mxu0 %v4998
  %6343 = vmatpush2.bf16.msra.mxu0 %v4997
  %6344 = vmatprep.subr.bf16.mxu0 %v4990
  %6345 = vmatpush2.bf16.msra.mxu0 %v4989
  %6346 = vmatprep.subr.bf16.mxu0 %v4982
  %6347 = vmatpush2.bf16.msra.mxu0 %v4981
  %6348 = vmatprep.subr.bf16.mxu0 %v4974
  %6349 = vmatpush2.bf16.msra.mxu0 %v4973
  %6350 = vmatprep.subr.bf16.mxu0 %v4966
  %6351 = vmatpush2.bf16.msra.mxu0 %v4965
  %6352 = vmatprep.subr.bf16.mxu0 %v4958
  %6353 = vmatpush2.bf16.msra.mxu0 %v4957
  %6354 = vmatprep.mubr.bf16.mxu0 %v2404
  %6355 = vmatmul.mubr.bf16.gmra.mxu0 %v2403
  %v6356 = vpop.f32.mrf.mxu0
  %v6357 = vadd.f32 %v6304, %v6356
  %v6358 = vpop.f32.mrf.mxu0
  %v6359 = vadd.f32 %v6306, %v6358
  %v6360 = vpop.f32.mrf.mxu0
  %v6361 = vadd.f32 %v6308, %v6360
  %v6362 = vpop.f32.mrf.mxu0
  %v6363 = vadd.f32 %v6310, %v6362
  %6364 = vmatprep.mubr.bf16.mxu0 %v2412
  %6365 = vmatmul.mubr.bf16.gmra.mxu0 %v2411
  %v6366 = vpop.f32.mrf.mxu0
  %v6367 = vadd.f32 %v6314, %v6366
  %v6368 = vpop.f32.mrf.mxu0
  %v6369 = vadd.f32 %v6316, %v6368
  %v6370 = vpop.f32.mrf.mxu0
  %v6371 = vadd.f32 %v6318, %v6370
  %v6372 = vpop.f32.mrf.mxu0
  %v6373 = vadd.f32 %v6320, %v6372
  %6374 = vdwg.mxu0
  %v6375 = vmax.f32 %v5721, 0.0
  %v6376 = vmax.f32 %v5723, 0.0
  %v6377 = vmax.f32 %v5933, 0.0
  %v6378 = vmax.f32 %v5935, 0.0
  %v6379 = vmax.f32 %v6145, 0.0
  %v6380 = vmax.f32 %v6147, 0.0
  %v6381 = vmax.f32 %v6357, 0.0
  %v6382 = vmax.f32 %v6359, 0.0
  %v6383 = vmax.f32 %v5725, 0.0
  %v6384 = vmax.f32 %v5727, 0.0
  %v6385 = vmax.f32 %v5937, 0.0
  %v6386 = vmax.f32 %v5939, 0.0
  %v6387 = vmax.f32 %v6149, 0.0
  %v6388 = vmax.f32 %v6151, 0.0
  %v6389 = vmax.f32 %v6361, 0.0
  %v6390 = vmax.f32 %v6363, 0.0
  %v6391 = vmax.f32 %v5731, 0.0
  %v6392 = vmax.f32 %v5733, 0.0
  %v6393 = vmax.f32 %v5943, 0.0
  %v6394 = vmax.f32 %v5945, 0.0
  %v6395 = vmax.f32 %v6155, 0.0
  %v6396 = vmax.f32 %v6157, 0.0
  %v6397 = vmax.f32 %v6367, 0.0
  %v6398 = vmax.f32 %v6369, 0.0
  %v6399 = vmax.f32 %v5735, 0.0
  %v6400 = vmax.f32 %v5737, 0.0
  %v6401 = vmax.f32 %v5947, 0.0
  %v6402 = vmax.f32 %v5949, 0.0
  %v6403 = vmax.f32 %v6159, 0.0
  %v6404 = vmax.f32 %v6161, 0.0
  %v6405 = vmax.f32 %v6371, 0.0
  %v6406 = vmax.f32 %v6373, 0.0
  %v6407 = vpack.c.bf16 %v6383, %v6375
  %v6408 = vpack.c.bf16 %v6384, %v6376
  %v6409 = vpack.c.bf16 %v6385, %v6377
  %v6410 = vpack.c.bf16 %v6386, %v6378
  %v6411 = vpack.c.bf16 %v6387, %v6379
  %v6412 = vpack.c.bf16 %v6388, %v6380
  %v6413 = vpack.c.bf16 %v6389, %v6381
  %v6414 = vpack.c.bf16 %v6390, %v6382
  %v6415 = vpack.c.bf16 %v6399, %v6391
  %v6416 = vpack.c.bf16 %v6400, %v6392
  %v6417 = vpack.c.bf16 %v6401, %v6393
  %v6418 = vpack.c.bf16 %v6402, %v6394
  %v6419 = vpack.c.bf16 %v6403, %v6395
  %v6420 = vpack.c.bf16 %v6404, %v6396
  %v6421 = vpack.c.bf16 %v6405, %v6397
  %v6422 = vpack.c.bf16 %v6406, %v6398
  %v6423 = vld [vmem:[%s7] sm:$0xf]
  %v6424 = vld [vmem:[%s7 + $0x4] sm:$0xf]
  %v6425 = vld [vmem:[%s7 + $0x8] sm:$0xf]
  %v6426 = vld [vmem:[%s7 + $0xc] sm:$0xf]
  %v6427 = vld [vmem:[%s7 + $0x10] sm:$0xf]
  %v6428 = vld [vmem:[%s7 + $0x14] sm:$0xf]
  %v6429 = vld [vmem:[%s7 + $0x18] sm:$0xf]
  %v6430 = vld [vmem:[%s7 + $0x1c] sm:$0xf]
  %v6431 = vld [vmem:[%s7 + $0x20] sm:$0xf]
  %v6432 = vld [vmem:[%s7 + $0x24] sm:$0xf]
  %v6433 = vld [vmem:[%s7 + $0x28] sm:$0xf]
  %v6434 = vld [vmem:[%s7 + $0x2c] sm:$0xf]
  %v6435 = vld [vmem:[%s7 + $0x30] sm:$0xf]
  %v6436 = vld [vmem:[%s7 + $0x34] sm:$0xf]
  %v6437 = vld [vmem:[%s7 + $0x38] sm:$0xf]
  %v6438 = vld [vmem:[%s7 + $0x3c] sm:$0xf]
  %v6439 = vld [vmem:[%s7 + $0x40] sm:$0xf]
  %v6440 = vld [vmem:[%s7 + $0x44] sm:$0xf]
  %v6441 = vld [vmem:[%s7 + $0x48] sm:$0xf]
  %v6442 = vld [vmem:[%s7 + $0x4c] sm:$0xf]
  %v6443 = vld [vmem:[%s7 + $0x50] sm:$0xf]
  %v6444 = vld [vmem:[%s7 + $0x54] sm:$0xf]
  %v6445 = vld [vmem:[%s7 + $0x58] sm:$0xf]
  %v6446 = vld [vmem:[%s7 + $0x5c] sm:$0xf]
  %v6447 = vld [vmem:[%s7 + $0x60] sm:$0xf]
  %v6448 = vld [vmem:[%s7 + $0x64] sm:$0xf]
  %v6449 = vld [vmem:[%s7 + $0x68] sm:$0xf]
  %v6450 = vld [vmem:[%s7 + $0x6c] sm:$0xf]
  %v6451 = vld [vmem:[%s7 + $0x70] sm:$0xf]
  %v6452 = vld [vmem:[%s7 + $0x74] sm:$0xf]
  %v6453 = vld [vmem:[%s7 + $0x78] sm:$0xf]
  %v6454 = vld [vmem:[%s7 + $0x7c] sm:$0xf]
  %v6455 = vld [vmem:[%s7 + $0x80] sm:$0xf]
  %v6456 = vld [vmem:[%s7 + $0x84] sm:$0xf]
  %v6457 = vld [vmem:[%s7 + $0x88] sm:$0xf]
  %v6458 = vld [vmem:[%s7 + $0x8c] sm:$0xf]
  %v6459 = vld [vmem:[%s7 + $0x90] sm:$0xf]
  %v6460 = vld [vmem:[%s7 + $0x94] sm:$0xf]
  %v6461 = vld [vmem:[%s7 + $0x98] sm:$0xf]
  %v6462 = vld [vmem:[%s7 + $0x9c] sm:$0xf]
  %v6463 = vld [vmem:[%s7 + $0xa0] sm:$0xf]
  %v6464 = vld [vmem:[%s7 + $0xa4] sm:$0xf]
  %v6465 = vld [vmem:[%s7 + $0xa8] sm:$0xf]
  %v6466 = vld [vmem:[%s7 + $0xac] sm:$0xf]
  %v6467 = vld [vmem:[%s7 + $0xb0] sm:$0xf]
  %v6468 = vld [vmem:[%s7 + $0xb4] sm:$0xf]
  %v6469 = vld [vmem:[%s7 + $0xb8] sm:$0xf]
  %v6470 = vld [vmem:[%s7 + $0xbc] sm:$0xf]
  %v6471 = vld [vmem:[%s7 + $0xc0] sm:$0xf]
  %v6472 = vld [vmem:[%s7 + $0xc4] sm:$0xf]
  %v6473 = vld [vmem:[%s7 + $0xc8] sm:$0xf]
  %v6474 = vld [vmem:[%s7 + $0xcc] sm:$0xf]
  %v6475 = vld [vmem:[%s7 + $0xd0] sm:$0xf]
  %v6476 = vld [vmem:[%s7 + $0xd4] sm:$0xf]
  %v6477 = vld [vmem:[%s7 + $0xd8] sm:$0xf]
  %v6478 = vld [vmem:[%s7 + $0xdc] sm:$0xf]
  %v6479 = vld [vmem:[%s7 + $0xe0] sm:$0xf]
  %v6480 = vld [vmem:[%s7 + $0xe4] sm:$0xf]
  %v6481 = vld [vmem:[%s7 + $0xe8] sm:$0xf]
  %v6482 = vld [vmem:[%s7 + $0xec] sm:$0xf]
  %v6483 = vld [vmem:[%s7 + $0xf0] sm:$0xf]
  %v6484 = vld [vmem:[%s7 + $0xf4] sm:$0xf]
  %v6485 = vld [vmem:[%s7 + $0xf8] sm:$0xf]
  %v6486 = vld [vmem:[%s7 + $0xfc] sm:$0xf]
  %v6487 = vld [vmem:[%s7 + $0x100] sm:$0xf]
  %v6488 = vld [vmem:[%s7 + $0x104] sm:$0xf]
  %v6489 = vld [vmem:[%s7 + $0x108] sm:$0xf]
  %v6490 = vld [vmem:[%s7 + $0x10c] sm:$0xf]
  %v6491 = vld [vmem:[%s7 + $0x110] sm:$0xf]
  %v6492 = vld [vmem:[%s7 + $0x114] sm:$0xf]
  %v6493 = vld [vmem:[%s7 + $0x118] sm:$0xf]
  %v6494 = vld [vmem:[%s7 + $0x11c] sm:$0xf]
  %v6495 = vld [vmem:[%s7 + $0x120] sm:$0xf]
  %v6496 = vld [vmem:[%s7 + $0x124] sm:$0xf]
  %v6497 = vld [vmem:[%s7 + $0x128] sm:$0xf]
  %v6498 = vld [vmem:[%s7 + $0x12c] sm:$0xf]
  %v6499 = vld [vmem:[%s7 + $0x130] sm:$0xf]
  %v6500 = vld [vmem:[%s7 + $0x134] sm:$0xf]
  %v6501 = vld [vmem:[%s7 + $0x138] sm:$0xf]
  %v6502 = vld [vmem:[%s7 + $0x13c] sm:$0xf]
  %v6503 = vld [vmem:[%s7 + $0x140] sm:$0xf]
  %v6504 = vld [vmem:[%s7 + $0x144] sm:$0xf]
  %v6505 = vld [vmem:[%s7 + $0x148] sm:$0xf]
  %v6506 = vld [vmem:[%s7 + $0x14c] sm:$0xf]
  %v6507 = vld [vmem:[%s7 + $0x150] sm:$0xf]
  %v6508 = vld [vmem:[%s7 + $0x154] sm:$0xf]
  %v6509 = vld [vmem:[%s7 + $0x158] sm:$0xf]
  %v6510 = vld [vmem:[%s7 + $0x15c] sm:$0xf]
  %v6511 = vld [vmem:[%s7 + $0x160] sm:$0xf]
  %v6512 = vld [vmem:[%s7 + $0x164] sm:$0xf]
  %v6513 = vld [vmem:[%s7 + $0x168] sm:$0xf]
  %v6514 = vld [vmem:[%s7 + $0x16c] sm:$0xf]
  %v6515 = vld [vmem:[%s7 + $0x170] sm:$0xf]
  %v6516 = vld [vmem:[%s7 + $0x174] sm:$0xf]
  %v6517 = vld [vmem:[%s7 + $0x178] sm:$0xf]
  %v6518 = vld [vmem:[%s7 + $0x17c] sm:$0xf]
  %v6519 = vld [vmem:[%s7 + $0x180] sm:$0xf]
  %v6520 = vld [vmem:[%s7 + $0x184] sm:$0xf]
  %v6521 = vld [vmem:[%s7 + $0x188] sm:$0xf]
  %v6522 = vld [vmem:[%s7 + $0x18c] sm:$0xf]
  %v6523 = vld [vmem:[%s7 + $0x190] sm:$0xf]
  %v6524 = vld [vmem:[%s7 + $0x194] sm:$0xf]
  %v6525 = vld [vmem:[%s7 + $0x198] sm:$0xf]
  %v6526 = vld [vmem:[%s7 + $0x19c] sm:$0xf]
  %v6527 = vld [vmem:[%s7 + $0x1a0] sm:$0xf]
  %v6528 = vld [vmem:[%s7 + $0x1a4] sm:$0xf]
  %v6529 = vld [vmem:[%s7 + $0x1a8] sm:$0xf]
  %v6530 = vld [vmem:[%s7 + $0x1ac] sm:$0xf]
  %v6531 = vld [vmem:[%s7 + $0x1b0] sm:$0xf]
  %v6532 = vld [vmem:[%s7 + $0x1b4] sm:$0xf]
  %v6533 = vld [vmem:[%s7 + $0x1b8] sm:$0xf]
  %v6534 = vld [vmem:[%s7 + $0x1bc] sm:$0xf]
  %v6535 = vld [vmem:[%s7 + $0x1c0] sm:$0xf]
  %v6536 = vld [vmem:[%s7 + $0x1c4] sm:$0xf]
  %v6537 = vld [vmem:[%s7 + $0x1c8] sm:$0xf]
  %v6538 = vld [vmem:[%s7 + $0x1cc] sm:$0xf]
  %v6539 = vld [vmem:[%s7 + $0x1d0] sm:$0xf]
  %v6540 = vld [vmem:[%s7 + $0x1d4] sm:$0xf]
  %v6541 = vld [vmem:[%s7 + $0x1d8] sm:$0xf]
  %v6542 = vld [vmem:[%s7 + $0x1dc] sm:$0xf]
  %v6543 = vld [vmem:[%s7 + $0x1e0] sm:$0xf]
  %v6544 = vld [vmem:[%s7 + $0x1e4] sm:$0xf]
  %v6545 = vld [vmem:[%s7 + $0x1e8] sm:$0xf]
  %v6546 = vld [vmem:[%s7 + $0x1ec] sm:$0xf]
  %v6547 = vld [vmem:[%s7 + $0x1f0] sm:$0xf]
  %v6548 = vld [vmem:[%s7 + $0x1f4] sm:$0xf]
  %v6549 = vld [vmem:[%s7 + $0x1f8] sm:$0xf]
  %v6550 = vld [vmem:[%s7 + $0x1fc] sm:$0xf]
  %v6551 = vld [vmem:[%s8] sm:$0x1]
  %v6553 = vlaneseq
  %v6554 = vshrl.u32 %v6553, 7
  %v6555 = vsub.s32 0, %v6554
  %v6556 = vrot.slane %v6551, %v6555
  %v6686 = vunpack.c.l.b16 %v6423
  %v6687 = vunpack.c.l.b16 %v6424
  %v6688 = vunpack.c.l.b16 %v6425
  %v6689 = vunpack.c.l.b16 %v6426
  %v6690 = vunpack.c.l.b16 %v6427
  %v6691 = vunpack.c.l.b16 %v6428
  %v6692 = vunpack.c.l.b16 %v6429
  %v6693 = vunpack.c.l.b16 %v6430
  %v6694 = vunpack.c.l.b16 %v6431
  %v6695 = vunpack.c.l.b16 %v6432
  %v6696 = vunpack.c.l.b16 %v6433
  %v6697 = vunpack.c.l.b16 %v6434
  %v6698 = vunpack.c.l.b16 %v6435
  %v6699 = vunpack.c.l.b16 %v6436
  %v6700 = vunpack.c.l.b16 %v6437
  %v6701 = vunpack.c.l.b16 %v6438
  %v6702 = vunpack.c.l.b16 %v6439
  %v6703 = vunpack.c.l.b16 %v6440
  %v6704 = vunpack.c.l.b16 %v6441
  %v6705 = vunpack.c.l.b16 %v6442
  %v6706 = vunpack.c.l.b16 %v6443
  %v6707 = vunpack.c.l.b16 %v6444
  %v6708 = vunpack.c.l.b16 %v6445
  %v6709 = vunpack.c.l.b16 %v6446
  %v6710 = vunpack.c.l.b16 %v6447
  %v6711 = vunpack.c.l.b16 %v6448
  %v6712 = vunpack.c.l.b16 %v6449
  %v6713 = vunpack.c.l.b16 %v6450
  %v6714 = vunpack.c.l.b16 %v6451
  %v6715 = vunpack.c.l.b16 %v6452
  %v6716 = vunpack.c.l.b16 %v6453
  %v6717 = vunpack.c.l.b16 %v6454
  %v6718 = vunpack.c.l.b16 %v6455
  %v6719 = vunpack.c.l.b16 %v6456
  %v6720 = vunpack.c.l.b16 %v6457
  %v6721 = vunpack.c.l.b16 %v6458
  %v6722 = vunpack.c.l.b16 %v6459
  %v6723 = vunpack.c.l.b16 %v6460
  %v6724 = vunpack.c.l.b16 %v6461
  %v6725 = vunpack.c.l.b16 %v6462
  %v6726 = vunpack.c.l.b16 %v6463
  %v6727 = vunpack.c.l.b16 %v6464
  %v6728 = vunpack.c.l.b16 %v6465
  %v6729 = vunpack.c.l.b16 %v6466
  %v6730 = vunpack.c.l.b16 %v6467
  %v6731 = vunpack.c.l.b16 %v6468
  %v6732 = vunpack.c.l.b16 %v6469
  %v6733 = vunpack.c.l.b16 %v6470
  %v6734 = vunpack.c.l.b16 %v6471
  %v6735 = vunpack.c.l.b16 %v6472
  %v6736 = vunpack.c.l.b16 %v6473
  %v6737 = vunpack.c.l.b16 %v6474
  %v6738 = vunpack.c.l.b16 %v6475
  %v6739 = vunpack.c.l.b16 %v6476
  %v6740 = vunpack.c.l.b16 %v6477
  %v6741 = vunpack.c.l.b16 %v6478
  %v6742 = vunpack.c.l.b16 %v6479
  %v6743 = vunpack.c.l.b16 %v6480
  %v6744 = vunpack.c.l.b16 %v6481
  %v6745 = vunpack.c.l.b16 %v6482
  %v6746 = vunpack.c.l.b16 %v6483
  %v6747 = vunpack.c.l.b16 %v6484
  %v6748 = vunpack.c.l.b16 %v6485
  %v6749 = vunpack.c.l.b16 %v6486
  %v6750 = vunpack.c.l.b16 %v6487
  %v6751 = vunpack.c.l.b16 %v6488
  %v6752 = vunpack.c.l.b16 %v6489
  %v6753 = vunpack.c.l.b16 %v6490
  %v6754 = vunpack.c.l.b16 %v6491
  %v6755 = vunpack.c.l.b16 %v6492
  %v6756 = vunpack.c.l.b16 %v6493
  %v6757 = vunpack.c.l.b16 %v6494
  %v6758 = vunpack.c.l.b16 %v6495
  %v6759 = vunpack.c.l.b16 %v6496
  %v6760 = vunpack.c.l.b16 %v6497
  %v6761 = vunpack.c.l.b16 %v6498
  %v6762 = vunpack.c.l.b16 %v6499
  %v6763 = vunpack.c.l.b16 %v6500
  %v6764 = vunpack.c.l.b16 %v6501
  %v6765 = vunpack.c.l.b16 %v6502
  %v6766 = vunpack.c.l.b16 %v6503
  %v6767 = vunpack.c.l.b16 %v6504
  %v6768 = vunpack.c.l.b16 %v6505
  %v6769 = vunpack.c.l.b16 %v6506
  %v6770 = vunpack.c.l.b16 %v6507
  %v6771 = vunpack.c.l.b16 %v6508
  %v6772 = vunpack.c.l.b16 %v6509
  %v6773 = vunpack.c.l.b16 %v6510
  %v6774 = vunpack.c.l.b16 %v6511
  %v6775 = vunpack.c.l.b16 %v6512
  %v6776 = vunpack.c.l.b16 %v6513
  %v6777 = vunpack.c.l.b16 %v6514
  %v6778 = vunpack.c.l.b16 %v6515
  %v6779 = vunpack.c.l.b16 %v6516
  %v6780 = vunpack.c.l.b16 %v6517
  %v6781 = vunpack.c.l.b16 %v6518
  %v6782 = vunpack.c.l.b16 %v6519
  %v6783 = vunpack.c.l.b16 %v6520
  %v6784 = vunpack.c.l.b16 %v6521
  %v6785 = vunpack.c.l.b16 %v6522
  %v6786 = vunpack.c.l.b16 %v6523
  %v6787 = vunpack.c.l.b16 %v6524
  %v6788 = vunpack.c.l.b16 %v6525
  %v6789 = vunpack.c.l.b16 %v6526
  %v6790 = vunpack.c.l.b16 %v6527
  %v6791 = vunpack.c.l.b16 %v6528
  %v6792 = vunpack.c.l.b16 %v6529
  %v6793 = vunpack.c.l.b16 %v6530
  %v6794 = vunpack.c.l.b16 %v6531
  %v6795 = vunpack.c.l.b16 %v6532
  %v6796 = vunpack.c.l.b16 %v6533
  %v6797 = vunpack.c.l.b16 %v6534
  %v6798 = vunpack.c.l.b16 %v6535
  %v6799 = vunpack.c.l.b16 %v6536
  %v6800 = vunpack.c.l.b16 %v6537
  %v6801 = vunpack.c.l.b16 %v6538
  %v6802 = vunpack.c.l.b16 %v6539
  %v6803 = vunpack.c.l.b16 %v6540
  %v6804 = vunpack.c.l.b16 %v6541
  %v6805 = vunpack.c.l.b16 %v6542
  %v6806 = vunpack.c.l.b16 %v6543
  %v6807 = vunpack.c.l.b16 %v6544
  %v6808 = vunpack.c.l.b16 %v6545
  %v6809 = vunpack.c.l.b16 %v6546
  %v6810 = vunpack.c.l.b16 %v6547
  %v6811 = vunpack.c.l.b16 %v6548
  %v6812 = vunpack.c.l.b16 %v6549
  %v6813 = vunpack.c.l.b16 %v6550
  %v6814 = vpack.c.b16 %v6687, %v6686
  %v6815 = vpack.c.b16 %v6689, %v6688
  %v6816 = vpack.c.b16 %v6691, %v6690
  %v6817 = vpack.c.b16 %v6693, %v6692
  %v6818 = vpack.c.b16 %v6695, %v6694
  %v6819 = vpack.c.b16 %v6697, %v6696
  %v6820 = vpack.c.b16 %v6699, %v6698
  %v6821 = vpack.c.b16 %v6701, %v6700
  %v6822 = vpack.c.b16 %v6703, %v6702
  %v6823 = vpack.c.b16 %v6705, %v6704
  %v6824 = vpack.c.b16 %v6707, %v6706
  %v6825 = vpack.c.b16 %v6709, %v6708
  %v6826 = vpack.c.b16 %v6711, %v6710
  %v6827 = vpack.c.b16 %v6713, %v6712
  %v6828 = vpack.c.b16 %v6715, %v6714
  %v6829 = vpack.c.b16 %v6717, %v6716
  %v6830 = vpack.c.b16 %v6719, %v6718
  %v6831 = vpack.c.b16 %v6721, %v6720
  %v6832 = vpack.c.b16 %v6723, %v6722
  %v6833 = vpack.c.b16 %v6725, %v6724
  %v6834 = vpack.c.b16 %v6727, %v6726
  %v6835 = vpack.c.b16 %v6729, %v6728
  %v6836 = vpack.c.b16 %v6731, %v6730
  %v6837 = vpack.c.b16 %v6733, %v6732
  %v6838 = vpack.c.b16 %v6735, %v6734
  %v6839 = vpack.c.b16 %v6737, %v6736
  %v6840 = vpack.c.b16 %v6739, %v6738
  %v6841 = vpack.c.b16 %v6741, %v6740
  %v6842 = vpack.c.b16 %v6743, %v6742
  %v6843 = vpack.c.b16 %v6745, %v6744
  %v6844 = vpack.c.b16 %v6747, %v6746
  %v6845 = vpack.c.b16 %v6749, %v6748
  %v6846 = vpack.c.b16 %v6751, %v6750
  %v6847 = vpack.c.b16 %v6753, %v6752
  %v6848 = vpack.c.b16 %v6755, %v6754
  %v6849 = vpack.c.b16 %v6757, %v6756
  %v6850 = vpack.c.b16 %v6759, %v6758
  %v6851 = vpack.c.b16 %v6761, %v6760
  %v6852 = vpack.c.b16 %v6763, %v6762
  %v6853 = vpack.c.b16 %v6765, %v6764
  %v6854 = vpack.c.b16 %v6767, %v6766
  %v6855 = vpack.c.b16 %v6769, %v6768
  %v6856 = vpack.c.b16 %v6771, %v6770
  %v6857 = vpack.c.b16 %v6773, %v6772
  %v6858 = vpack.c.b16 %v6775, %v6774
  %v6859 = vpack.c.b16 %v6777, %v6776
  %v6860 = vpack.c.b16 %v6779, %v6778
  %v6861 = vpack.c.b16 %v6781, %v6780
  %v6862 = vpack.c.b16 %v6783, %v6782
  %v6863 = vpack.c.b16 %v6785, %v6784
  %v6864 = vpack.c.b16 %v6787, %v6786
  %v6865 = vpack.c.b16 %v6789, %v6788
  %v6866 = vpack.c.b16 %v6791, %v6790
  %v6867 = vpack.c.b16 %v6793, %v6792
  %v6868 = vpack.c.b16 %v6795, %v6794
  %v6869 = vpack.c.b16 %v6797, %v6796
  %v6870 = vpack.c.b16 %v6799, %v6798
  %v6871 = vpack.c.b16 %v6801, %v6800
  %v6872 = vpack.c.b16 %v6803, %v6802
  %v6873 = vpack.c.b16 %v6805, %v6804
  %v6874 = vpack.c.b16 %v6807, %v6806
  %v6875 = vpack.c.b16 %v6809, %v6808
  %v6876 = vpack.c.b16 %v6811, %v6810
  %v6877 = vpack.c.b16 %v6813, %v6812
  %6942 = vmatprep.subr.bf16.mxu0 0
  %6943 = vmatpush1.bf16.msra.mxu0 %v6821
  %6944 = vmatprep.subr.bf16.mxu0 0
  %6945 = vmatpush1.bf16.msra.mxu0 %v6820
  %6946 = vmatprep.subr.bf16.mxu0 0
  %6947 = vmatpush1.bf16.msra.mxu0 %v6819
  %6948 = vmatprep.subr.bf16.mxu0 0
  %6949 = vmatpush1.bf16.msra.mxu0 %v6818
  %6950 = vmatprep.subr.bf16.mxu0 0
  %6951 = vmatpush1.bf16.msra.mxu0 %v6817
  %6952 = vmatprep.subr.bf16.mxu0 0
  %6953 = vmatpush1.bf16.msra.mxu0 %v6816
  %6954 = vmatprep.subr.bf16.mxu0 0
  %6955 = vmatpush1.bf16.msra.mxu0 %v6815
  %6956 = vmatprep.subr.bf16.mxu0 0
  %6957 = vmatpush1.bf16.msra.mxu0 %v6814
  %6958 = vmatprep.subr.bf16.mxu0 0
  %6959 = vmatpush2.bf16.msra.mxu0 %v6829
  %6960 = vmatprep.subr.bf16.mxu0 0
  %6961 = vmatpush2.bf16.msra.mxu0 %v6828
  %6962 = vmatprep.subr.bf16.mxu0 0
  %6963 = vmatpush2.bf16.msra.mxu0 %v6827
  %6964 = vmatprep.subr.bf16.mxu0 0
  %6965 = vmatpush2.bf16.msra.mxu0 %v6826
  %6966 = vmatprep.subr.bf16.mxu0 0
  %6967 = vmatpush2.bf16.msra.mxu0 %v6825
  %6968 = vmatprep.subr.bf16.mxu0 0
  %6969 = vmatpush2.bf16.msra.mxu0 %v6824
  %6970 = vmatprep.subr.bf16.mxu0 0
  %6971 = vmatpush2.bf16.msra.mxu0 %v6823
  %6972 = vmatprep.subr.bf16.mxu0 0
  %6973 = vmatpush2.bf16.msra.mxu0 %v6822
  %6974 = vmatprep.mubr.bf16.mxu0 %v6408
  %6975 = vmatmul.mubr.bf16.gmra.mxu0 %v6407
  %v6976 = vpop.f32.mrf.mxu0
  %v6977 = vadd.f32 %v6556, %v6976
  %v6978 = vpop.f32.mrf.mxu0
  %v6979 = vpop.f32.mrf.mxu0
  %v6980 = vadd.f32 %v6556, %v6979
  %v6981 = vpop.f32.mrf.mxu0
  %6982 = vmatprep.mubr.bf16.mxu0 %v6416
  %6983 = vmatmul.mubr.bf16.gmra.mxu0 %v6415
  %v6984 = vpop.f32.mrf.mxu0
  %v6985 = vadd.f32 %v6556, %v6984
  %v6986 = vpop.f32.mrf.mxu0
  %v6987 = vpop.f32.mrf.mxu0
  %v6988 = vadd.f32 %v6556, %v6987
  %v6989 = vpop.f32.mrf.mxu0
  %6990 = vdwg.mxu0
  %6991 = vmatprep.subr.bf16.mxu0 0
  %6992 = vmatpush1.bf16.msra.mxu0 %v6837
  %6993 = vmatprep.subr.bf16.mxu0 0
  %6994 = vmatpush1.bf16.msra.mxu0 %v6836
  %6995 = vmatprep.subr.bf16.mxu0 0
  %6996 = vmatpush1.bf16.msra.mxu0 %v6835
  %6997 = vmatprep.subr.bf16.mxu0 0
  %6998 = vmatpush1.bf16.msra.mxu0 %v6834
  %6999 = vmatprep.subr.bf16.mxu0 0
  %7000 = vmatpush1.bf16.msra.mxu0 %v6833
  %7001 = vmatprep.subr.bf16.mxu0 0
  %7002 = vmatpush1.bf16.msra.mxu0 %v6832
  %7003 = vmatprep.subr.bf16.mxu0 0
  %7004 = vmatpush1.bf16.msra.mxu0 %v6831
  %7005 = vmatprep.subr.bf16.mxu0 0
  %7006 = vmatpush1.bf16.msra.mxu0 %v6830
  %7007 = vmatprep.subr.bf16.mxu0 0
  %7008 = vmatpush2.bf16.msra.mxu0 %v6845
  %7009 = vmatprep.subr.bf16.mxu0 0
  %7010 = vmatpush2.bf16.msra.mxu0 %v6844
  %7011 = vmatprep.subr.bf16.mxu0 0
  %7012 = vmatpush2.bf16.msra.mxu0 %v6843
  %7013 = vmatprep.subr.bf16.mxu0 0
  %7014 = vmatpush2.bf16.msra.mxu0 %v6842
  %7015 = vmatprep.subr.bf16.mxu0 0
  %7016 = vmatpush2.bf16.msra.mxu0 %v6841
  %7017 = vmatprep.subr.bf16.mxu0 0
  %7018 = vmatpush2.bf16.msra.mxu0 %v6840
  %7019 = vmatprep.subr.bf16.mxu0 0
  %7020 = vmatpush2.bf16.msra.mxu0 %v6839
  %7021 = vmatprep.subr.bf16.mxu0 0
  %7022 = vmatpush2.bf16.msra.mxu0 %v6838
  %7023 = vmatprep.mubr.bf16.mxu0 %v6410
  %7024 = vmatmul.mubr.bf16.gmra.mxu0 %v6409
  %v7025 = vpop.f32.mrf.mxu0
  %v7026 = vadd.f32 %v6977, %v7025
  %v7027 = vpop.f32.mrf.mxu0
  %v7028 = vpop.f32.mrf.mxu0
  %v7029 = vadd.f32 %v6980, %v7028
  %v7030 = vpop.f32.mrf.mxu0
  %7031 = vmatprep.mubr.bf16.mxu0 %v6418
  %7032 = vmatmul.mubr.bf16.gmra.mxu0 %v6417
  %v7033 = vpop.f32.mrf.mxu0
  %v7034 = vadd.f32 %v6985, %v7033
  %v7035 = vpop.f32.mrf.mxu0
  %v7036 = vpop.f32.mrf.mxu0
  %v7037 = vadd.f32 %v6988, %v7036
  %v7038 = vpop.f32.mrf.mxu0
  %7039 = vdwg.mxu0
  %7040 = vmatprep.subr.bf16.mxu0 0
  %7041 = vmatpush1.bf16.msra.mxu0 %v6853
  %7042 = vmatprep.subr.bf16.mxu0 0
  %7043 = vmatpush1.bf16.msra.mxu0 %v6852
  %7044 = vmatprep.subr.bf16.mxu0 0
  %7045 = vmatpush1.bf16.msra.mxu0 %v6851
  %7046 = vmatprep.subr.bf16.mxu0 0
  %7047 = vmatpush1.bf16.msra.mxu0 %v6850
  %7048 = vmatprep.subr.bf16.mxu0 0
  %7049 = vmatpush1.bf16.msra.mxu0 %v6849
  %7050 = vmatprep.subr.bf16.mxu0 0
  %7051 = vmatpush1.bf16.msra.mxu0 %v6848
  %7052 = vmatprep.subr.bf16.mxu0 0
  %7053 = vmatpush1.bf16.msra.mxu0 %v6847
  %7054 = vmatprep.subr.bf16.mxu0 0
  %7055 = vmatpush1.bf16.msra.mxu0 %v6846
  %7056 = vmatprep.subr.bf16.mxu0 0
  %7057 = vmatpush2.bf16.msra.mxu0 %v6861
  %7058 = vmatprep.subr.bf16.mxu0 0
  %7059 = vmatpush2.bf16.msra.mxu0 %v6860
  %7060 = vmatprep.subr.bf16.mxu0 0
  %7061 = vmatpush2.bf16.msra.mxu0 %v6859
  %7062 = vmatprep.subr.bf16.mxu0 0
  %7063 = vmatpush2.bf16.msra.mxu0 %v6858
  %7064 = vmatprep.subr.bf16.mxu0 0
  %7065 = vmatpush2.bf16.msra.mxu0 %v6857
  %7066 = vmatprep.subr.bf16.mxu0 0
  %7067 = vmatpush2.bf16.msra.mxu0 %v6856
  %7068 = vmatprep.subr.bf16.mxu0 0
  %7069 = vmatpush2.bf16.msra.mxu0 %v6855
  %7070 = vmatprep.subr.bf16.mxu0 0
  %7071 = vmatpush2.bf16.msra.mxu0 %v6854
  %7072 = vmatprep.mubr.bf16.mxu0 %v6412
  %7073 = vmatmul.mubr.bf16.gmra.mxu0 %v6411
  %v7074 = vpop.f32.mrf.mxu0
  %v7075 = vadd.f32 %v7026, %v7074
  %v7076 = vpop.f32.mrf.mxu0
  %v7077 = vpop.f32.mrf.mxu0
  %v7078 = vadd.f32 %v7029, %v7077
  %v7079 = vpop.f32.mrf.mxu0
  %7080 = vmatprep.mubr.bf16.mxu0 %v6420
  %7081 = vmatmul.mubr.bf16.gmra.mxu0 %v6419
  %v7082 = vpop.f32.mrf.mxu0
  %v7083 = vadd.f32 %v7034, %v7082
  %v7084 = vpop.f32.mrf.mxu0
  %v7085 = vpop.f32.mrf.mxu0
  %v7086 = vadd.f32 %v7037, %v7085
  %v7087 = vpop.f32.mrf.mxu0
  %7088 = vdwg.mxu0
  %7089 = vmatprep.subr.bf16.mxu0 0
  %7090 = vmatpush1.bf16.msra.mxu0 %v6869
  %7091 = vmatprep.subr.bf16.mxu0 0
  %7092 = vmatpush1.bf16.msra.mxu0 %v6868
  %7093 = vmatprep.subr.bf16.mxu0 0
  %7094 = vmatpush1.bf16.msra.mxu0 %v6867
  %7095 = vmatprep.subr.bf16.mxu0 0
  %7096 = vmatpush1.bf16.msra.mxu0 %v6866
  %7097 = vmatprep.subr.bf16.mxu0 0
  %7098 = vmatpush1.bf16.msra.mxu0 %v6865
  %7099 = vmatprep.subr.bf16.mxu0 0
  %7100 = vmatpush1.bf16.msra.mxu0 %v6864
  %7101 = vmatprep.subr.bf16.mxu0 0
  %7102 = vmatpush1.bf16.msra.mxu0 %v6863
  %7103 = vmatprep.subr.bf16.mxu0 0
  %7104 = vmatpush1.bf16.msra.mxu0 %v6862
  %7105 = vmatprep.subr.bf16.mxu0 0
  %7106 = vmatpush2.bf16.msra.mxu0 %v6877
  %7107 = vmatprep.subr.bf16.mxu0 0
  %7108 = vmatpush2.bf16.msra.mxu0 %v6876
  %7109 = vmatprep.subr.bf16.mxu0 0
  %7110 = vmatpush2.bf16.msra.mxu0 %v6875
  %7111 = vmatprep.subr.bf16.mxu0 0
  %7112 = vmatpush2.bf16.msra.mxu0 %v6874
  %7113 = vmatprep.subr.bf16.mxu0 0
  %7114 = vmatpush2.bf16.msra.mxu0 %v6873
  %7115 = vmatprep.subr.bf16.mxu0 0
  %7116 = vmatpush2.bf16.msra.mxu0 %v6872
  %7117 = vmatprep.subr.bf16.mxu0 0
  %7118 = vmatpush2.bf16.msra.mxu0 %v6871
  %7119 = vmatprep.subr.bf16.mxu0 0
  %7120 = vmatpush2.bf16.msra.mxu0 %v6870
  %7121 = vmatprep.mubr.bf16.mxu0 %v6414
  %7122 = vmatmul.mubr.bf16.gmra.mxu0 %v6413
  %v7123 = vpop.f32.mrf.mxu0
  %v7124 = vadd.f32 %v7075, %v7123
  %v7125 = vpop.f32.mrf.mxu0
  %v7126 = vpop.f32.mrf.mxu0
  %v7127 = vadd.f32 %v7078, %v7126
  %v7128 = vpop.f32.mrf.mxu0
  %7129 = vmatprep.mubr.bf16.mxu0 %v6422
  %7130 = vmatmul.mubr.bf16.gmra.mxu0 %v6421
  %v7131 = vpop.f32.mrf.mxu0
  %v7132 = vadd.f32 %v7083, %v7131
  %v7133 = vpop.f32.mrf.mxu0
  %v7134 = vpop.f32.mrf.mxu0
  %v7135 = vadd.f32 %v7086, %v7134
  %v7136 = vpop.f32.mrf.mxu0
  %7137 = vdwg.mxu0
  %7138 = vst [vmem:[%s9] sm:$0xff] %v7124
  %7139 = vst [vmem:[%s9 + $0x8] sm:$0xff] %v7127
  %7140 = vst [vmem:[%s9 + $0x10] sm:$0xff] %v7132
  %7141 = vst [vmem:[%s9 + $0x18] sm:$0xff] %v7135
  // Predicated region
  $region38: #{dqn_forward.1} parent=0 // pred_check
    _
  $region39: #{dqn_forward.1} parent=0 // pred_check_branch
    %7143 = sbr.rel (0) target = $region41
  $region40: #{dqn_forward.1} parent=0 // pred_region
    _
  $region41: #{dqn_forward.1} parent=0 // pred_fallthru
    _
  // Predicated region
  $region42: #{dqn_forward.1} parent=0 // pred_check
    _
  $region43: #{dqn_forward.1} parent=0 // pred_check_branch
    %7145 = sbr.rel (0) target = $region45
  $region44: #{dqn_forward.1} parent=0 // pred_region
    _
  $region45: #{dqn_forward.1} parent=0 // pred_fallthru
    _

</llo_original>
